<compile_context>
chip_gen: v6e
topology: v6e:2x2x1
jax: 0.10.0
libtpu: 0.0.40
codegen_flags: <defaults>
</compile_context>

<pallas_src>
import functools

import jax
import jax.numpy as jnp
import numpy as np
from jax import lax
from jax.experimental import pallas as pl
from jax.experimental.pallas import tpu as pltpu


GUARD = 128  # zero guard columns on each side of the flat core layout (>= Wp+1)


# ----------------------------------------------------------------------------
# Fully fused decoder kernel (single invocation, everything VMEM-resident)
# ----------------------------------------------------------------------------
def _decoder_kernel(x_ref, m_ref,
                    w1_ref, b1_ref, g1_ref, be1_ref,
                    w2_ref, b2_ref, g2_ref, be2_ref,
                    w3_ref, b3_ref,
                    out_ref,
                    *, deltas, count, eps):
    core = out_ref.shape[-1]                    # lane-dense flat spatial extent
    mask = m_ref[...] > 0.0                     # (1, core): real image pixels

    def conv(z_g, w_ref, b_ref):
        # Tap-stacked im2col built once per layer from 9 statically shifted
        # views of the guarded layout, then a single
        # (Cout, 9*Cin) @ (9*Cin, core) MXU matmul.
        stk = jnp.concatenate(
            [z_g[:, GUARD + d: GUARD + d + core] for d in deltas], axis=0)
        return jnp.dot(w_ref[...], stk,
                       preferred_element_type=jnp.float32) + b_ref[...]

    def embed(z_core):
        # Re-embed the core into the guarded layout so the next conv's shifted
        # slices stay in bounds; guards are exact zeros (PyTorch zero padding).
        g = jnp.zeros((z_core.shape[0], GUARD), z_core.dtype)
        return jnp.concatenate([g, z_core, g], axis=1)

    def bn(y_core, g_ref, be_ref):
        # Batch statistics over masked (real-pixel) activations; masked
        # positions are exact zeros so they contribute nothing to the sums.
        s1 = jnp.sum(y_core, axis=1, keepdims=True)
        s2 = jnp.sum(y_core * y_core, axis=1, keepdims=True)
        mean = s1 * (1.0 / count)
        var = jnp.maximum(s2 * (1.0 / count) - mean * mean, 0.0)
        sc = g_ref[...] * lax.rsqrt(var + eps)
        sh = be_ref[...] - mean * sc
        # Fold BN into the next layer's input; mask kills the "+shift" on the
        # zero-padding ring / guard / tail so zero padding stays exact.
        return jnp.where(mask, sc * y_core + sh, 0.0)

    # layer 1: conv + relu  (BN1 folded into layer-2 input)
    y1 = jnp.where(mask, jnp.maximum(conv(x_ref[...], w1_ref, b1_ref), 0.0), 0.0)
    z1 = embed(bn(y1, g1_ref, be1_ref))
    # layer 2: conv + relu  (BN2 folded into layer-3 input)
    y2 = jnp.where(mask, jnp.maximum(conv(z1, w2_ref, b2_ref), 0.0), 0.0)
    z2 = embed(bn(y2, g2_ref, be2_ref))
    # layer 3: conv + sigmoid (only interior positions are consumed downstream)
    y3 = conv(z2, w3_ref, b3_ref)
    out_ref[...] = (1.0 / (1.0 + jnp.exp(-y3))).astype(out_ref.dtype)


def _interior_mask_core(n, hp, wp, h2, w2, core):
    """1.0 at real image pixels of the flat core layout, 0.0 elsewhere."""
    m2 = np.zeros((hp, wp), np.float32)
    m2[1:h2 + 1, 1:w2 + 1] = 1.0
    full = np.zeros((1, core), np.float32)
    nf = n * hp * wp
    full[0, :nf] = np.tile(m2.reshape(-1), n)
    return jnp.asarray(full)


# ----------------------------------------------------------------------------
# Full Decoder forward (NCHW in / NCHW out, like the PyTorch module)
# ----------------------------------------------------------------------------
def decoder_forward(x_nchw, params, *, eps=1e-5):
    n, c_in, h, w = x_nchw.shape
    h2, w2 = 2 * h, 2 * w
    hp, wp = h2 + 2, w2 + 2                       # 1-px zero ring for pad=1 convs
    nf = n * hp * wp                              # flat padded spatial extent
    core = ((nf + 127) // 128) * 128              # lane-dense core width
    l_g = core + 2 * GUARD                        # guarded layout width
    assert GUARD >= wp + 1, "guard must cover the 3x3 flat halo"
    deltas = tuple((kh - 1) * wp + (kw - 1) for kh in range(3) for kw in range(3))
    count = float(n * h2 * w2)                    # real pixels per channel (BN)
    cin_p = ((c_in + 7) // 8) * 8                 # sublane-aligned input channels

    # --- XLA glue: nearest 2x upsample + zero ring + channel-major flat layout
    # TODO(synk): fold the nearest-neighbour (row//2, col//2) gather and this
    # relayout into the kernel (polyphase first conv) so the upsampled image is
    # never materialised in HBM.
    xu = jnp.repeat(jnp.repeat(x_nchw, 2, axis=2), 2, axis=3)        # (N,C,H2,W2)
    xp = jnp.pad(xu, ((0, 0), (0, 0), (1, 1), (1, 1)))               # (N,C,Hp,Wp)
    xf = jnp.transpose(xp, (1, 0, 2, 3)).reshape(c_in, nf)           # (C, NF)
    x_g = jnp.pad(xf, ((0, cin_p - c_in), (GUARD, l_g - GUARD - nf)))

    mask = _interior_mask_core(n, hp, wp, h2, w2, core)              # (1, core)

    def prep_w(wt, i_pad):
        # torch OIHW (Cout,Cin,3,3) -> (Cout, 9*i_pad), tap-major (kh, kw, ci)
        o, i = wt.shape[0], wt.shape[1]
        wt_t = jnp.transpose(wt, (0, 2, 3, 1))                        # (O,KH,KW,I)
        wt_t = jnp.pad(wt_t, ((0, 0), (0, 0), (0, 0), (0, i_pad - i)))
        return wt_t.reshape(o, 9 * i_pad)

    col = lambda v: v.reshape(-1, 1).astype(jnp.float32)
    c_hid = params["w1"].shape[0]
    c_out = params["w3"].shape[0]

    kern = functools.partial(_decoder_kernel, deltas=deltas, count=count, eps=eps)
    vmem_spec = lambda: pl.BlockSpec(memory_space=pltpu.MemorySpace.VMEM)

    y3 = pl.pallas_call(
        kern,
        out_shape=jax.ShapeDtypeStruct((c_out, core), jnp.float32),
        in_specs=[vmem_spec() for _ in range(12)],   # everything VMEM-resident
        out_specs=vmem_spec(),
        compiler_params=pltpu.CompilerParams(
            # Working set < 2 MiB; explicit budget keeps headroom on v7x (64 MiB).
            vmem_limit_bytes=32 * 1024 * 1024,
        ),
    )(x_g, mask,
      prep_w(params["w1"], cin_p), col(params["b1"]), col(params["g1"]), col(params["be1"]),
      prep_w(params["w2"], c_hid), col(params["b2"]), col(params["g2"]), col(params["be2"]),
      prep_w(params["w3"], c_hid), col(params["b3"]))

    out = y3[:, :nf].reshape(c_out, n, hp, wp)[:, :, 1:h2 + 1, 1:w2 + 1]
    return jnp.transpose(out, (1, 0, 2, 3))                          # (N,Cout,H2,W2)


# ----------------------------------------------------------------------------
# Deterministic parameter init (PyTorch-style uniform bound = 1/sqrt(fan_in))
# ----------------------------------------------------------------------------
def init_params(key, input_size, hidden_size, output_size):
    ks = jax.random.split(key, 6)

    def conv_init(kw, kb, cout, cin):
        bound = 1.0 / np.sqrt(cin * 9)
        w = jax.random.uniform(kw, (cout, cin, 3, 3), jnp.float32, -bound, bound)
        b = jax.random.uniform(kb, (cout,), jnp.float32, -bound, bound)
        return w, b

    w1, b1 = conv_init(ks[0], ks[1], hidden_size, input_size)
    w2, b2 = conv_init(ks[2], ks[3], hidden_size, hidden_size)
    w3, b3 = conv_init(ks[4], ks[5], output_size, hidden_size)
    return {
        "w1": w1, "b1": b1, "g1": jnp.ones((hidden_size,), jnp.float32),
        "be1": jnp.zeros((hidden_size,), jnp.float32),
        "w2": w2, "b2": b2, "g2": jnp.ones((hidden_size,), jnp.float32),
        "be2": jnp.zeros((hidden_size,), jnp.float32),
        "w3": w3, "b3": b3,
    }


# ----------------------------------------------------------------------------
# Pure-JAX reference (PyTorch semantics, full-f32 precision)
# ----------------------------------------------------------------------------
def reference_decoder(x_nchw, params):
    def conv(x, w, b):
        y = jax.lax.conv_general_dilated(
            x, w, (1, 1), ((1, 1), (1, 1)),
            dimension_numbers=("NCHW", "OIHW", "NCHW"),
            precision=jax.lax.Precision.HIGHEST)
        return y + b[None, :, None, None]

    def bn(x, g, bta):
        mean = x.mean(axis=(0, 2, 3), keepdims=True)
        var = ((x - mean) ** 2).mean(axis=(0, 2, 3), keepdims=True)
        return (x - mean) * jax.lax.rsqrt(var + 1e-5) * g[None, :, None, None] \
            + bta[None, :, None, None]

    x = jnp.repeat(jnp.repeat(x_nchw, 2, axis=2), 2, axis=3)
    x = bn(jax.nn.relu(conv(x, params["w1"], params["b1"])), params["g1"], params["be1"])
    x = bn(jax.nn.relu(conv(x, params["w2"], params["b2"])), params["g2"], params["be2"])
    x = jax.nn.sigmoid(conv(x, params["w3"], params["b3"]))
    return x


if __name__ == "__main__":
    key = jax.random.PRNGKey(0)
    kx, kp = jax.random.split(key)

    N, C_IN, H, W = 2, 4, 16, 16      # input_size = 4, output_size defaults to input_size
    HIDDEN = 8

    x = jax.random.normal(kx, (N, C_IN, H, W), jnp.float32)
    params = init_params(kp, C_IN, HIDDEN, C_IN)

    out = jax.jit(decoder_forward)(x, params)
    out = jax.block_until_ready(out)

    assert out.shape == (N, C_IN, 2 * H, 2 * W), out.shape

    ref = reference_decoder(x, params)
    # Kernel matmuls use Mosaic's default f32 matmul path (may take MXU bf16
    # passes) while the reference runs full-f32 HIGHEST; tolerance kept
    # conservative to cover either lowering.
    np.testing.assert_allclose(np.asarray(out), np.asarray(ref), rtol=2e-2, atol=2e-2)

    print("KERNEL_OK")
</pallas_src>

<mosaic_0001>
module attributes {stable_mosaic.version = 11 : i64} {
  func.func @_decoder_kernel(%arg0: memref<8x2688xf32, #tpu.memory_space<vmem>>, %arg1: memref<1x2432xf32, #tpu.memory_space<vmem>>, %arg2: memref<8x72xf32, #tpu.memory_space<vmem>>, %arg3: memref<8x1xf32, #tpu.memory_space<vmem>>, %arg4: memref<8x1xf32, #tpu.memory_space<vmem>>, %arg5: memref<8x1xf32, #tpu.memory_space<vmem>>, %arg6: memref<8x72xf32, #tpu.memory_space<vmem>>, %arg7: memref<8x1xf32, #tpu.memory_space<vmem>>, %arg8: memref<8x1xf32, #tpu.memory_space<vmem>>, %arg9: memref<8x1xf32, #tpu.memory_space<vmem>>, %arg10: memref<4x72xf32, #tpu.memory_space<vmem>>, %arg11: memref<4x1xf32, #tpu.memory_space<vmem>>, %arg12: memref<4x2432xf32, #tpu.memory_space<vmem>>) attributes {dimension_semantics = [], scalar_prefetch = 0 : i64, scratch_operands = 0 : i64, tpu.core_type = #tpu.core_type<tc>} {
    %c0 = arith.constant 0 : index
    %c0_0 = arith.constant 0 : index
    %0 = vector.load %arg1[%c0, %c0_0] : memref<1x2432xf32, #tpu.memory_space<vmem>>, vector<1x2432xf32>
    %cst = arith.constant 0.000000e+00 : f32
    %1 = vector.broadcast %cst : f32 to vector<1x2432xf32>
    %2 = arith.cmpf ogt, %0, %1 : vector<1x2432xf32>
    %c0_1 = arith.constant 0 : index
    %c0_2 = arith.constant 0 : index
    %3 = vector.load %arg0[%c0_1, %c0_2] : memref<8x2688xf32, #tpu.memory_space<vmem>>, vector<8x2688xf32>
    %4 = vector.extract_strided_slice %3 {offsets = [0, 93], sizes = [8, 2432], strides = [1, 1]} : vector<8x2688xf32> to vector<8x2432xf32>
    %5 = vector.extract_strided_slice %3 {offsets = [0, 94], sizes = [8, 2432], strides = [1, 1]} : vector<8x2688xf32> to vector<8x2432xf32>
    %6 = vector.extract_strided_slice %3 {offsets = [0, 95], sizes = [8, 2432], strides = [1, 1]} : vector<8x2688xf32> to vector<8x2432xf32>
    %7 = vector.extract_strided_slice %3 {offsets = [0, 127], sizes = [8, 2432], strides = [1, 1]} : vector<8x2688xf32> to vector<8x2432xf32>
    %8 = vector.extract_strided_slice %3 {offsets = [0, 128], sizes = [8, 2432], strides = [1, 1]} : vector<8x2688xf32> to vector<8x2432xf32>
    %9 = vector.extract_strided_slice %3 {offsets = [0, 129], sizes = [8, 2432], strides = [1, 1]} : vector<8x2688xf32> to vector<8x2432xf32>
    %10 = vector.extract_strided_slice %3 {offsets = [0, 161], sizes = [8, 2432], strides = [1, 1]} : vector<8x2688xf32> to vector<8x2432xf32>
    %11 = vector.extract_strided_slice %3 {offsets = [0, 162], sizes = [8, 2432], strides = [1, 1]} : vector<8x2688xf32> to vector<8x2432xf32>
    %12 = vector.extract_strided_slice %3 {offsets = [0, 163], sizes = [8, 2432], strides = [1, 1]} : vector<8x2688xf32> to vector<8x2432xf32>
    %13 = tpu.concatenate %4, %5, %6, %7, %8, %9, %10, %11, %12 in 0 : vector<8x2432xf32>, vector<8x2432xf32>, vector<8x2432xf32>, vector<8x2432xf32>, vector<8x2432xf32>, vector<8x2432xf32>, vector<8x2432xf32>, vector<8x2432xf32>, vector<8x2432xf32> -> vector<72x2432xf32>
    %c0_3 = arith.constant 0 : index
    %c0_4 = arith.constant 0 : index
    %14 = vector.load %arg2[%c0_3, %c0_4] : memref<8x72xf32, #tpu.memory_space<vmem>>, vector<8x72xf32>
    %cst_5 = arith.constant dense<0.000000e+00> : vector<8x2432xf32>
    %15 = tpu.matmul %14, %13, %cst_5 {dimension_numbers = #tpu.dot_dimension_numbers<[1], [0], [0], [1], [0, 0, 1, 1], [], []>} : vector<8x72xf32>, vector<72x2432xf32>, vector<8x2432xf32> -> vector<8x2432xf32>
    %c0_6 = arith.constant 0 : index
    %c0_7 = arith.constant 0 : index
    %16 = vector.load %arg3[%c0_6, %c0_7] : memref<8x1xf32, #tpu.memory_space<vmem>>, vector<8x1xf32>
    %17 = vector.broadcast %16 : vector<8x1xf32> to vector<8x2432xf32>
    %18 = arith.addf %15, %17 : vector<8x2432xf32>
    %cst_8 = arith.constant 0.000000e+00 : f32
    %19 = vector.broadcast %cst_8 : f32 to vector<8x2432xf32>
    %20 = arith.maximumf %18, %19 : vector<8x2432xf32>
    %cst_9 = arith.constant 0.000000e+00 : f32
    %21 = vector.shape_cast %2 : vector<1x2432xi1> to vector<1x2432xi1>
    %22 = vector.broadcast %21 : vector<1x2432xi1> to vector<8x2432xi1>
    %23 = vector.broadcast %cst_9 : f32 to vector<8x2432xf32>
    %24 = arith.select %22, %20, %23 : vector<8x2432xi1>, vector<8x2432xf32>
    %cst_10 = arith.constant dense<0.000000e+00> : vector<8xf32>
    %25 = vector.multi_reduction <add>, %24, %cst_10 [1] : vector<8x2432xf32> to vector<8xf32>
    %26 = vector.shape_cast %25 : vector<8xf32> to vector<8x1xf32>
    %27 = arith.mulf %24, %24 : vector<8x2432xf32>
    %cst_11 = arith.constant dense<0.000000e+00> : vector<8xf32>
    %28 = vector.multi_reduction <add>, %27, %cst_11 [1] : vector<8x2432xf32> to vector<8xf32>
    %29 = vector.shape_cast %28 : vector<8xf32> to vector<8x1xf32>
    %cst_12 = arith.constant 4.8828125E-4 : f32
    %30 = vector.broadcast %cst_12 : f32 to vector<8x1xf32>
    %31 = arith.mulf %26, %30 : vector<8x1xf32>
    %cst_13 = arith.constant 4.8828125E-4 : f32
    %32 = vector.broadcast %cst_13 : f32 to vector<8x1xf32>
    %33 = arith.mulf %29, %32 : vector<8x1xf32>
    %34 = arith.mulf %31, %31 : vector<8x1xf32>
    %35 = arith.subf %33, %34 : vector<8x1xf32>
    %cst_14 = arith.constant 0.000000e+00 : f32
    %36 = vector.broadcast %cst_14 : f32 to vector<8x1xf32>
    %37 = arith.maximumf %35, %36 : vector<8x1xf32>
    %c0_15 = arith.constant 0 : index
    %c0_16 = arith.constant 0 : index
    %38 = vector.load %arg4[%c0_15, %c0_16] : memref<8x1xf32, #tpu.memory_space<vmem>>, vector<8x1xf32>
    %cst_17 = arith.constant 9.99999974E-6 : f32
    %39 = vector.broadcast %cst_17 : f32 to vector<8x1xf32>
    %40 = arith.addf %37, %39 : vector<8x1xf32>
    %41 = math.rsqrt %40 : vector<8x1xf32>
    %42 = arith.mulf %38, %41 : vector<8x1xf32>
    %c0_18 = arith.constant 0 : index
    %c0_19 = arith.constant 0 : index
    %43 = vector.load %arg5[%c0_18, %c0_19] : memref<8x1xf32, #tpu.memory_space<vmem>>, vector<8x1xf32>
    %44 = arith.mulf %31, %42 : vector<8x1xf32>
    %45 = arith.subf %43, %44 : vector<8x1xf32>
    %46 = vector.broadcast %42 : vector<8x1xf32> to vector<8x2432xf32>
    %47 = arith.mulf %46, %24 : vector<8x2432xf32>
    %48 = vector.broadcast %45 : vector<8x1xf32> to vector<8x2432xf32>
    %49 = arith.addf %47, %48 : vector<8x2432xf32>
    %cst_20 = arith.constant 0.000000e+00 : f32
    %50 = vector.shape_cast %2 : vector<1x2432xi1> to vector<1x2432xi1>
    %51 = vector.broadcast %50 : vector<1x2432xi1> to vector<8x2432xi1>
    %52 = vector.broadcast %cst_20 : f32 to vector<8x2432xf32>
    %53 = arith.select %51, %49, %52 : vector<8x2432xi1>, vector<8x2432xf32>
    %cst_21 = arith.constant 0.000000e+00 : f32
    %54 = vector.broadcast %cst_21 : f32 to vector<8x128xf32>
    %55 = tpu.concatenate %54, %53, %54 in 1 : vector<8x128xf32>, vector<8x2432xf32>, vector<8x128xf32> -> vector<8x2688xf32>
    %56 = vector.extract_strided_slice %55 {offsets = [0, 93], sizes = [8, 2432], strides = [1, 1]} : vector<8x2688xf32> to vector<8x2432xf32>
    %57 = vector.extract_strided_slice %55 {offsets = [0, 94], sizes = [8, 2432], strides = [1, 1]} : vector<8x2688xf32> to vector<8x2432xf32>
    %58 = vector.extract_strided_slice %55 {offsets = [0, 95], sizes = [8, 2432], strides = [1, 1]} : vector<8x2688xf32> to vector<8x2432xf32>
    %59 = vector.extract_strided_slice %55 {offsets = [0, 127], sizes = [8, 2432], strides = [1, 1]} : vector<8x2688xf32> to vector<8x2432xf32>
    %60 = vector.extract_strided_slice %55 {offsets = [0, 128], sizes = [8, 2432], strides = [1, 1]} : vector<8x2688xf32> to vector<8x2432xf32>
    %61 = vector.extract_strided_slice %55 {offsets = [0, 129], sizes = [8, 2432], strides = [1, 1]} : vector<8x2688xf32> to vector<8x2432xf32>
    %62 = vector.extract_strided_slice %55 {offsets = [0, 161], sizes = [8, 2432], strides = [1, 1]} : vector<8x2688xf32> to vector<8x2432xf32>
    %63 = vector.extract_strided_slice %55 {offsets = [0, 162], sizes = [8, 2432], strides = [1, 1]} : vector<8x2688xf32> to vector<8x2432xf32>
    %64 = vector.extract_strided_slice %55 {offsets = [0, 163], sizes = [8, 2432], strides = [1, 1]} : vector<8x2688xf32> to vector<8x2432xf32>
    %65 = tpu.concatenate %56, %57, %58, %59, %60, %61, %62, %63, %64 in 0 : vector<8x2432xf32>, vector<8x2432xf32>, vector<8x2432xf32>, vector<8x2432xf32>, vector<8x2432xf32>, vector<8x2432xf32>, vector<8x2432xf32>, vector<8x2432xf32>, vector<8x2432xf32> -> vector<72x2432xf32>
    %c0_22 = arith.constant 0 : index
    %c0_23 = arith.constant 0 : index
    %66 = vector.load %arg6[%c0_22, %c0_23] : memref<8x72xf32, #tpu.memory_space<vmem>>, vector<8x72xf32>
    %cst_24 = arith.constant dense<0.000000e+00> : vector<8x2432xf32>
    %67 = tpu.matmul %66, %65, %cst_24 {dimension_numbers = #tpu.dot_dimension_numbers<[1], [0], [0], [1], [0, 0, 1, 1], [], []>} : vector<8x72xf32>, vector<72x2432xf32>, vector<8x2432xf32> -> vector<8x2432xf32>
    %c0_25 = arith.constant 0 : index
    %c0_26 = arith.constant 0 : index
    %68 = vector.load %arg7[%c0_25, %c0_26] : memref<8x1xf32, #tpu.memory_space<vmem>>, vector<8x1xf32>
    %69 = vector.broadcast %68 : vector<8x1xf32> to vector<8x2432xf32>
    %70 = arith.addf %67, %69 : vector<8x2432xf32>
    %cst_27 = arith.constant 0.000000e+00 : f32
    %71 = vector.broadcast %cst_27 : f32 to vector<8x2432xf32>
    %72 = arith.maximumf %70, %71 : vector<8x2432xf32>
    %cst_28 = arith.constant 0.000000e+00 : f32
    %73 = vector.shape_cast %2 : vector<1x2432xi1> to vector<1x2432xi1>
    %74 = vector.broadcast %73 : vector<1x2432xi1> to vector<8x2432xi1>
    %75 = vector.broadcast %cst_28 : f32 to vector<8x2432xf32>
    %76 = arith.select %74, %72, %75 : vector<8x2432xi1>, vector<8x2432xf32>
    %cst_29 = arith.constant dense<0.000000e+00> : vector<8xf32>
    %77 = vector.multi_reduction <add>, %76, %cst_29 [1] : vector<8x2432xf32> to vector<8xf32>
    %78 = vector.shape_cast %77 : vector<8xf32> to vector<8x1xf32>
    %79 = arith.mulf %76, %76 : vector<8x2432xf32>
    %cst_30 = arith.constant dense<0.000000e+00> : vector<8xf32>
    %80 = vector.multi_reduction <add>, %79, %cst_30 [1] : vector<8x2432xf32> to vector<8xf32>
    %81 = vector.shape_cast %80 : vector<8xf32> to vector<8x1xf32>
    %cst_31 = arith.constant 4.8828125E-4 : f32
    %82 = vector.broadcast %cst_31 : f32 to vector<8x1xf32>
    %83 = arith.mulf %78, %82 : vector<8x1xf32>
    %cst_32 = arith.constant 4.8828125E-4 : f32
    %84 = vector.broadcast %cst_32 : f32 to vector<8x1xf32>
    %85 = arith.mulf %81, %84 : vector<8x1xf32>
    %86 = arith.mulf %83, %83 : vector<8x1xf32>
    %87 = arith.subf %85, %86 : vector<8x1xf32>
    %cst_33 = arith.constant 0.000000e+00 : f32
    %88 = vector.broadcast %cst_33 : f32 to vector<8x1xf32>
    %89 = arith.maximumf %87, %88 : vector<8x1xf32>
    %c0_34 = arith.constant 0 : index
    %c0_35 = arith.constant 0 : index
    %90 = vector.load %arg8[%c0_34, %c0_35] : memref<8x1xf32, #tpu.memory_space<vmem>>, vector<8x1xf32>
    %cst_36 = arith.constant 9.99999974E-6 : f32
    %91 = vector.broadcast %cst_36 : f32 to vector<8x1xf32>
    %92 = arith.addf %89, %91 : vector<8x1xf32>
    %93 = math.rsqrt %92 : vector<8x1xf32>
    %94 = arith.mulf %90, %93 : vector<8x1xf32>
    %c0_37 = arith.constant 0 : index
    %c0_38 = arith.constant 0 : index
    %95 = vector.load %arg9[%c0_37, %c0_38] : memref<8x1xf32, #tpu.memory_space<vmem>>, vector<8x1xf32>
    %96 = arith.mulf %83, %94 : vector<8x1xf32>
    %97 = arith.subf %95, %96 : vector<8x1xf32>
    %98 = vector.broadcast %94 : vector<8x1xf32> to vector<8x2432xf32>
    %99 = arith.mulf %98, %76 : vector<8x2432xf32>
    %100 = vector.broadcast %97 : vector<8x1xf32> to vector<8x2432xf32>
    %101 = arith.addf %99, %100 : vector<8x2432xf32>
    %cst_39 = arith.constant 0.000000e+00 : f32
    %102 = vector.shape_cast %2 : vector<1x2432xi1> to vector<1x2432xi1>
    %103 = vector.broadcast %102 : vector<1x2432xi1> to vector<8x2432xi1>
    %104 = vector.broadcast %cst_39 : f32 to vector<8x2432xf32>
    %105 = arith.select %103, %101, %104 : vector<8x2432xi1>, vector<8x2432xf32>
    %cst_40 = arith.constant 0.000000e+00 : f32
    %106 = vector.broadcast %cst_40 : f32 to vector<8x128xf32>
    %107 = tpu.concatenate %106, %105, %106 in 1 : vector<8x128xf32>, vector<8x2432xf32>, vector<8x128xf32> -> vector<8x2688xf32>
    %108 = vector.extract_strided_slice %107 {offsets = [0, 93], sizes = [8, 2432], strides = [1, 1]} : vector<8x2688xf32> to vector<8x2432xf32>
    %109 = vector.extract_strided_slice %107 {offsets = [0, 94], sizes = [8, 2432], strides = [1, 1]} : vector<8x2688xf32> to vector<8x2432xf32>
    %110 = vector.extract_strided_slice %107 {offsets = [0, 95], sizes = [8, 2432], strides = [1, 1]} : vector<8x2688xf32> to vector<8x2432xf32>
    %111 = vector.extract_strided_slice %107 {offsets = [0, 127], sizes = [8, 2432], strides = [1, 1]} : vector<8x2688xf32> to vector<8x2432xf32>
    %112 = vector.extract_strided_slice %107 {offsets = [0, 128], sizes = [8, 2432], strides = [1, 1]} : vector<8x2688xf32> to vector<8x2432xf32>
    %113 = vector.extract_strided_slice %107 {offsets = [0, 129], sizes = [8, 2432], strides = [1, 1]} : vector<8x2688xf32> to vector<8x2432xf32>
    %114 = vector.extract_strided_slice %107 {offsets = [0, 161], sizes = [8, 2432], strides = [1, 1]} : vector<8x2688xf32> to vector<8x2432xf32>
    %115 = vector.extract_strided_slice %107 {offsets = [0, 162], sizes = [8, 2432], strides = [1, 1]} : vector<8x2688xf32> to vector<8x2432xf32>
    %116 = vector.extract_strided_slice %107 {offsets = [0, 163], sizes = [8, 2432], strides = [1, 1]} : vector<8x2688xf32> to vector<8x2432xf32>
    %117 = tpu.concatenate %108, %109, %110, %111, %112, %113, %114, %115, %116 in 0 : vector<8x2432xf32>, vector<8x2432xf32>, vector<8x2432xf32>, vector<8x2432xf32>, vector<8x2432xf32>, vector<8x2432xf32>, vector<8x2432xf32>, vector<8x2432xf32>, vector<8x2432xf32> -> vector<72x2432xf32>
    %c0_41 = arith.constant 0 : index
    %c0_42 = arith.constant 0 : index
    %118 = vector.load %arg10[%c0_41, %c0_42] : memref<4x72xf32, #tpu.memory_space<vmem>>, vector<4x72xf32>
    %cst_43 = arith.constant dense<0.000000e+00> : vector<4x2432xf32>
    %119 = tpu.matmul %118, %117, %cst_43 {dimension_numbers = #tpu.dot_dimension_numbers<[1], [0], [0], [1], [0, 0, 1, 1], [], []>} : vector<4x72xf32>, vector<72x2432xf32>, vector<4x2432xf32> -> vector<4x2432xf32>
    %c0_44 = arith.constant 0 : index
    %c0_45 = arith.constant 0 : index
    %120 = vector.load %arg11[%c0_44, %c0_45] : memref<4x1xf32, #tpu.memory_space<vmem>>, vector<4x1xf32>
    %121 = vector.broadcast %120 : vector<4x1xf32> to vector<4x2432xf32>
    %122 = arith.addf %119, %121 : vector<4x2432xf32>
    %cst_46 = arith.constant 0.000000e+00 : f32
    %123 = vector.broadcast %cst_46 : f32 to vector<4x2432xf32>
    %124 = arith.subf %123, %122 : vector<4x2432xf32>
    %125 = math.exp %124 : vector<4x2432xf32>
    %cst_47 = arith.constant 1.000000e+00 : f32
    %126 = vector.broadcast %cst_47 : f32 to vector<4x2432xf32>
    %127 = arith.addf %126, %125 : vector<4x2432xf32>
    %cst_48 = arith.constant 1.000000e+00 : f32
    %128 = vector.broadcast %cst_48 : f32 to vector<4x2432xf32>
    %129 = arith.divf %128, %127 : vector<4x2432xf32>
    %c0_49 = arith.constant 0 : index
    %c0_50 = arith.constant 0 : index
    %130 = vector.load %arg12[%c0_49, %c0_50] : memref<4x2432xf32, #tpu.memory_space<vmem>>, vector<4x2432xf32>
    tpu.vector_store %arg12[%c0_49, %c0_50], %129 {strides = array<i32>} : memref<4x2432xf32, #tpu.memory_space<vmem>>, vector<4x2432xf32>,
    return
  }
}

</mosaic_0001>

<llo_original>
// kernel: decoder_forward.1
$region0: #{decoder_forward.1}
  #allocation0 [shape = 'u32[]', space=smem, size = 0x4, offset = 0x4, fixed_abs, tag = 'smem constant byte address 0x4 - core index']
  #allocation1 [shape = 'u32[144,128]{1,0:T(1,128)}', space=vmem, size = 0x12000, scoped, tag = 'internal scratch']
  %s0 = inlined_call_operand.vmem [shape: f32[8,2688], index: 0, kind: input, shape index: {}]
  %s1 = inlined_call_operand.vmem [shape: f32[1,2432], index: 1, kind: input, shape index: {}]
  %s2 = inlined_call_operand.vmem [shape: f32[8,72], index: 2, kind: input, shape index: {}]
  %s3 = inlined_call_operand.vmem [shape: f32[8,1], index: 3, kind: input, shape index: {}]
  %s4 = inlined_call_operand.vmem [shape: f32[8,1], index: 4, kind: input, shape index: {}]
  %s5 = inlined_call_operand.vmem [shape: f32[8,1], index: 5, kind: input, shape index: {}]
  %s6 = inlined_call_operand.vmem [shape: f32[8,72], index: 6, kind: input, shape index: {}]
  %s7 = inlined_call_operand.vmem [shape: f32[8,1], index: 7, kind: input, shape index: {}]
  %s8 = inlined_call_operand.vmem [shape: f32[8,1], index: 8, kind: input, shape index: {}]
  %s9 = inlined_call_operand.vmem [shape: f32[8,1], index: 9, kind: input, shape index: {}]
  %s10 = inlined_call_operand.vmem [shape: f32[4,72], index: 10, kind: input, shape index: {}]
  %s11 = inlined_call_operand.vmem [shape: f32[4,1], index: 11, kind: input, shape index: {}]
  %s12 = inlined_call_operand.vmem [shape: f32[4,2432], index: 12, kind: output, shape index: {}]
  %s13 = sld [smem:[#allocation0]]
  $region58: #{decoder_forward.1} parent=0
    _
  %s15 = ssub.s32 1, %s13
  %s16 = scalar_select 0, %s15, %s13
  // Predicated region
  $region2: #{decoder_forward.1} parent=0 // pred_check
    _
  $region3: #{decoder_forward.1} parent=0 // pred_check_branch
    %18 = sbr.rel (0) target = $region5
  $region4: #{decoder_forward.1} parent=0 // pred_region
    _
  $region5: #{decoder_forward.1} parent=0 // pred_fallthru
    _
  // Predicated region
  $region6: #{decoder_forward.1} parent=0 // pred_check
    _
  $region7: #{decoder_forward.1} parent=0 // pred_check_branch
    %20 = sbr.rel (0) target = $region9
  $region8: #{decoder_forward.1} parent=0 // pred_region
    _
  $region9: #{decoder_forward.1} parent=0 // pred_fallthru
    _
  // Predicated region
  $region10: #{decoder_forward.1} parent=0 // pred_check
    _
  $region11: #{decoder_forward.1} parent=0 // pred_check_branch
    %22 = sbr.rel (0) target = $region13
  $region12: #{decoder_forward.1} parent=0 // pred_region
    _
  $region13: #{decoder_forward.1} parent=0 // pred_fallthru
    _
  // Predicated region
  $region14: #{decoder_forward.1} parent=0 // pred_check
    _
  $region15: #{decoder_forward.1} parent=0 // pred_check_branch
    %24 = sbr.rel (0) target = $region17
  $region16: #{decoder_forward.1} parent=0 // pred_region
    _
  $region17: #{decoder_forward.1} parent=0 // pred_fallthru
    _
  // Predicated region
  $region18: #{decoder_forward.1} parent=0 // pred_check
    _
  $region19: #{decoder_forward.1} parent=0 // pred_check_branch
    %26 = sbr.rel (0) target = $region21
  $region20: #{decoder_forward.1} parent=0 // pred_region
    _
  $region21: #{decoder_forward.1} parent=0 // pred_fallthru
    _
  // Predicated region
  $region22: #{decoder_forward.1} parent=0 // pred_check
    _
  $region23: #{decoder_forward.1} parent=0 // pred_check_branch
    %28 = sbr.rel (0) target = $region25
  $region24: #{decoder_forward.1} parent=0 // pred_region
    _
  $region25: #{decoder_forward.1} parent=0 // pred_fallthru
    _
  // Predicated region
  $region26: #{decoder_forward.1} parent=0 // pred_check
    _
  $region27: #{decoder_forward.1} parent=0 // pred_check_branch
    %30 = sbr.rel (0) target = $region29
  $region28: #{decoder_forward.1} parent=0 // pred_region
    _
  $region29: #{decoder_forward.1} parent=0 // pred_fallthru
    _
  // Predicated region
  $region30: #{decoder_forward.1} parent=0 // pred_check
    _
  $region31: #{decoder_forward.1} parent=0 // pred_check_branch
    %32 = sbr.rel (0) target = $region33
  $region32: #{decoder_forward.1} parent=0 // pred_region
    _
  $region33: #{decoder_forward.1} parent=0 // pred_fallthru
    _
  // Predicated region
  $region34: #{decoder_forward.1} parent=0 // pred_check
    _
  $region35: #{decoder_forward.1} parent=0 // pred_check_branch
    %34 = sbr.rel (0) target = $region37
  $region36: #{decoder_forward.1} parent=0 // pred_region
    _
  $region37: #{decoder_forward.1} parent=0 // pred_fallthru
    _
  // Predicated region
  $region38: #{decoder_forward.1} parent=0 // pred_check
    _
  $region39: #{decoder_forward.1} parent=0 // pred_check_branch
    %36 = sbr.rel (0) target = $region41
  $region40: #{decoder_forward.1} parent=0 // pred_region
    _
  $region41: #{decoder_forward.1} parent=0 // pred_fallthru
    _
  // Predicated region
  $region42: #{decoder_forward.1} parent=0 // pred_check
    _
  $region43: #{decoder_forward.1} parent=0 // pred_check_branch
    %38 = sbr.rel (0) target = $region45
  $region44: #{decoder_forward.1} parent=0 // pred_region
    _
  $region45: #{decoder_forward.1} parent=0 // pred_fallthru
    _
  // Predicated region
  $region46: #{decoder_forward.1} parent=0 // pred_check
    _
  $region47: #{decoder_forward.1} parent=0 // pred_check_branch
    %40 = sbr.rel (0) target = $region49
  $region48: #{decoder_forward.1} parent=0 // pred_region
    _
  $region49: #{decoder_forward.1} parent=0 // pred_fallthru
    _
  %v41 = vld [vmem:[%s1] sm:$0xff]
  %v42 = vld [vmem:[%s1 + $0x8] sm:$0xff]
  %v43 = vld [vmem:[%s1 + $0x10] sm:$0x7]
  %vm44 = vcmp.gt.f32.partialorder %v41, 0.0
  %vm45 = vcmp.gt.f32.partialorder %v42, 0.0
  %vm46 = vcmp.gt.f32.partialorder %v43, 0.0
  %v47 = vld [vmem:[%s0] sm:$0xff]
  %v48 = vld [vmem:[%s0 + $0x8] sm:$0xff]
  %v49 = vld [vmem:[%s0 + $0x10] sm:$0xff]
  %v50 = vld [vmem:[%s0 + $0x18] sm:$0xff]
  %v51 = vld [vmem:[%s0 + $0x20] sm:$0xff]
  %v52 = vld [vmem:[%s0 + $0x28] sm:$0xff]
  %v53 = vld [vmem:[%s0 + $0x30] sm:$0xff]
  %v54 = vld [vmem:[%s0 + $0x38] sm:$0xff]
  %v55 = vld [vmem:[%s0 + $0x40] sm:$0xff]
  %v56 = vld [vmem:[%s0 + $0x48] sm:$0xff]
  %v57 = vld [vmem:[%s0 + $0x50] sm:$0xff]
  %v58 = vld [vmem:[%s0 + $0x58] sm:$0xff]
  %v59 = vld [vmem:[%s0 + $0x60] sm:$0xff]
  %v60 = vld [vmem:[%s0 + $0x68] sm:$0xff]
  %v61 = vld [vmem:[%s0 + $0x70] sm:$0xff]
  %v62 = vld [vmem:[%s0 + $0x78] sm:$0xff]
  %v63 = vld [vmem:[%s0 + $0x80] sm:$0xff]
  %v64 = vld [vmem:[%s0 + $0x88] sm:$0xff]
  %v65 = vld [vmem:[%s0 + $0x90] sm:$0xff]
  %v66 = vld [vmem:[%s0 + $0x98] sm:$0xff]
  %v67 = vld [vmem:[%s0 + $0xa0] sm:$0xff]
  %88 = vrot.lane.b32.xlu0 %v47, 127
  %v89 = vpop.permute.xlu0 %88
  %90 = vrot.lane.b32.xlu0 %v48, 127
  %v91 = vpop.permute.xlu0 %90
  %92 = vrot.lane.b32.xlu0 %v49, 127
  %v93 = vpop.permute.xlu0 %92
  %94 = vrot.lane.b32.xlu0 %v50, 127
  %v95 = vpop.permute.xlu0 %94
  %96 = vrot.lane.b32.xlu0 %v51, 127
  %v97 = vpop.permute.xlu0 %96
  %98 = vrot.lane.b32.xlu0 %v52, 127
  %v99 = vpop.permute.xlu0 %98
  %100 = vrot.lane.b32.xlu0 %v53, 127
  %v101 = vpop.permute.xlu0 %100
  %102 = vrot.lane.b32.xlu0 %v54, 127
  %v103 = vpop.permute.xlu0 %102
  %104 = vrot.lane.b32.xlu0 %v55, 127
  %v105 = vpop.permute.xlu0 %104
  %106 = vrot.lane.b32.xlu0 %v56, 127
  %v107 = vpop.permute.xlu0 %106
  %108 = vrot.lane.b32.xlu0 %v57, 127
  %v109 = vpop.permute.xlu0 %108
  %110 = vrot.lane.b32.xlu0 %v58, 127
  %v111 = vpop.permute.xlu0 %110
  %112 = vrot.lane.b32.xlu0 %v59, 127
  %v113 = vpop.permute.xlu0 %112
  %114 = vrot.lane.b32.xlu0 %v60, 127
  %v115 = vpop.permute.xlu0 %114
  %116 = vrot.lane.b32.xlu0 %v61, 127
  %v117 = vpop.permute.xlu0 %116
  %118 = vrot.lane.b32.xlu0 %v62, 127
  %v119 = vpop.permute.xlu0 %118
  %120 = vrot.lane.b32.xlu0 %v63, 127
  %v121 = vpop.permute.xlu0 %120
  %122 = vrot.lane.b32.xlu0 %v64, 127
  %v123 = vpop.permute.xlu0 %122
  %124 = vrot.lane.b32.xlu0 %v65, 127
  %v125 = vpop.permute.xlu0 %124
  %126 = vrot.lane.b32.xlu0 %v66, 127
  %v127 = vpop.permute.xlu0 %126
  %vm128 = vcmask 1039360
  %v129 = vsel %vm128, %v89, %v91
  %v130 = vsel %vm128, %v91, %v93
  %v131 = vsel %vm128, %v93, %v95
  %v132 = vsel %vm128, %v95, %v97
  %v133 = vsel %vm128, %v97, %v99
  %v134 = vsel %vm128, %v99, %v101
  %v135 = vsel %vm128, %v101, %v103
  %v136 = vsel %vm128, %v103, %v105
  %v137 = vsel %vm128, %v105, %v107
  %v138 = vsel %vm128, %v107, %v109
  %v139 = vsel %vm128, %v109, %v111
  %v140 = vsel %vm128, %v111, %v113
  %v141 = vsel %vm128, %v113, %v115
  %v142 = vsel %vm128, %v115, %v117
  %v143 = vsel %vm128, %v117, %v119
  %v144 = vsel %vm128, %v119, %v121
  %v145 = vsel %vm128, %v121, %v123
  %v146 = vsel %vm128, %v123, %v125
  %v147 = vsel %vm128, %v125, %v127
  %148 = vrot.lane.b32.xlu0 %v47, 126
  %v149 = vpop.permute.xlu0 %148
  %150 = vrot.lane.b32.xlu0 %v48, 126
  %v151 = vpop.permute.xlu0 %150
  %152 = vrot.lane.b32.xlu0 %v49, 126
  %v153 = vpop.permute.xlu0 %152
  %154 = vrot.lane.b32.xlu0 %v50, 126
  %v155 = vpop.permute.xlu0 %154
  %156 = vrot.lane.b32.xlu0 %v51, 126
  %v157 = vpop.permute.xlu0 %156
  %158 = vrot.lane.b32.xlu0 %v52, 126
  %v159 = vpop.permute.xlu0 %158
  %160 = vrot.lane.b32.xlu0 %v53, 126
  %v161 = vpop.permute.xlu0 %160
  %162 = vrot.lane.b32.xlu0 %v54, 126
  %v163 = vpop.permute.xlu0 %162
  %164 = vrot.lane.b32.xlu0 %v55, 126
  %v165 = vpop.permute.xlu0 %164
  %166 = vrot.lane.b32.xlu0 %v56, 126
  %v167 = vpop.permute.xlu0 %166
  %168 = vrot.lane.b32.xlu0 %v57, 126
  %v169 = vpop.permute.xlu0 %168
  %170 = vrot.lane.b32.xlu0 %v58, 126
  %v171 = vpop.permute.xlu0 %170
  %172 = vrot.lane.b32.xlu0 %v59, 126
  %v173 = vpop.permute.xlu0 %172
  %174 = vrot.lane.b32.xlu0 %v60, 126
  %v175 = vpop.permute.xlu0 %174
  %176 = vrot.lane.b32.xlu0 %v61, 126
  %v177 = vpop.permute.xlu0 %176
  %178 = vrot.lane.b32.xlu0 %v62, 126
  %v179 = vpop.permute.xlu0 %178
  %180 = vrot.lane.b32.xlu0 %v63, 126
  %v181 = vpop.permute.xlu0 %180
  %182 = vrot.lane.b32.xlu0 %v64, 126
  %v183 = vpop.permute.xlu0 %182
  %184 = vrot.lane.b32.xlu0 %v65, 126
  %v185 = vpop.permute.xlu0 %184
  %186 = vrot.lane.b32.xlu0 %v66, 126
  %v187 = vpop.permute.xlu0 %186
  %vm188 = vcmask 1031168
  %v189 = vsel %vm188, %v149, %v151
  %v190 = vsel %vm188, %v151, %v153
  %v191 = vsel %vm188, %v153, %v155
  %v192 = vsel %vm188, %v155, %v157
  %v193 = vsel %vm188, %v157, %v159
  %v194 = vsel %vm188, %v159, %v161
  %v195 = vsel %vm188, %v161, %v163
  %v196 = vsel %vm188, %v163, %v165
  %v197 = vsel %vm188, %v165, %v167
  %v198 = vsel %vm188, %v167, %v169
  %v199 = vsel %vm188, %v169, %v171
  %v200 = vsel %vm188, %v171, %v173
  %v201 = vsel %vm188, %v173, %v175
  %v202 = vsel %vm188, %v175, %v177
  %v203 = vsel %vm188, %v177, %v179
  %v204 = vsel %vm188, %v179, %v181
  %v205 = vsel %vm188, %v181, %v183
  %v206 = vsel %vm188, %v183, %v185
  %v207 = vsel %vm188, %v185, %v187
  %208 = vrot.lane.b32.xlu0 %v47, 94
  %v209 = vpop.permute.xlu0 %208
  %210 = vrot.lane.b32.xlu0 %v48, 94
  %v211 = vpop.permute.xlu0 %210
  %212 = vrot.lane.b32.xlu0 %v49, 94
  %v213 = vpop.permute.xlu0 %212
  %214 = vrot.lane.b32.xlu0 %v50, 94
  %v215 = vpop.permute.xlu0 %214
  %216 = vrot.lane.b32.xlu0 %v51, 94
  %v217 = vpop.permute.xlu0 %216
  %218 = vrot.lane.b32.xlu0 %v52, 94
  %v219 = vpop.permute.xlu0 %218
  %220 = vrot.lane.b32.xlu0 %v53, 94
  %v221 = vpop.permute.xlu0 %220
  %222 = vrot.lane.b32.xlu0 %v54, 94
  %v223 = vpop.permute.xlu0 %222
  %224 = vrot.lane.b32.xlu0 %v55, 94
  %v225 = vpop.permute.xlu0 %224
  %226 = vrot.lane.b32.xlu0 %v56, 94
  %v227 = vpop.permute.xlu0 %226
  %228 = vrot.lane.b32.xlu0 %v57, 94
  %v229 = vpop.permute.xlu0 %228
  %230 = vrot.lane.b32.xlu0 %v58, 94
  %v231 = vpop.permute.xlu0 %230
  %232 = vrot.lane.b32.xlu0 %v59, 94
  %v233 = vpop.permute.xlu0 %232
  %234 = vrot.lane.b32.xlu0 %v60, 94
  %v235 = vpop.permute.xlu0 %234
  %236 = vrot.lane.b32.xlu0 %v61, 94
  %v237 = vpop.permute.xlu0 %236
  %238 = vrot.lane.b32.xlu0 %v62, 94
  %v239 = vpop.permute.xlu0 %238
  %240 = vrot.lane.b32.xlu0 %v63, 94
  %v241 = vpop.permute.xlu0 %240
  %242 = vrot.lane.b32.xlu0 %v64, 94
  %v243 = vpop.permute.xlu0 %242
  %244 = vrot.lane.b32.xlu0 %v65, 94
  %v245 = vpop.permute.xlu0 %244
  %246 = vrot.lane.b32.xlu0 %v66, 94
  %v247 = vpop.permute.xlu0 %246
  %vm248 = vcmask 769024
  %v249 = vsel %vm248, %v209, %v211
  %v250 = vsel %vm248, %v211, %v213
  %v251 = vsel %vm248, %v213, %v215
  %v252 = vsel %vm248, %v215, %v217
  %v253 = vsel %vm248, %v217, %v219
  %v254 = vsel %vm248, %v219, %v221
  %v255 = vsel %vm248, %v221, %v223
  %v256 = vsel %vm248, %v223, %v225
  %v257 = vsel %vm248, %v225, %v227
  %v258 = vsel %vm248, %v227, %v229
  %v259 = vsel %vm248, %v229, %v231
  %v260 = vsel %vm248, %v231, %v233
  %v261 = vsel %vm248, %v233, %v235
  %v262 = vsel %vm248, %v235, %v237
  %v263 = vsel %vm248, %v237, %v239
  %v264 = vsel %vm248, %v239, %v241
  %v265 = vsel %vm248, %v241, %v243
  %v266 = vsel %vm248, %v243, %v245
  %v267 = vsel %vm248, %v245, %v247
  %268 = vrot.lane.b32.xlu0 %v48, 93
  %v269 = vpop.permute.xlu0 %268
  %270 = vrot.lane.b32.xlu0 %v49, 93
  %v271 = vpop.permute.xlu0 %270
  %272 = vrot.lane.b32.xlu0 %v50, 93
  %v273 = vpop.permute.xlu0 %272
  %274 = vrot.lane.b32.xlu0 %v51, 93
  %v275 = vpop.permute.xlu0 %274
  %276 = vrot.lane.b32.xlu0 %v52, 93
  %v277 = vpop.permute.xlu0 %276
  %278 = vrot.lane.b32.xlu0 %v53, 93
  %v279 = vpop.permute.xlu0 %278
  %280 = vrot.lane.b32.xlu0 %v54, 93
  %v281 = vpop.permute.xlu0 %280
  %282 = vrot.lane.b32.xlu0 %v55, 93
  %v283 = vpop.permute.xlu0 %282
  %284 = vrot.lane.b32.xlu0 %v56, 93
  %v285 = vpop.permute.xlu0 %284
  %286 = vrot.lane.b32.xlu0 %v57, 93
  %v287 = vpop.permute.xlu0 %286
  %288 = vrot.lane.b32.xlu0 %v58, 93
  %v289 = vpop.permute.xlu0 %288
  %290 = vrot.lane.b32.xlu0 %v59, 93
  %v291 = vpop.permute.xlu0 %290
  %292 = vrot.lane.b32.xlu0 %v60, 93
  %v293 = vpop.permute.xlu0 %292
  %294 = vrot.lane.b32.xlu0 %v61, 93
  %v295 = vpop.permute.xlu0 %294
  %296 = vrot.lane.b32.xlu0 %v62, 93
  %v297 = vpop.permute.xlu0 %296
  %298 = vrot.lane.b32.xlu0 %v63, 93
  %v299 = vpop.permute.xlu0 %298
  %300 = vrot.lane.b32.xlu0 %v64, 93
  %v301 = vpop.permute.xlu0 %300
  %302 = vrot.lane.b32.xlu0 %v65, 93
  %v303 = vpop.permute.xlu0 %302
  %304 = vrot.lane.b32.xlu0 %v66, 93
  %v305 = vpop.permute.xlu0 %304
  %vm306 = vcmask 760832
  %v307 = vsel %vm306, %v269, %v271
  %v308 = vsel %vm306, %v271, %v273
  %v309 = vsel %vm306, %v273, %v275
  %v310 = vsel %vm306, %v275, %v277
  %v311 = vsel %vm306, %v277, %v279
  %v312 = vsel %vm306, %v279, %v281
  %v313 = vsel %vm306, %v281, %v283
  %v314 = vsel %vm306, %v283, %v285
  %v315 = vsel %vm306, %v285, %v287
  %v316 = vsel %vm306, %v287, %v289
  %v317 = vsel %vm306, %v289, %v291
  %v318 = vsel %vm306, %v291, %v293
  %v319 = vsel %vm306, %v293, %v295
  %v320 = vsel %vm306, %v295, %v297
  %v321 = vsel %vm306, %v297, %v299
  %v322 = vsel %vm306, %v299, %v301
  %v323 = vsel %vm306, %v301, %v303
  %v324 = vsel %vm306, %v303, %v305
  %326 = vrot.lane.b32.xlu0 %v48, 92
  %v327 = vpop.permute.xlu0 %326
  %328 = vrot.lane.b32.xlu0 %v49, 92
  %v329 = vpop.permute.xlu0 %328
  %330 = vrot.lane.b32.xlu0 %v50, 92
  %v331 = vpop.permute.xlu0 %330
  %332 = vrot.lane.b32.xlu0 %v51, 92
  %v333 = vpop.permute.xlu0 %332
  %334 = vrot.lane.b32.xlu0 %v52, 92
  %v335 = vpop.permute.xlu0 %334
  %336 = vrot.lane.b32.xlu0 %v53, 92
  %v337 = vpop.permute.xlu0 %336
  %338 = vrot.lane.b32.xlu0 %v54, 92
  %v339 = vpop.permute.xlu0 %338
  %340 = vrot.lane.b32.xlu0 %v55, 92
  %v341 = vpop.permute.xlu0 %340
  %342 = vrot.lane.b32.xlu0 %v56, 92
  %v343 = vpop.permute.xlu0 %342
  %344 = vrot.lane.b32.xlu0 %v57, 92
  %v345 = vpop.permute.xlu0 %344
  %346 = vrot.lane.b32.xlu0 %v58, 92
  %v347 = vpop.permute.xlu0 %346
  %348 = vrot.lane.b32.xlu0 %v59, 92
  %v349 = vpop.permute.xlu0 %348
  %350 = vrot.lane.b32.xlu0 %v60, 92
  %v351 = vpop.permute.xlu0 %350
  %352 = vrot.lane.b32.xlu0 %v61, 92
  %v353 = vpop.permute.xlu0 %352
  %354 = vrot.lane.b32.xlu0 %v62, 92
  %v355 = vpop.permute.xlu0 %354
  %356 = vrot.lane.b32.xlu0 %v63, 92
  %v357 = vpop.permute.xlu0 %356
  %358 = vrot.lane.b32.xlu0 %v64, 92
  %v359 = vpop.permute.xlu0 %358
  %360 = vrot.lane.b32.xlu0 %v65, 92
  %v361 = vpop.permute.xlu0 %360
  %362 = vrot.lane.b32.xlu0 %v66, 92
  %v363 = vpop.permute.xlu0 %362
  %364 = vrot.lane.b32.xlu0 %v67, 92
  %v365 = vpop.permute.xlu0 %364
  %vm366 = vcmask 752640
  %v367 = vsel %vm366, %v327, %v329
  %v368 = vsel %vm366, %v329, %v331
  %v369 = vsel %vm366, %v331, %v333
  %v370 = vsel %vm366, %v333, %v335
  %v371 = vsel %vm366, %v335, %v337
  %v372 = vsel %vm366, %v337, %v339
  %v373 = vsel %vm366, %v339, %v341
  %v374 = vsel %vm366, %v341, %v343
  %v375 = vsel %vm366, %v343, %v345
  %v376 = vsel %vm366, %v345, %v347
  %v377 = vsel %vm366, %v347, %v349
  %v378 = vsel %vm366, %v349, %v351
  %v379 = vsel %vm366, %v351, %v353
  %v380 = vsel %vm366, %v353, %v355
  %v381 = vsel %vm366, %v355, %v357
  %v382 = vsel %vm366, %v357, %v359
  %v383 = vsel %vm366, %v359, %v361
  %v384 = vsel %vm366, %v361, %v363
  %v385 = vsel %vm366, %v363, %v365
  %386 = vrot.lane.b32.xlu0 %v48, 60
  %v387 = vpop.permute.xlu0 %386
  %388 = vrot.lane.b32.xlu0 %v49, 60
  %v389 = vpop.permute.xlu0 %388
  %390 = vrot.lane.b32.xlu0 %v50, 60
  %v391 = vpop.permute.xlu0 %390
  %392 = vrot.lane.b32.xlu0 %v51, 60
  %v393 = vpop.permute.xlu0 %392
  %394 = vrot.lane.b32.xlu0 %v52, 60
  %v395 = vpop.permute.xlu0 %394
  %396 = vrot.lane.b32.xlu0 %v53, 60
  %v397 = vpop.permute.xlu0 %396
  %398 = vrot.lane.b32.xlu0 %v54, 60
  %v399 = vpop.permute.xlu0 %398
  %400 = vrot.lane.b32.xlu0 %v55, 60
  %v401 = vpop.permute.xlu0 %400
  %402 = vrot.lane.b32.xlu0 %v56, 60
  %v403 = vpop.permute.xlu0 %402
  %404 = vrot.lane.b32.xlu0 %v57, 60
  %v405 = vpop.permute.xlu0 %404
  %406 = vrot.lane.b32.xlu0 %v58, 60
  %v407 = vpop.permute.xlu0 %406
  %408 = vrot.lane.b32.xlu0 %v59, 60
  %v409 = vpop.permute.xlu0 %408
  %410 = vrot.lane.b32.xlu0 %v60, 60
  %v411 = vpop.permute.xlu0 %410
  %412 = vrot.lane.b32.xlu0 %v61, 60
  %v413 = vpop.permute.xlu0 %412
  %414 = vrot.lane.b32.xlu0 %v62, 60
  %v415 = vpop.permute.xlu0 %414
  %416 = vrot.lane.b32.xlu0 %v63, 60
  %v417 = vpop.permute.xlu0 %416
  %418 = vrot.lane.b32.xlu0 %v64, 60
  %v419 = vpop.permute.xlu0 %418
  %420 = vrot.lane.b32.xlu0 %v65, 60
  %v421 = vpop.permute.xlu0 %420
  %422 = vrot.lane.b32.xlu0 %v66, 60
  %v423 = vpop.permute.xlu0 %422
  %424 = vrot.lane.b32.xlu0 %v67, 60
  %v425 = vpop.permute.xlu0 %424
  %vm426 = vcmask 490496
  %v427 = vsel %vm426, %v387, %v389
  %v428 = vsel %vm426, %v389, %v391
  %v429 = vsel %vm426, %v391, %v393
  %v430 = vsel %vm426, %v393, %v395
  %v431 = vsel %vm426, %v395, %v397
  %v432 = vsel %vm426, %v397, %v399
  %v433 = vsel %vm426, %v399, %v401
  %v434 = vsel %vm426, %v401, %v403
  %v435 = vsel %vm426, %v403, %v405
  %v436 = vsel %vm426, %v405, %v407
  %v437 = vsel %vm426, %v407, %v409
  %v438 = vsel %vm426, %v409, %v411
  %v439 = vsel %vm426, %v411, %v413
  %v440 = vsel %vm426, %v413, %v415
  %v441 = vsel %vm426, %v415, %v417
  %v442 = vsel %vm426, %v417, %v419
  %v443 = vsel %vm426, %v419, %v421
  %v444 = vsel %vm426, %v421, %v423
  %v445 = vsel %vm426, %v423, %v425
  %446 = vrot.lane.b32.xlu0 %v48, 59
  %v447 = vpop.permute.xlu0 %446
  %448 = vrot.lane.b32.xlu0 %v49, 59
  %v449 = vpop.permute.xlu0 %448
  %450 = vrot.lane.b32.xlu0 %v50, 59
  %v451 = vpop.permute.xlu0 %450
  %452 = vrot.lane.b32.xlu0 %v51, 59
  %v453 = vpop.permute.xlu0 %452
  %454 = vrot.lane.b32.xlu0 %v52, 59
  %v455 = vpop.permute.xlu0 %454
  %456 = vrot.lane.b32.xlu0 %v53, 59
  %v457 = vpop.permute.xlu0 %456
  %458 = vrot.lane.b32.xlu0 %v54, 59
  %v459 = vpop.permute.xlu0 %458
  %460 = vrot.lane.b32.xlu0 %v55, 59
  %v461 = vpop.permute.xlu0 %460
  %462 = vrot.lane.b32.xlu0 %v56, 59
  %v463 = vpop.permute.xlu0 %462
  %464 = vrot.lane.b32.xlu0 %v57, 59
  %v465 = vpop.permute.xlu0 %464
  %466 = vrot.lane.b32.xlu0 %v58, 59
  %v467 = vpop.permute.xlu0 %466
  %468 = vrot.lane.b32.xlu0 %v59, 59
  %v469 = vpop.permute.xlu0 %468
  %470 = vrot.lane.b32.xlu0 %v60, 59
  %v471 = vpop.permute.xlu0 %470
  %472 = vrot.lane.b32.xlu0 %v61, 59
  %v473 = vpop.permute.xlu0 %472
  %474 = vrot.lane.b32.xlu0 %v62, 59
  %v475 = vpop.permute.xlu0 %474
  %476 = vrot.lane.b32.xlu0 %v63, 59
  %v477 = vpop.permute.xlu0 %476
  %478 = vrot.lane.b32.xlu0 %v64, 59
  %v479 = vpop.permute.xlu0 %478
  %480 = vrot.lane.b32.xlu0 %v65, 59
  %v481 = vpop.permute.xlu0 %480
  %482 = vrot.lane.b32.xlu0 %v66, 59
  %v483 = vpop.permute.xlu0 %482
  %484 = vrot.lane.b32.xlu0 %v67, 59
  %v485 = vpop.permute.xlu0 %484
  %vm486 = vcmask 482304
  %v487 = vsel %vm486, %v447, %v449
  %v488 = vsel %vm486, %v449, %v451
  %v489 = vsel %vm486, %v451, %v453
  %v490 = vsel %vm486, %v453, %v455
  %v491 = vsel %vm486, %v455, %v457
  %v492 = vsel %vm486, %v457, %v459
  %v493 = vsel %vm486, %v459, %v461
  %v494 = vsel %vm486, %v461, %v463
  %v495 = vsel %vm486, %v463, %v465
  %v496 = vsel %vm486, %v465, %v467
  %v497 = vsel %vm486, %v467, %v469
  %v498 = vsel %vm486, %v469, %v471
  %v499 = vsel %vm486, %v471, %v473
  %v500 = vsel %vm486, %v473, %v475
  %v501 = vsel %vm486, %v475, %v477
  %v502 = vsel %vm486, %v477, %v479
  %v503 = vsel %vm486, %v479, %v481
  %v504 = vsel %vm486, %v481, %v483
  %v505 = vsel %vm486, %v483, %v485
  %506 = vrot.lane.b32.xlu0 %v48, 58
  %v507 = vpop.permute.xlu0 %506
  %508 = vrot.lane.b32.xlu0 %v49, 58
  %v509 = vpop.permute.xlu0 %508
  %510 = vrot.lane.b32.xlu0 %v50, 58
  %v511 = vpop.permute.xlu0 %510
  %512 = vrot.lane.b32.xlu0 %v51, 58
  %v513 = vpop.permute.xlu0 %512
  %514 = vrot.lane.b32.xlu0 %v52, 58
  %v515 = vpop.permute.xlu0 %514
  %516 = vrot.lane.b32.xlu0 %v53, 58
  %v517 = vpop.permute.xlu0 %516
  %518 = vrot.lane.b32.xlu0 %v54, 58
  %v519 = vpop.permute.xlu0 %518
  %520 = vrot.lane.b32.xlu0 %v55, 58
  %v521 = vpop.permute.xlu0 %520
  %522 = vrot.lane.b32.xlu0 %v56, 58
  %v523 = vpop.permute.xlu0 %522
  %524 = vrot.lane.b32.xlu0 %v57, 58
  %v525 = vpop.permute.xlu0 %524
  %526 = vrot.lane.b32.xlu0 %v58, 58
  %v527 = vpop.permute.xlu0 %526
  %528 = vrot.lane.b32.xlu0 %v59, 58
  %v529 = vpop.permute.xlu0 %528
  %530 = vrot.lane.b32.xlu0 %v60, 58
  %v531 = vpop.permute.xlu0 %530
  %532 = vrot.lane.b32.xlu0 %v61, 58
  %v533 = vpop.permute.xlu0 %532
  %534 = vrot.lane.b32.xlu0 %v62, 58
  %v535 = vpop.permute.xlu0 %534
  %536 = vrot.lane.b32.xlu0 %v63, 58
  %v537 = vpop.permute.xlu0 %536
  %538 = vrot.lane.b32.xlu0 %v64, 58
  %v539 = vpop.permute.xlu0 %538
  %540 = vrot.lane.b32.xlu0 %v65, 58
  %v541 = vpop.permute.xlu0 %540
  %542 = vrot.lane.b32.xlu0 %v66, 58
  %v543 = vpop.permute.xlu0 %542
  %544 = vrot.lane.b32.xlu0 %v67, 58
  %v545 = vpop.permute.xlu0 %544
  %vm546 = vcmask 474112
  %v547 = vsel %vm546, %v507, %v509
  %v548 = vsel %vm546, %v509, %v511
  %v549 = vsel %vm546, %v511, %v513
  %v550 = vsel %vm546, %v513, %v515
  %v551 = vsel %vm546, %v515, %v517
  %v552 = vsel %vm546, %v517, %v519
  %v553 = vsel %vm546, %v519, %v521
  %v554 = vsel %vm546, %v521, %v523
  %v555 = vsel %vm546, %v523, %v525
  %v556 = vsel %vm546, %v525, %v527
  %v557 = vsel %vm546, %v527, %v529
  %v558 = vsel %vm546, %v529, %v531
  %v559 = vsel %vm546, %v531, %v533
  %v560 = vsel %vm546, %v533, %v535
  %v561 = vsel %vm546, %v535, %v537
  %v562 = vsel %vm546, %v537, %v539
  %v563 = vsel %vm546, %v539, %v541
  %v564 = vsel %vm546, %v541, %v543
  %v565 = vsel %vm546, %v543, %v545
  %v566 = vld [vmem:[%s2] sm:$0xff]
  %v567 = vld [vmem:[%s3] sm:$0xff]
  %569 = vset.pattern.permute.xlu0 0
  %570 = vperm.xlu0 %569, %v567
  %v571 = vpop.permute.xlu0 %570
  %573 = vrot.lane.b32.xlu0 %v47, 35
  %v574 = vpop.permute.xlu0 %573
  %575 = vrot.lane.b32.xlu0 %v48, 35
  %v576 = vpop.permute.xlu0 %575
  %577 = vrot.lane.b32.xlu0 %v49, 35
  %v578 = vpop.permute.xlu0 %577
  %579 = vrot.lane.b32.xlu0 %v50, 35
  %v580 = vpop.permute.xlu0 %579
  %581 = vrot.lane.b32.xlu0 %v51, 35
  %v582 = vpop.permute.xlu0 %581
  %583 = vrot.lane.b32.xlu0 %v52, 35
  %v584 = vpop.permute.xlu0 %583
  %585 = vrot.lane.b32.xlu0 %v53, 35
  %v586 = vpop.permute.xlu0 %585
  %587 = vrot.lane.b32.xlu0 %v54, 35
  %v588 = vpop.permute.xlu0 %587
  %589 = vrot.lane.b32.xlu0 %v55, 35
  %v590 = vpop.permute.xlu0 %589
  %591 = vrot.lane.b32.xlu0 %v56, 35
  %v592 = vpop.permute.xlu0 %591
  %593 = vrot.lane.b32.xlu0 %v57, 35
  %v594 = vpop.permute.xlu0 %593
  %595 = vrot.lane.b32.xlu0 %v58, 35
  %v596 = vpop.permute.xlu0 %595
  %597 = vrot.lane.b32.xlu0 %v59, 35
  %v598 = vpop.permute.xlu0 %597
  %599 = vrot.lane.b32.xlu0 %v60, 35
  %v600 = vpop.permute.xlu0 %599
  %601 = vrot.lane.b32.xlu0 %v61, 35
  %v602 = vpop.permute.xlu0 %601
  %603 = vrot.lane.b32.xlu0 %v62, 35
  %v604 = vpop.permute.xlu0 %603
  %605 = vrot.lane.b32.xlu0 %v63, 35
  %v606 = vpop.permute.xlu0 %605
  %607 = vrot.lane.b32.xlu0 %v64, 35
  %v608 = vpop.permute.xlu0 %607
  %609 = vrot.lane.b32.xlu0 %v65, 35
  %v610 = vpop.permute.xlu0 %609
  %611 = vrot.lane.b32.xlu0 %v66, 35
  %v612 = vpop.permute.xlu0 %611
  %613 = vrot.lane.b32.xlu0 %v129, 35
  %v614 = vpop.permute.xlu0 %613
  %615 = vrot.lane.b32.xlu0 %v130, 35
  %v616 = vpop.permute.xlu0 %615
  %617 = vrot.lane.b32.xlu0 %v131, 35
  %v618 = vpop.permute.xlu0 %617
  %619 = vrot.lane.b32.xlu0 %v132, 35
  %v620 = vpop.permute.xlu0 %619
  %621 = vrot.lane.b32.xlu0 %v133, 35
  %v622 = vpop.permute.xlu0 %621
  %623 = vrot.lane.b32.xlu0 %v134, 35
  %v624 = vpop.permute.xlu0 %623
  %625 = vrot.lane.b32.xlu0 %v135, 35
  %v626 = vpop.permute.xlu0 %625
  %627 = vrot.lane.b32.xlu0 %v136, 35
  %v628 = vpop.permute.xlu0 %627
  %629 = vrot.lane.b32.xlu0 %v137, 35
  %v630 = vpop.permute.xlu0 %629
  %631 = vrot.lane.b32.xlu0 %v138, 35
  %v632 = vpop.permute.xlu0 %631
  %633 = vrot.lane.b32.xlu0 %v139, 35
  %v634 = vpop.permute.xlu0 %633
  %635 = vrot.lane.b32.xlu0 %v140, 35
  %v636 = vpop.permute.xlu0 %635
  %637 = vrot.lane.b32.xlu0 %v141, 35
  %v638 = vpop.permute.xlu0 %637
  %639 = vrot.lane.b32.xlu0 %v142, 35
  %v640 = vpop.permute.xlu0 %639
  %641 = vrot.lane.b32.xlu0 %v143, 35
  %v642 = vpop.permute.xlu0 %641
  %643 = vrot.lane.b32.xlu0 %v144, 35
  %v644 = vpop.permute.xlu0 %643
  %645 = vrot.lane.b32.xlu0 %v145, 35
  %v646 = vpop.permute.xlu0 %645
  %647 = vrot.lane.b32.xlu0 %v146, 35
  %v648 = vpop.permute.xlu0 %647
  %649 = vrot.lane.b32.xlu0 %v147, 35
  %v650 = vpop.permute.xlu0 %649
  %651 = vrot.lane.b32.xlu0 %v127, 35
  %v652 = vpop.permute.xlu0 %651
  %653 = vrot.lane.b32.xlu0 %v189, 35
  %v654 = vpop.permute.xlu0 %653
  %655 = vrot.lane.b32.xlu0 %v190, 35
  %v656 = vpop.permute.xlu0 %655
  %657 = vrot.lane.b32.xlu0 %v191, 35
  %v658 = vpop.permute.xlu0 %657
  %659 = vrot.lane.b32.xlu0 %v192, 35
  %v660 = vpop.permute.xlu0 %659
  %661 = vrot.lane.b32.xlu0 %v193, 35
  %v662 = vpop.permute.xlu0 %661
  %663 = vrot.lane.b32.xlu0 %v194, 35
  %v664 = vpop.permute.xlu0 %663
  %665 = vrot.lane.b32.xlu0 %v195, 35
  %v666 = vpop.permute.xlu0 %665
  %667 = vrot.lane.b32.xlu0 %v196, 35
  %v668 = vpop.permute.xlu0 %667
  %669 = vrot.lane.b32.xlu0 %v197, 35
  %v670 = vpop.permute.xlu0 %669
  %671 = vrot.lane.b32.xlu0 %v198, 35
  %v672 = vpop.permute.xlu0 %671
  %673 = vrot.lane.b32.xlu0 %v199, 35
  %v674 = vpop.permute.xlu0 %673
  %675 = vrot.lane.b32.xlu0 %v200, 35
  %v676 = vpop.permute.xlu0 %675
  %677 = vrot.lane.b32.xlu0 %v201, 35
  %v678 = vpop.permute.xlu0 %677
  %679 = vrot.lane.b32.xlu0 %v202, 35
  %v680 = vpop.permute.xlu0 %679
  %681 = vrot.lane.b32.xlu0 %v203, 35
  %v682 = vpop.permute.xlu0 %681
  %683 = vrot.lane.b32.xlu0 %v204, 35
  %v684 = vpop.permute.xlu0 %683
  %685 = vrot.lane.b32.xlu0 %v205, 35
  %v686 = vpop.permute.xlu0 %685
  %687 = vrot.lane.b32.xlu0 %v206, 35
  %v688 = vpop.permute.xlu0 %687
  %689 = vrot.lane.b32.xlu0 %v207, 35
  %v690 = vpop.permute.xlu0 %689
  %691 = vrot.lane.b32.xlu0 %v187, 35
  %v692 = vpop.permute.xlu0 %691
  %693 = vrot.lane.b32.xlu0 %v249, 35
  %v694 = vpop.permute.xlu0 %693
  %695 = vrot.lane.b32.xlu0 %v250, 35
  %v696 = vpop.permute.xlu0 %695
  %697 = vrot.lane.b32.xlu0 %v251, 35
  %v698 = vpop.permute.xlu0 %697
  %699 = vrot.lane.b32.xlu0 %v252, 35
  %v700 = vpop.permute.xlu0 %699
  %701 = vrot.lane.b32.xlu0 %v253, 35
  %v702 = vpop.permute.xlu0 %701
  %703 = vrot.lane.b32.xlu0 %v254, 35
  %v704 = vpop.permute.xlu0 %703
  %705 = vrot.lane.b32.xlu0 %v255, 35
  %v706 = vpop.permute.xlu0 %705
  %707 = vrot.lane.b32.xlu0 %v256, 35
  %v708 = vpop.permute.xlu0 %707
  %709 = vrot.lane.b32.xlu0 %v257, 35
  %v710 = vpop.permute.xlu0 %709
  %711 = vrot.lane.b32.xlu0 %v258, 35
  %v712 = vpop.permute.xlu0 %711
  %713 = vrot.lane.b32.xlu0 %v259, 35
  %v714 = vpop.permute.xlu0 %713
  %715 = vrot.lane.b32.xlu0 %v260, 35
  %v716 = vpop.permute.xlu0 %715
  %717 = vrot.lane.b32.xlu0 %v261, 35
  %v718 = vpop.permute.xlu0 %717
  %719 = vrot.lane.b32.xlu0 %v262, 35
  %v720 = vpop.permute.xlu0 %719
  %721 = vrot.lane.b32.xlu0 %v263, 35
  %v722 = vpop.permute.xlu0 %721
  %723 = vrot.lane.b32.xlu0 %v264, 35
  %v724 = vpop.permute.xlu0 %723
  %725 = vrot.lane.b32.xlu0 %v265, 35
  %v726 = vpop.permute.xlu0 %725
  %727 = vrot.lane.b32.xlu0 %v266, 35
  %v728 = vpop.permute.xlu0 %727
  %729 = vrot.lane.b32.xlu0 %v267, 35
  %v730 = vpop.permute.xlu0 %729
  %731 = vrot.lane.b32.xlu0 %v247, 35
  %v732 = vpop.permute.xlu0 %731
  %733 = vrot.lane.b32.xlu0 %v269, 35
  %v734 = vpop.permute.xlu0 %733
  %735 = vrot.lane.b32.xlu0 %v307, 35
  %v736 = vpop.permute.xlu0 %735
  %737 = vrot.lane.b32.xlu0 %v308, 35
  %v738 = vpop.permute.xlu0 %737
  %739 = vrot.lane.b32.xlu0 %v309, 35
  %v740 = vpop.permute.xlu0 %739
  %741 = vrot.lane.b32.xlu0 %v310, 35
  %v742 = vpop.permute.xlu0 %741
  %743 = vrot.lane.b32.xlu0 %v311, 35
  %v744 = vpop.permute.xlu0 %743
  %745 = vrot.lane.b32.xlu0 %v312, 35
  %v746 = vpop.permute.xlu0 %745
  %747 = vrot.lane.b32.xlu0 %v313, 35
  %v748 = vpop.permute.xlu0 %747
  %749 = vrot.lane.b32.xlu0 %v314, 35
  %v750 = vpop.permute.xlu0 %749
  %751 = vrot.lane.b32.xlu0 %v315, 35
  %v752 = vpop.permute.xlu0 %751
  %753 = vrot.lane.b32.xlu0 %v316, 35
  %v754 = vpop.permute.xlu0 %753
  %755 = vrot.lane.b32.xlu0 %v317, 35
  %v756 = vpop.permute.xlu0 %755
  %757 = vrot.lane.b32.xlu0 %v318, 35
  %v758 = vpop.permute.xlu0 %757
  %759 = vrot.lane.b32.xlu0 %v319, 35
  %v760 = vpop.permute.xlu0 %759
  %761 = vrot.lane.b32.xlu0 %v320, 35
  %v762 = vpop.permute.xlu0 %761
  %763 = vrot.lane.b32.xlu0 %v321, 35
  %v764 = vpop.permute.xlu0 %763
  %765 = vrot.lane.b32.xlu0 %v322, 35
  %v766 = vpop.permute.xlu0 %765
  %767 = vrot.lane.b32.xlu0 %v323, 35
  %v768 = vpop.permute.xlu0 %767
  %769 = vrot.lane.b32.xlu0 %v324, 35
  %v770 = vpop.permute.xlu0 %769
  %771 = vrot.lane.b32.xlu0 %v305, 35
  %v772 = vpop.permute.xlu0 %771
  %773 = vrot.lane.b32.xlu0 %v327, 35
  %v774 = vpop.permute.xlu0 %773
  %775 = vrot.lane.b32.xlu0 %v367, 35
  %v776 = vpop.permute.xlu0 %775
  %777 = vrot.lane.b32.xlu0 %v368, 35
  %v778 = vpop.permute.xlu0 %777
  %779 = vrot.lane.b32.xlu0 %v369, 35
  %v780 = vpop.permute.xlu0 %779
  %781 = vrot.lane.b32.xlu0 %v370, 35
  %v782 = vpop.permute.xlu0 %781
  %783 = vrot.lane.b32.xlu0 %v371, 35
  %v784 = vpop.permute.xlu0 %783
  %785 = vrot.lane.b32.xlu0 %v372, 35
  %v786 = vpop.permute.xlu0 %785
  %787 = vrot.lane.b32.xlu0 %v373, 35
  %v788 = vpop.permute.xlu0 %787
  %789 = vrot.lane.b32.xlu0 %v374, 35
  %v790 = vpop.permute.xlu0 %789
  %791 = vrot.lane.b32.xlu0 %v375, 35
  %v792 = vpop.permute.xlu0 %791
  %793 = vrot.lane.b32.xlu0 %v376, 35
  %v794 = vpop.permute.xlu0 %793
  %795 = vrot.lane.b32.xlu0 %v377, 35
  %v796 = vpop.permute.xlu0 %795
  %797 = vrot.lane.b32.xlu0 %v378, 35
  %v798 = vpop.permute.xlu0 %797
  %799 = vrot.lane.b32.xlu0 %v379, 35
  %v800 = vpop.permute.xlu0 %799
  %801 = vrot.lane.b32.xlu0 %v380, 35
  %v802 = vpop.permute.xlu0 %801
  %803 = vrot.lane.b32.xlu0 %v381, 35
  %v804 = vpop.permute.xlu0 %803
  %805 = vrot.lane.b32.xlu0 %v382, 35
  %v806 = vpop.permute.xlu0 %805
  %807 = vrot.lane.b32.xlu0 %v383, 35
  %v808 = vpop.permute.xlu0 %807
  %809 = vrot.lane.b32.xlu0 %v384, 35
  %v810 = vpop.permute.xlu0 %809
  %811 = vrot.lane.b32.xlu0 %v385, 35
  %v812 = vpop.permute.xlu0 %811
  %813 = vrot.lane.b32.xlu0 %v387, 35
  %v814 = vpop.permute.xlu0 %813
  %815 = vrot.lane.b32.xlu0 %v427, 35
  %v816 = vpop.permute.xlu0 %815
  %817 = vrot.lane.b32.xlu0 %v428, 35
  %v818 = vpop.permute.xlu0 %817
  %819 = vrot.lane.b32.xlu0 %v429, 35
  %v820 = vpop.permute.xlu0 %819
  %821 = vrot.lane.b32.xlu0 %v430, 35
  %v822 = vpop.permute.xlu0 %821
  %823 = vrot.lane.b32.xlu0 %v431, 35
  %v824 = vpop.permute.xlu0 %823
  %825 = vrot.lane.b32.xlu0 %v432, 35
  %v826 = vpop.permute.xlu0 %825
  %827 = vrot.lane.b32.xlu0 %v433, 35
  %v828 = vpop.permute.xlu0 %827
  %829 = vrot.lane.b32.xlu0 %v434, 35
  %v830 = vpop.permute.xlu0 %829
  %831 = vrot.lane.b32.xlu0 %v435, 35
  %v832 = vpop.permute.xlu0 %831
  %833 = vrot.lane.b32.xlu0 %v436, 35
  %v834 = vpop.permute.xlu0 %833
  %835 = vrot.lane.b32.xlu0 %v437, 35
  %v836 = vpop.permute.xlu0 %835
  %837 = vrot.lane.b32.xlu0 %v438, 35
  %v838 = vpop.permute.xlu0 %837
  %839 = vrot.lane.b32.xlu0 %v439, 35
  %v840 = vpop.permute.xlu0 %839
  %841 = vrot.lane.b32.xlu0 %v440, 35
  %v842 = vpop.permute.xlu0 %841
  %843 = vrot.lane.b32.xlu0 %v441, 35
  %v844 = vpop.permute.xlu0 %843
  %845 = vrot.lane.b32.xlu0 %v442, 35
  %v846 = vpop.permute.xlu0 %845
  %847 = vrot.lane.b32.xlu0 %v443, 35
  %v848 = vpop.permute.xlu0 %847
  %849 = vrot.lane.b32.xlu0 %v444, 35
  %v850 = vpop.permute.xlu0 %849
  %851 = vrot.lane.b32.xlu0 %v445, 35
  %v852 = vpop.permute.xlu0 %851
  %853 = vrot.lane.b32.xlu0 %v447, 35
  %v854 = vpop.permute.xlu0 %853
  %855 = vrot.lane.b32.xlu0 %v487, 35
  %v856 = vpop.permute.xlu0 %855
  %857 = vrot.lane.b32.xlu0 %v488, 35
  %v858 = vpop.permute.xlu0 %857
  %859 = vrot.lane.b32.xlu0 %v489, 35
  %v860 = vpop.permute.xlu0 %859
  %861 = vrot.lane.b32.xlu0 %v490, 35
  %v862 = vpop.permute.xlu0 %861
  %863 = vrot.lane.b32.xlu0 %v491, 35
  %v864 = vpop.permute.xlu0 %863
  %865 = vrot.lane.b32.xlu0 %v492, 35
  %v866 = vpop.permute.xlu0 %865
  %867 = vrot.lane.b32.xlu0 %v493, 35
  %v868 = vpop.permute.xlu0 %867
  %869 = vrot.lane.b32.xlu0 %v494, 35
  %v870 = vpop.permute.xlu0 %869
  %871 = vrot.lane.b32.xlu0 %v495, 35
  %v872 = vpop.permute.xlu0 %871
  %873 = vrot.lane.b32.xlu0 %v496, 35
  %v874 = vpop.permute.xlu0 %873
  %875 = vrot.lane.b32.xlu0 %v497, 35
  %v876 = vpop.permute.xlu0 %875
  %877 = vrot.lane.b32.xlu0 %v498, 35
  %v878 = vpop.permute.xlu0 %877
  %879 = vrot.lane.b32.xlu0 %v499, 35
  %v880 = vpop.permute.xlu0 %879
  %881 = vrot.lane.b32.xlu0 %v500, 35
  %v882 = vpop.permute.xlu0 %881
  %883 = vrot.lane.b32.xlu0 %v501, 35
  %v884 = vpop.permute.xlu0 %883
  %885 = vrot.lane.b32.xlu0 %v502, 35
  %v886 = vpop.permute.xlu0 %885
  %887 = vrot.lane.b32.xlu0 %v503, 35
  %v888 = vpop.permute.xlu0 %887
  %889 = vrot.lane.b32.xlu0 %v504, 35
  %v890 = vpop.permute.xlu0 %889
  %891 = vrot.lane.b32.xlu0 %v505, 35
  %v892 = vpop.permute.xlu0 %891
  %893 = vrot.lane.b32.xlu0 %v507, 35
  %v894 = vpop.permute.xlu0 %893
  %895 = vrot.lane.b32.xlu0 %v547, 35
  %v896 = vpop.permute.xlu0 %895
  %897 = vrot.lane.b32.xlu0 %v548, 35
  %v898 = vpop.permute.xlu0 %897
  %899 = vrot.lane.b32.xlu0 %v549, 35
  %v900 = vpop.permute.xlu0 %899
  %901 = vrot.lane.b32.xlu0 %v550, 35
  %v902 = vpop.permute.xlu0 %901
  %903 = vrot.lane.b32.xlu0 %v551, 35
  %v904 = vpop.permute.xlu0 %903
  %905 = vrot.lane.b32.xlu0 %v552, 35
  %v906 = vpop.permute.xlu0 %905
  %907 = vrot.lane.b32.xlu0 %v553, 35
  %v908 = vpop.permute.xlu0 %907
  %909 = vrot.lane.b32.xlu0 %v554, 35
  %v910 = vpop.permute.xlu0 %909
  %911 = vrot.lane.b32.xlu0 %v555, 35
  %v912 = vpop.permute.xlu0 %911
  %913 = vrot.lane.b32.xlu0 %v556, 35
  %v914 = vpop.permute.xlu0 %913
  %915 = vrot.lane.b32.xlu0 %v557, 35
  %v916 = vpop.permute.xlu0 %915
  %917 = vrot.lane.b32.xlu0 %v558, 35
  %v918 = vpop.permute.xlu0 %917
  %919 = vrot.lane.b32.xlu0 %v559, 35
  %v920 = vpop.permute.xlu0 %919
  %921 = vrot.lane.b32.xlu0 %v560, 35
  %v922 = vpop.permute.xlu0 %921
  %923 = vrot.lane.b32.xlu0 %v561, 35
  %v924 = vpop.permute.xlu0 %923
  %925 = vrot.lane.b32.xlu0 %v562, 35
  %v926 = vpop.permute.xlu0 %925
  %927 = vrot.lane.b32.xlu0 %v563, 35
  %v928 = vpop.permute.xlu0 %927
  %929 = vrot.lane.b32.xlu0 %v564, 35
  %v930 = vpop.permute.xlu0 %929
  %931 = vrot.lane.b32.xlu0 %v565, 35
  %v932 = vpop.permute.xlu0 %931
  %vm933 = vcmask 285696
  %v934 = vsel %vm933, %v574, %v576
  %v935 = vsel %vm933, %v576, %v578
  %v936 = vsel %vm933, %v578, %v580
  %v937 = vsel %vm933, %v580, %v582
  %v938 = vsel %vm933, %v582, %v584
  %v939 = vsel %vm933, %v584, %v586
  %v940 = vsel %vm933, %v586, %v588
  %v941 = vsel %vm933, %v588, %v590
  %v942 = vsel %vm933, %v590, %v592
  %v943 = vsel %vm933, %v592, %v594
  %v944 = vsel %vm933, %v594, %v596
  %v945 = vsel %vm933, %v596, %v598
  %v946 = vsel %vm933, %v598, %v600
  %v947 = vsel %vm933, %v600, %v602
  %v948 = vsel %vm933, %v602, %v604
  %v949 = vsel %vm933, %v604, %v606
  %v950 = vsel %vm933, %v606, %v608
  %v951 = vsel %vm933, %v608, %v610
  %v952 = vsel %vm933, %v610, %v612
  %v953 = vsel %vm933, %v614, %v616
  %v954 = vsel %vm933, %v616, %v618
  %v955 = vsel %vm933, %v618, %v620
  %v956 = vsel %vm933, %v620, %v622
  %v957 = vsel %vm933, %v622, %v624
  %v958 = vsel %vm933, %v624, %v626
  %v959 = vsel %vm933, %v626, %v628
  %v960 = vsel %vm933, %v628, %v630
  %v961 = vsel %vm933, %v630, %v632
  %v962 = vsel %vm933, %v632, %v634
  %v963 = vsel %vm933, %v634, %v636
  %v964 = vsel %vm933, %v636, %v638
  %v965 = vsel %vm933, %v638, %v640
  %v966 = vsel %vm933, %v640, %v642
  %v967 = vsel %vm933, %v642, %v644
  %v968 = vsel %vm933, %v644, %v646
  %v969 = vsel %vm933, %v646, %v648
  %v970 = vsel %vm933, %v648, %v650
  %v971 = vsel %vm933, %v650, %v652
  %v972 = vsel %vm933, %v654, %v656
  %v973 = vsel %vm933, %v656, %v658
  %v974 = vsel %vm933, %v658, %v660
  %v975 = vsel %vm933, %v660, %v662
  %v976 = vsel %vm933, %v662, %v664
  %v977 = vsel %vm933, %v664, %v666
  %v978 = vsel %vm933, %v666, %v668
  %v979 = vsel %vm933, %v668, %v670
  %v980 = vsel %vm933, %v670, %v672
  %v981 = vsel %vm933, %v672, %v674
  %v982 = vsel %vm933, %v674, %v676
  %v983 = vsel %vm933, %v676, %v678
  %v984 = vsel %vm933, %v678, %v680
  %v985 = vsel %vm933, %v680, %v682
  %v986 = vsel %vm933, %v682, %v684
  %v987 = vsel %vm933, %v684, %v686
  %v988 = vsel %vm933, %v686, %v688
  %v989 = vsel %vm933, %v688, %v690
  %v990 = vsel %vm933, %v690, %v692
  %v991 = vsel %vm933, %v694, %v696
  %v992 = vsel %vm933, %v696, %v698
  %v993 = vsel %vm933, %v698, %v700
  %v994 = vsel %vm933, %v700, %v702
  %v995 = vsel %vm933, %v702, %v704
  %v996 = vsel %vm933, %v704, %v706
  %v997 = vsel %vm933, %v706, %v708
  %v998 = vsel %vm933, %v708, %v710
  %v999 = vsel %vm933, %v710, %v712
  %v1000 = vsel %vm933, %v712, %v714
  %v1001 = vsel %vm933, %v714, %v716
  %v1002 = vsel %vm933, %v716, %v718
  %v1003 = vsel %vm933, %v718, %v720
  %v1004 = vsel %vm933, %v720, %v722
  %v1005 = vsel %vm933, %v722, %v724
  %v1006 = vsel %vm933, %v724, %v726
  %v1007 = vsel %vm933, %v726, %v728
  %v1008 = vsel %vm933, %v728, %v730
  %v1009 = vsel %vm933, %v730, %v732
  %v1010 = vsel %vm933, %v734, %v736
  %v1011 = vsel %vm933, %v736, %v738
  %v1012 = vsel %vm933, %v738, %v740
  %v1013 = vsel %vm933, %v740, %v742
  %v1014 = vsel %vm933, %v742, %v744
  %v1015 = vsel %vm933, %v744, %v746
  %v1016 = vsel %vm933, %v746, %v748
  %v1017 = vsel %vm933, %v748, %v750
  %v1018 = vsel %vm933, %v750, %v752
  %v1019 = vsel %vm933, %v752, %v754
  %v1020 = vsel %vm933, %v754, %v756
  %v1021 = vsel %vm933, %v756, %v758
  %v1022 = vsel %vm933, %v758, %v760
  %v1023 = vsel %vm933, %v760, %v762
  %v1024 = vsel %vm933, %v762, %v764
  %v1025 = vsel %vm933, %v764, %v766
  %v1026 = vsel %vm933, %v766, %v768
  %v1027 = vsel %vm933, %v768, %v770
  %v1028 = vsel %vm933, %v770, %v772
  %v1029 = vsel %vm933, %v774, %v776
  %v1030 = vsel %vm933, %v776, %v778
  %v1031 = vsel %vm933, %v778, %v780
  %v1032 = vsel %vm933, %v780, %v782
  %v1033 = vsel %vm933, %v782, %v784
  %v1034 = vsel %vm933, %v784, %v786
  %v1035 = vsel %vm933, %v786, %v788
  %v1036 = vsel %vm933, %v788, %v790
  %v1037 = vsel %vm933, %v790, %v792
  %v1038 = vsel %vm933, %v792, %v794
  %v1039 = vsel %vm933, %v794, %v796
  %v1040 = vsel %vm933, %v796, %v798
  %v1041 = vsel %vm933, %v798, %v800
  %v1042 = vsel %vm933, %v800, %v802
  %v1043 = vsel %vm933, %v802, %v804
  %v1044 = vsel %vm933, %v804, %v806
  %v1045 = vsel %vm933, %v806, %v808
  %v1046 = vsel %vm933, %v808, %v810
  %v1047 = vsel %vm933, %v810, %v812
  %v1048 = vsel %vm933, %v814, %v816
  %v1049 = vsel %vm933, %v816, %v818
  %v1050 = vsel %vm933, %v818, %v820
  %v1051 = vsel %vm933, %v820, %v822
  %v1052 = vsel %vm933, %v822, %v824
  %v1053 = vsel %vm933, %v824, %v826
  %v1054 = vsel %vm933, %v826, %v828
  %v1055 = vsel %vm933, %v828, %v830
  %v1056 = vsel %vm933, %v830, %v832
  %v1057 = vsel %vm933, %v832, %v834
  %v1058 = vsel %vm933, %v834, %v836
  %v1059 = vsel %vm933, %v836, %v838
  %v1060 = vsel %vm933, %v838, %v840
  %v1061 = vsel %vm933, %v840, %v842
  %v1062 = vsel %vm933, %v842, %v844
  %v1063 = vsel %vm933, %v844, %v846
  %v1064 = vsel %vm933, %v846, %v848
  %v1065 = vsel %vm933, %v848, %v850
  %v1066 = vsel %vm933, %v850, %v852
  %v1067 = vsel %vm933, %v854, %v856
  %v1068 = vsel %vm933, %v856, %v858
  %v1069 = vsel %vm933, %v858, %v860
  %v1070 = vsel %vm933, %v860, %v862
  %v1071 = vsel %vm933, %v862, %v864
  %v1072 = vsel %vm933, %v864, %v866
  %v1073 = vsel %vm933, %v866, %v868
  %v1074 = vsel %vm933, %v868, %v870
  %v1075 = vsel %vm933, %v870, %v872
  %v1076 = vsel %vm933, %v872, %v874
  %v1077 = vsel %vm933, %v874, %v876
  %v1078 = vsel %vm933, %v876, %v878
  %v1079 = vsel %vm933, %v878, %v880
  %v1080 = vsel %vm933, %v880, %v882
  %v1081 = vsel %vm933, %v882, %v884
  %v1082 = vsel %vm933, %v884, %v886
  %v1083 = vsel %vm933, %v886, %v888
  %v1084 = vsel %vm933, %v888, %v890
  %v1085 = vsel %vm933, %v890, %v892
  %v1086 = vsel %vm933, %v894, %v896
  %v1087 = vsel %vm933, %v896, %v898
  %v1088 = vsel %vm933, %v898, %v900
  %v1089 = vsel %vm933, %v900, %v902
  %v1090 = vsel %vm933, %v902, %v904
  %v1091 = vsel %vm933, %v904, %v906
  %v1092 = vsel %vm933, %v906, %v908
  %v1093 = vsel %vm933, %v908, %v910
  %v1094 = vsel %vm933, %v910, %v912
  %v1095 = vsel %vm933, %v912, %v914
  %v1096 = vsel %vm933, %v914, %v916
  %v1097 = vsel %vm933, %v916, %v918
  %v1098 = vsel %vm933, %v918, %v920
  %v1099 = vsel %vm933, %v920, %v922
  %v1100 = vsel %vm933, %v922, %v924
  %v1101 = vsel %vm933, %v924, %v926
  %v1102 = vsel %vm933, %v926, %v928
  %v1103 = vsel %vm933, %v928, %v930
  %v1104 = vsel %vm933, %v930, %v932
  %vm1276 = vcmask 588800
  %v1278 = vsel %vm1276, %v566, 0
  %1280 = vmatprep.subr.mxu0 0.0
  %1281 = vmatpush1.msra.mxu0 0.0
  %1282 = vmatprep.subr.mxu0 0.0
  %1283 = vmatpush1.msra.mxu0 0.0
  %1284 = vmatprep.subr.mxu0 0.0
  %1285 = vmatpush1.msra.mxu0 0.0
  %1286 = vmatprep.subr.mxu0 0.0
  %1287 = vmatpush1.msra.mxu0 0.0
  %1288 = vmatprep.subr.mxu0 0.0
  %1289 = vmatpush1.msra.mxu0 0.0
  %1290 = vmatprep.subr.mxu0 0.0
  %1291 = vmatpush1.msra.mxu0 0.0
  %1292 = vmatprep.subr.mxu0 0.0
  %1293 = vmatpush1.msra.mxu0 0.0
  %1294 = vmatprep.subr.mxu0 %v1087
  %1295 = vmatpush1.msra.mxu0 %v1086
  %1296 = vmatprep.subr.mxu0 %v1068
  %1297 = vmatpush1.msra.mxu0 %v1067
  %1298 = vmatprep.subr.mxu0 %v1049
  %1299 = vmatpush1.msra.mxu0 %v1048
  %1300 = vmatprep.subr.mxu0 %v1030
  %1301 = vmatpush1.msra.mxu0 %v1029
  %1302 = vmatprep.subr.mxu0 %v1011
  %1303 = vmatpush1.msra.mxu0 %v1010
  %1304 = vmatprep.subr.mxu0 %v992
  %1305 = vmatpush1.msra.mxu0 %v991
  %1306 = vmatprep.subr.mxu0 %v973
  %1307 = vmatpush1.msra.mxu0 %v972
  %1308 = vmatprep.subr.mxu0 %v954
  %1309 = vmatpush1.msra.mxu0 %v953
  %1310 = vmatprep.subr.mxu0 %v935
  %1311 = vmatpush1.msra.mxu0 %v934
  %1312 = vmatprep.subr.mxu0 0.0
  %1313 = vmatpush2.msra.mxu0 0.0
  %1314 = vmatprep.subr.mxu0 0.0
  %1315 = vmatpush2.msra.mxu0 0.0
  %1316 = vmatprep.subr.mxu0 0.0
  %1317 = vmatpush2.msra.mxu0 0.0
  %1318 = vmatprep.subr.mxu0 0.0
  %1319 = vmatpush2.msra.mxu0 0.0
  %1320 = vmatprep.subr.mxu0 0.0
  %1321 = vmatpush2.msra.mxu0 0.0
  %1322 = vmatprep.subr.mxu0 0.0
  %1323 = vmatpush2.msra.mxu0 0.0
  %1324 = vmatprep.subr.mxu0 0.0
  %1325 = vmatpush2.msra.mxu0 0.0
  %1326 = vmatprep.subr.mxu0 0.0
  %1327 = vmatpush2.msra.mxu0 0.0
  %1328 = vmatprep.subr.mxu0 0.0
  %1329 = vmatpush2.msra.mxu0 0.0
  %1330 = vmatprep.subr.mxu0 0.0
  %1331 = vmatpush2.msra.mxu0 0.0
  %1332 = vmatprep.subr.mxu0 0.0
  %1333 = vmatpush2.msra.mxu0 0.0
  %1334 = vmatprep.subr.mxu0 0.0
  %1335 = vmatpush2.msra.mxu0 0.0
  %1336 = vmatprep.subr.mxu0 0.0
  %1337 = vmatpush2.msra.mxu0 0.0
  %1338 = vmatprep.subr.mxu0 0.0
  %1339 = vmatpush2.msra.mxu0 0.0
  %1340 = vmatprep.subr.mxu0 0.0
  %1341 = vmatpush2.msra.mxu0 0.0
  %1342 = vmatprep.subr.mxu0 0.0
  %1343 = vmatpush2.msra.mxu0 0.0
  %1344 = vmatprep.mubr.f32.mxu0 0.0
  %1345 = vmatmul.mubr.f32.gmra.mxu0 %v1278
  %v1346 = vpop.f32.mrf.mxu0
  %v1347 = vadd.f32 %v571, %v1346
  %v1348 = vpop.f32.mrf.mxu0
  %v1349 = vadd.f32 %v571, %v1348
  %1350 = vdwg.mxu0
  %1351 = vmatprep.subr.mxu0 0.0
  %1352 = vmatpush1.msra.mxu0 0.0
  %1353 = vmatprep.subr.mxu0 0.0
  %1354 = vmatpush1.msra.mxu0 0.0
  %1355 = vmatprep.subr.mxu0 0.0
  %1356 = vmatpush1.msra.mxu0 0.0
  %1357 = vmatprep.subr.mxu0 0.0
  %1358 = vmatpush1.msra.mxu0 0.0
  %1359 = vmatprep.subr.mxu0 0.0
  %1360 = vmatpush1.msra.mxu0 0.0
  %1361 = vmatprep.subr.mxu0 0.0
  %1362 = vmatpush1.msra.mxu0 0.0
  %1363 = vmatprep.subr.mxu0 0.0
  %1364 = vmatpush1.msra.mxu0 0.0
  %1365 = vmatprep.subr.mxu0 %v1089
  %1366 = vmatpush1.msra.mxu0 %v1088
  %1367 = vmatprep.subr.mxu0 %v1070
  %1368 = vmatpush1.msra.mxu0 %v1069
  %1369 = vmatprep.subr.mxu0 %v1051
  %1370 = vmatpush1.msra.mxu0 %v1050
  %1371 = vmatprep.subr.mxu0 %v1032
  %1372 = vmatpush1.msra.mxu0 %v1031
  %1373 = vmatprep.subr.mxu0 %v1013
  %1374 = vmatpush1.msra.mxu0 %v1012
  %1375 = vmatprep.subr.mxu0 %v994
  %1376 = vmatpush1.msra.mxu0 %v993
  %1377 = vmatprep.subr.mxu0 %v975
  %1378 = vmatpush1.msra.mxu0 %v974
  %1379 = vmatprep.subr.mxu0 %v956
  %1380 = vmatpush1.msra.mxu0 %v955
  %1381 = vmatprep.subr.mxu0 %v937
  %1382 = vmatpush1.msra.mxu0 %v936
  %1383 = vmatprep.subr.mxu0 0.0
  %1384 = vmatpush2.msra.mxu0 0.0
  %1385 = vmatprep.subr.mxu0 0.0
  %1386 = vmatpush2.msra.mxu0 0.0
  %1387 = vmatprep.subr.mxu0 0.0
  %1388 = vmatpush2.msra.mxu0 0.0
  %1389 = vmatprep.subr.mxu0 0.0
  %1390 = vmatpush2.msra.mxu0 0.0
  %1391 = vmatprep.subr.mxu0 0.0
  %1392 = vmatpush2.msra.mxu0 0.0
  %1393 = vmatprep.subr.mxu0 0.0
  %1394 = vmatpush2.msra.mxu0 0.0
  %1395 = vmatprep.subr.mxu0 0.0
  %1396 = vmatpush2.msra.mxu0 0.0
  %1397 = vmatprep.subr.mxu0 0.0
  %1398 = vmatpush2.msra.mxu0 0.0
  %1399 = vmatprep.subr.mxu0 0.0
  %1400 = vmatpush2.msra.mxu0 0.0
  %1401 = vmatprep.subr.mxu0 0.0
  %1402 = vmatpush2.msra.mxu0 0.0
  %1403 = vmatprep.subr.mxu0 0.0
  %1404 = vmatpush2.msra.mxu0 0.0
  %1405 = vmatprep.subr.mxu0 0.0
  %1406 = vmatpush2.msra.mxu0 0.0
  %1407 = vmatprep.subr.mxu0 0.0
  %1408 = vmatpush2.msra.mxu0 0.0
  %1409 = vmatprep.subr.mxu0 0.0
  %1410 = vmatpush2.msra.mxu0 0.0
  %1411 = vmatprep.subr.mxu0 0.0
  %1412 = vmatpush2.msra.mxu0 0.0
  %1413 = vmatprep.subr.mxu0 0.0
  %1414 = vmatpush2.msra.mxu0 0.0
  %1415 = vmatprep.mubr.f32.mxu0 0.0
  %1416 = vmatmul.mubr.f32.gmra.mxu0 %v1278
  %v1417 = vpop.f32.mrf.mxu0
  %v1418 = vadd.f32 %v571, %v1417
  %v1419 = vpop.f32.mrf.mxu0
  %v1420 = vadd.f32 %v571, %v1419
  %1421 = vdwg.mxu0
  %1422 = vmatprep.subr.mxu0 0.0
  %1423 = vmatpush1.msra.mxu0 0.0
  %1424 = vmatprep.subr.mxu0 0.0
  %1425 = vmatpush1.msra.mxu0 0.0
  %1426 = vmatprep.subr.mxu0 0.0
  %1427 = vmatpush1.msra.mxu0 0.0
  %1428 = vmatprep.subr.mxu0 0.0
  %1429 = vmatpush1.msra.mxu0 0.0
  %1430 = vmatprep.subr.mxu0 0.0
  %1431 = vmatpush1.msra.mxu0 0.0
  %1432 = vmatprep.subr.mxu0 0.0
  %1433 = vmatpush1.msra.mxu0 0.0
  %1434 = vmatprep.subr.mxu0 0.0
  %1435 = vmatpush1.msra.mxu0 0.0
  %1436 = vmatprep.subr.mxu0 %v1091
  %1437 = vmatpush1.msra.mxu0 %v1090
  %1438 = vmatprep.subr.mxu0 %v1072
  %1439 = vmatpush1.msra.mxu0 %v1071
  %1440 = vmatprep.subr.mxu0 %v1053
  %1441 = vmatpush1.msra.mxu0 %v1052
  %1442 = vmatprep.subr.mxu0 %v1034
  %1443 = vmatpush1.msra.mxu0 %v1033
  %1444 = vmatprep.subr.mxu0 %v1015
  %1445 = vmatpush1.msra.mxu0 %v1014
  %1446 = vmatprep.subr.mxu0 %v996
  %1447 = vmatpush1.msra.mxu0 %v995
  %1448 = vmatprep.subr.mxu0 %v977
  %1449 = vmatpush1.msra.mxu0 %v976
  %1450 = vmatprep.subr.mxu0 %v958
  %1451 = vmatpush1.msra.mxu0 %v957
  %1452 = vmatprep.subr.mxu0 %v939
  %1453 = vmatpush1.msra.mxu0 %v938
  %1454 = vmatprep.subr.mxu0 0.0
  %1455 = vmatpush2.msra.mxu0 0.0
  %1456 = vmatprep.subr.mxu0 0.0
  %1457 = vmatpush2.msra.mxu0 0.0
  %1458 = vmatprep.subr.mxu0 0.0
  %1459 = vmatpush2.msra.mxu0 0.0
  %1460 = vmatprep.subr.mxu0 0.0
  %1461 = vmatpush2.msra.mxu0 0.0
  %1462 = vmatprep.subr.mxu0 0.0
  %1463 = vmatpush2.msra.mxu0 0.0
  %1464 = vmatprep.subr.mxu0 0.0
  %1465 = vmatpush2.msra.mxu0 0.0
  %1466 = vmatprep.subr.mxu0 0.0
  %1467 = vmatpush2.msra.mxu0 0.0
  %1468 = vmatprep.subr.mxu0 0.0
  %1469 = vmatpush2.msra.mxu0 0.0
  %1470 = vmatprep.subr.mxu0 0.0
  %1471 = vmatpush2.msra.mxu0 0.0
  %1472 = vmatprep.subr.mxu0 0.0
  %1473 = vmatpush2.msra.mxu0 0.0
  %1474 = vmatprep.subr.mxu0 0.0
  %1475 = vmatpush2.msra.mxu0 0.0
  %1476 = vmatprep.subr.mxu0 0.0
  %1477 = vmatpush2.msra.mxu0 0.0
  %1478 = vmatprep.subr.mxu0 0.0
  %1479 = vmatpush2.msra.mxu0 0.0
  %1480 = vmatprep.subr.mxu0 0.0
  %1481 = vmatpush2.msra.mxu0 0.0
  %1482 = vmatprep.subr.mxu0 0.0
  %1483 = vmatpush2.msra.mxu0 0.0
  %1484 = vmatprep.subr.mxu0 0.0
  %1485 = vmatpush2.msra.mxu0 0.0
  %1486 = vmatprep.mubr.f32.mxu0 0.0
  %1487 = vmatmul.mubr.f32.gmra.mxu0 %v1278
  %v1488 = vpop.f32.mrf.mxu0
  %v1489 = vadd.f32 %v571, %v1488
  %v1490 = vpop.f32.mrf.mxu0
  %v1491 = vadd.f32 %v571, %v1490
  %1492 = vdwg.mxu0
  %1493 = vmatprep.subr.mxu0 0.0
  %1494 = vmatpush1.msra.mxu0 0.0
  %1495 = vmatprep.subr.mxu0 0.0
  %1496 = vmatpush1.msra.mxu0 0.0
  %1497 = vmatprep.subr.mxu0 0.0
  %1498 = vmatpush1.msra.mxu0 0.0
  %1499 = vmatprep.subr.mxu0 0.0
  %1500 = vmatpush1.msra.mxu0 0.0
  %1501 = vmatprep.subr.mxu0 0.0
  %1502 = vmatpush1.msra.mxu0 0.0
  %1503 = vmatprep.subr.mxu0 0.0
  %1504 = vmatpush1.msra.mxu0 0.0
  %1505 = vmatprep.subr.mxu0 0.0
  %1506 = vmatpush1.msra.mxu0 0.0
  %1507 = vmatprep.subr.mxu0 %v1093
  %1508 = vmatpush1.msra.mxu0 %v1092
  %1509 = vmatprep.subr.mxu0 %v1074
  %1510 = vmatpush1.msra.mxu0 %v1073
  %1511 = vmatprep.subr.mxu0 %v1055
  %1512 = vmatpush1.msra.mxu0 %v1054
  %1513 = vmatprep.subr.mxu0 %v1036
  %1514 = vmatpush1.msra.mxu0 %v1035
  %1515 = vmatprep.subr.mxu0 %v1017
  %1516 = vmatpush1.msra.mxu0 %v1016
  %1517 = vmatprep.subr.mxu0 %v998
  %1518 = vmatpush1.msra.mxu0 %v997
  %1519 = vmatprep.subr.mxu0 %v979
  %1520 = vmatpush1.msra.mxu0 %v978
  %1521 = vmatprep.subr.mxu0 %v960
  %1522 = vmatpush1.msra.mxu0 %v959
  %1523 = vmatprep.subr.mxu0 %v941
  %1524 = vmatpush1.msra.mxu0 %v940
  %1525 = vmatprep.subr.mxu0 0.0
  %1526 = vmatpush2.msra.mxu0 0.0
  %1527 = vmatprep.subr.mxu0 0.0
  %1528 = vmatpush2.msra.mxu0 0.0
  %1529 = vmatprep.subr.mxu0 0.0
  %1530 = vmatpush2.msra.mxu0 0.0
  %1531 = vmatprep.subr.mxu0 0.0
  %1532 = vmatpush2.msra.mxu0 0.0
  %1533 = vmatprep.subr.mxu0 0.0
  %1534 = vmatpush2.msra.mxu0 0.0
  %1535 = vmatprep.subr.mxu0 0.0
  %1536 = vmatpush2.msra.mxu0 0.0
  %1537 = vmatprep.subr.mxu0 0.0
  %1538 = vmatpush2.msra.mxu0 0.0
  %1539 = vmatprep.subr.mxu0 0.0
  %1540 = vmatpush2.msra.mxu0 0.0
  %1541 = vmatprep.subr.mxu0 0.0
  %1542 = vmatpush2.msra.mxu0 0.0
  %1543 = vmatprep.subr.mxu0 0.0
  %1544 = vmatpush2.msra.mxu0 0.0
  %1545 = vmatprep.subr.mxu0 0.0
  %1546 = vmatpush2.msra.mxu0 0.0
  %1547 = vmatprep.subr.mxu0 0.0
  %1548 = vmatpush2.msra.mxu0 0.0
  %1549 = vmatprep.subr.mxu0 0.0
  %1550 = vmatpush2.msra.mxu0 0.0
  %1551 = vmatprep.subr.mxu0 0.0
  %1552 = vmatpush2.msra.mxu0 0.0
  %1553 = vmatprep.subr.mxu0 0.0
  %1554 = vmatpush2.msra.mxu0 0.0
  %1555 = vmatprep.subr.mxu0 0.0
  %1556 = vmatpush2.msra.mxu0 0.0
  %1557 = vmatprep.mubr.f32.mxu0 0.0
  %1558 = vmatmul.mubr.f32.gmra.mxu0 %v1278
  %v1559 = vpop.f32.mrf.mxu0
  %v1560 = vadd.f32 %v571, %v1559
  %v1561 = vpop.f32.mrf.mxu0
  %v1562 = vadd.f32 %v571, %v1561
  %1563 = vdwg.mxu0
  %1564 = vmatprep.subr.mxu0 0.0
  %1565 = vmatpush1.msra.mxu0 0.0
  %1566 = vmatprep.subr.mxu0 0.0
  %1567 = vmatpush1.msra.mxu0 0.0
  %1568 = vmatprep.subr.mxu0 0.0
  %1569 = vmatpush1.msra.mxu0 0.0
  %1570 = vmatprep.subr.mxu0 0.0
  %1571 = vmatpush1.msra.mxu0 0.0
  %1572 = vmatprep.subr.mxu0 0.0
  %1573 = vmatpush1.msra.mxu0 0.0
  %1574 = vmatprep.subr.mxu0 0.0
  %1575 = vmatpush1.msra.mxu0 0.0
  %1576 = vmatprep.subr.mxu0 0.0
  %1577 = vmatpush1.msra.mxu0 0.0
  %1578 = vmatprep.subr.mxu0 %v1095
  %1579 = vmatpush1.msra.mxu0 %v1094
  %1580 = vmatprep.subr.mxu0 %v1076
  %1581 = vmatpush1.msra.mxu0 %v1075
  %1582 = vmatprep.subr.mxu0 %v1057
  %1583 = vmatpush1.msra.mxu0 %v1056
  %1584 = vmatprep.subr.mxu0 %v1038
  %1585 = vmatpush1.msra.mxu0 %v1037
  %1586 = vmatprep.subr.mxu0 %v1019
  %1587 = vmatpush1.msra.mxu0 %v1018
  %1588 = vmatprep.subr.mxu0 %v1000
  %1589 = vmatpush1.msra.mxu0 %v999
  %1590 = vmatprep.subr.mxu0 %v981
  %1591 = vmatpush1.msra.mxu0 %v980
  %1592 = vmatprep.subr.mxu0 %v962
  %1593 = vmatpush1.msra.mxu0 %v961
  %1594 = vmatprep.subr.mxu0 %v943
  %1595 = vmatpush1.msra.mxu0 %v942
  %1596 = vmatprep.subr.mxu0 0.0
  %1597 = vmatpush2.msra.mxu0 0.0
  %1598 = vmatprep.subr.mxu0 0.0
  %1599 = vmatpush2.msra.mxu0 0.0
  %1600 = vmatprep.subr.mxu0 0.0
  %1601 = vmatpush2.msra.mxu0 0.0
  %1602 = vmatprep.subr.mxu0 0.0
  %1603 = vmatpush2.msra.mxu0 0.0
  %1604 = vmatprep.subr.mxu0 0.0
  %1605 = vmatpush2.msra.mxu0 0.0
  %1606 = vmatprep.subr.mxu0 0.0
  %1607 = vmatpush2.msra.mxu0 0.0
  %1608 = vmatprep.subr.mxu0 0.0
  %1609 = vmatpush2.msra.mxu0 0.0
  %1610 = vmatprep.subr.mxu0 0.0
  %1611 = vmatpush2.msra.mxu0 0.0
  %1612 = vmatprep.subr.mxu0 0.0
  %1613 = vmatpush2.msra.mxu0 0.0
  %1614 = vmatprep.subr.mxu0 0.0
  %1615 = vmatpush2.msra.mxu0 0.0
  %1616 = vmatprep.subr.mxu0 0.0
  %1617 = vmatpush2.msra.mxu0 0.0
  %1618 = vmatprep.subr.mxu0 0.0
  %1619 = vmatpush2.msra.mxu0 0.0
  %1620 = vmatprep.subr.mxu0 0.0
  %1621 = vmatpush2.msra.mxu0 0.0
  %1622 = vmatprep.subr.mxu0 0.0
  %1623 = vmatpush2.msra.mxu0 0.0
  %1624 = vmatprep.subr.mxu0 0.0
  %1625 = vmatpush2.msra.mxu0 0.0
  %1626 = vmatprep.subr.mxu0 0.0
  %1627 = vmatpush2.msra.mxu0 0.0
  %1628 = vmatprep.mubr.f32.mxu0 0.0
  %1629 = vmatmul.mubr.f32.gmra.mxu0 %v1278
  %v1630 = vpop.f32.mrf.mxu0
  %v1631 = vadd.f32 %v571, %v1630
  %v1632 = vpop.f32.mrf.mxu0
  %v1633 = vadd.f32 %v571, %v1632
  %1634 = vdwg.mxu0
  %1635 = vmatprep.subr.mxu0 0.0
  %1636 = vmatpush1.msra.mxu0 0.0
  %1637 = vmatprep.subr.mxu0 0.0
  %1638 = vmatpush1.msra.mxu0 0.0
  %1639 = vmatprep.subr.mxu0 0.0
  %1640 = vmatpush1.msra.mxu0 0.0
  %1641 = vmatprep.subr.mxu0 0.0
  %1642 = vmatpush1.msra.mxu0 0.0
  %1643 = vmatprep.subr.mxu0 0.0
  %1644 = vmatpush1.msra.mxu0 0.0
  %1645 = vmatprep.subr.mxu0 0.0
  %1646 = vmatpush1.msra.mxu0 0.0
  %1647 = vmatprep.subr.mxu0 0.0
  %1648 = vmatpush1.msra.mxu0 0.0
  %1649 = vmatprep.subr.mxu0 %v1097
  %1650 = vmatpush1.msra.mxu0 %v1096
  %1651 = vmatprep.subr.mxu0 %v1078
  %1652 = vmatpush1.msra.mxu0 %v1077
  %1653 = vmatprep.subr.mxu0 %v1059
  %1654 = vmatpush1.msra.mxu0 %v1058
  %1655 = vmatprep.subr.mxu0 %v1040
  %1656 = vmatpush1.msra.mxu0 %v1039
  %1657 = vmatprep.subr.mxu0 %v1021
  %1658 = vmatpush1.msra.mxu0 %v1020
  %1659 = vmatprep.subr.mxu0 %v1002
  %1660 = vmatpush1.msra.mxu0 %v1001
  %1661 = vmatprep.subr.mxu0 %v983
  %1662 = vmatpush1.msra.mxu0 %v982
  %1663 = vmatprep.subr.mxu0 %v964
  %1664 = vmatpush1.msra.mxu0 %v963
  %1665 = vmatprep.subr.mxu0 %v945
  %1666 = vmatpush1.msra.mxu0 %v944
  %1667 = vmatprep.subr.mxu0 0.0
  %1668 = vmatpush2.msra.mxu0 0.0
  %1669 = vmatprep.subr.mxu0 0.0
  %1670 = vmatpush2.msra.mxu0 0.0
  %1671 = vmatprep.subr.mxu0 0.0
  %1672 = vmatpush2.msra.mxu0 0.0
  %1673 = vmatprep.subr.mxu0 0.0
  %1674 = vmatpush2.msra.mxu0 0.0
  %1675 = vmatprep.subr.mxu0 0.0
  %1676 = vmatpush2.msra.mxu0 0.0
  %1677 = vmatprep.subr.mxu0 0.0
  %1678 = vmatpush2.msra.mxu0 0.0
  %1679 = vmatprep.subr.mxu0 0.0
  %1680 = vmatpush2.msra.mxu0 0.0
  %1681 = vmatprep.subr.mxu0 0.0
  %1682 = vmatpush2.msra.mxu0 0.0
  %1683 = vmatprep.subr.mxu0 0.0
  %1684 = vmatpush2.msra.mxu0 0.0
  %1685 = vmatprep.subr.mxu0 0.0
  %1686 = vmatpush2.msra.mxu0 0.0
  %1687 = vmatprep.subr.mxu0 0.0
  %1688 = vmatpush2.msra.mxu0 0.0
  %1689 = vmatprep.subr.mxu0 0.0
  %1690 = vmatpush2.msra.mxu0 0.0
  %1691 = vmatprep.subr.mxu0 0.0
  %1692 = vmatpush2.msra.mxu0 0.0
  %1693 = vmatprep.subr.mxu0 0.0
  %1694 = vmatpush2.msra.mxu0 0.0
  %1695 = vmatprep.subr.mxu0 0.0
  %1696 = vmatpush2.msra.mxu0 0.0
  %1697 = vmatprep.subr.mxu0 0.0
  %1698 = vmatpush2.msra.mxu0 0.0
  %1699 = vmatprep.mubr.f32.mxu0 0.0
  %1700 = vmatmul.mubr.f32.gmra.mxu0 %v1278
  %v1701 = vpop.f32.mrf.mxu0
  %v1702 = vadd.f32 %v571, %v1701
  %v1703 = vpop.f32.mrf.mxu0
  %v1704 = vadd.f32 %v571, %v1703
  %1705 = vdwg.mxu0
  %1706 = vmatprep.subr.mxu0 0.0
  %1707 = vmatpush1.msra.mxu0 0.0
  %1708 = vmatprep.subr.mxu0 0.0
  %1709 = vmatpush1.msra.mxu0 0.0
  %1710 = vmatprep.subr.mxu0 0.0
  %1711 = vmatpush1.msra.mxu0 0.0
  %1712 = vmatprep.subr.mxu0 0.0
  %1713 = vmatpush1.msra.mxu0 0.0
  %1714 = vmatprep.subr.mxu0 0.0
  %1715 = vmatpush1.msra.mxu0 0.0
  %1716 = vmatprep.subr.mxu0 0.0
  %1717 = vmatpush1.msra.mxu0 0.0
  %1718 = vmatprep.subr.mxu0 0.0
  %1719 = vmatpush1.msra.mxu0 0.0
  %1720 = vmatprep.subr.mxu0 %v1099
  %1721 = vmatpush1.msra.mxu0 %v1098
  %1722 = vmatprep.subr.mxu0 %v1080
  %1723 = vmatpush1.msra.mxu0 %v1079
  %1724 = vmatprep.subr.mxu0 %v1061
  %1725 = vmatpush1.msra.mxu0 %v1060
  %1726 = vmatprep.subr.mxu0 %v1042
  %1727 = vmatpush1.msra.mxu0 %v1041
  %1728 = vmatprep.subr.mxu0 %v1023
  %1729 = vmatpush1.msra.mxu0 %v1022
  %1730 = vmatprep.subr.mxu0 %v1004
  %1731 = vmatpush1.msra.mxu0 %v1003
  %1732 = vmatprep.subr.mxu0 %v985
  %1733 = vmatpush1.msra.mxu0 %v984
  %1734 = vmatprep.subr.mxu0 %v966
  %1735 = vmatpush1.msra.mxu0 %v965
  %1736 = vmatprep.subr.mxu0 %v947
  %1737 = vmatpush1.msra.mxu0 %v946
  %1738 = vmatprep.subr.mxu0 0.0
  %1739 = vmatpush2.msra.mxu0 0.0
  %1740 = vmatprep.subr.mxu0 0.0
  %1741 = vmatpush2.msra.mxu0 0.0
  %1742 = vmatprep.subr.mxu0 0.0
  %1743 = vmatpush2.msra.mxu0 0.0
  %1744 = vmatprep.subr.mxu0 0.0
  %1745 = vmatpush2.msra.mxu0 0.0
  %1746 = vmatprep.subr.mxu0 0.0
  %1747 = vmatpush2.msra.mxu0 0.0
  %1748 = vmatprep.subr.mxu0 0.0
  %1749 = vmatpush2.msra.mxu0 0.0
  %1750 = vmatprep.subr.mxu0 0.0
  %1751 = vmatpush2.msra.mxu0 0.0
  %1752 = vmatprep.subr.mxu0 0.0
  %1753 = vmatpush2.msra.mxu0 0.0
  %1754 = vmatprep.subr.mxu0 0.0
  %1755 = vmatpush2.msra.mxu0 0.0
  %1756 = vmatprep.subr.mxu0 0.0
  %1757 = vmatpush2.msra.mxu0 0.0
  %1758 = vmatprep.subr.mxu0 0.0
  %1759 = vmatpush2.msra.mxu0 0.0
  %1760 = vmatprep.subr.mxu0 0.0
  %1761 = vmatpush2.msra.mxu0 0.0
  %1762 = vmatprep.subr.mxu0 0.0
  %1763 = vmatpush2.msra.mxu0 0.0
  %1764 = vmatprep.subr.mxu0 0.0
  %1765 = vmatpush2.msra.mxu0 0.0
  %1766 = vmatprep.subr.mxu0 0.0
  %1767 = vmatpush2.msra.mxu0 0.0
  %1768 = vmatprep.subr.mxu0 0.0
  %1769 = vmatpush2.msra.mxu0 0.0
  %1770 = vmatprep.mubr.f32.mxu0 0.0
  %1771 = vmatmul.mubr.f32.gmra.mxu0 %v1278
  %v1772 = vpop.f32.mrf.mxu0
  %v1773 = vadd.f32 %v571, %v1772
  %v1774 = vpop.f32.mrf.mxu0
  %v1775 = vadd.f32 %v571, %v1774
  %1776 = vdwg.mxu0
  %1777 = vmatprep.subr.mxu0 0.0
  %1778 = vmatpush1.msra.mxu0 0.0
  %1779 = vmatprep.subr.mxu0 0.0
  %1780 = vmatpush1.msra.mxu0 0.0
  %1781 = vmatprep.subr.mxu0 0.0
  %1782 = vmatpush1.msra.mxu0 0.0
  %1783 = vmatprep.subr.mxu0 0.0
  %1784 = vmatpush1.msra.mxu0 0.0
  %1785 = vmatprep.subr.mxu0 0.0
  %1786 = vmatpush1.msra.mxu0 0.0
  %1787 = vmatprep.subr.mxu0 0.0
  %1788 = vmatpush1.msra.mxu0 0.0
  %1789 = vmatprep.subr.mxu0 0.0
  %1790 = vmatpush1.msra.mxu0 0.0
  %1791 = vmatprep.subr.mxu0 %v1101
  %1792 = vmatpush1.msra.mxu0 %v1100
  %1793 = vmatprep.subr.mxu0 %v1082
  %1794 = vmatpush1.msra.mxu0 %v1081
  %1795 = vmatprep.subr.mxu0 %v1063
  %1796 = vmatpush1.msra.mxu0 %v1062
  %1797 = vmatprep.subr.mxu0 %v1044
  %1798 = vmatpush1.msra.mxu0 %v1043
  %1799 = vmatprep.subr.mxu0 %v1025
  %1800 = vmatpush1.msra.mxu0 %v1024
  %1801 = vmatprep.subr.mxu0 %v1006
  %1802 = vmatpush1.msra.mxu0 %v1005
  %1803 = vmatprep.subr.mxu0 %v987
  %1804 = vmatpush1.msra.mxu0 %v986
  %1805 = vmatprep.subr.mxu0 %v968
  %1806 = vmatpush1.msra.mxu0 %v967
  %1807 = vmatprep.subr.mxu0 %v949
  %1808 = vmatpush1.msra.mxu0 %v948
  %1809 = vmatprep.subr.mxu0 0.0
  %1810 = vmatpush2.msra.mxu0 0.0
  %1811 = vmatprep.subr.mxu0 0.0
  %1812 = vmatpush2.msra.mxu0 0.0
  %1813 = vmatprep.subr.mxu0 0.0
  %1814 = vmatpush2.msra.mxu0 0.0
  %1815 = vmatprep.subr.mxu0 0.0
  %1816 = vmatpush2.msra.mxu0 0.0
  %1817 = vmatprep.subr.mxu0 0.0
  %1818 = vmatpush2.msra.mxu0 0.0
  %1819 = vmatprep.subr.mxu0 0.0
  %1820 = vmatpush2.msra.mxu0 0.0
  %1821 = vmatprep.subr.mxu0 0.0
  %1822 = vmatpush2.msra.mxu0 0.0
  %1823 = vmatprep.subr.mxu0 0.0
  %1824 = vmatpush2.msra.mxu0 0.0
  %1825 = vmatprep.subr.mxu0 0.0
  %1826 = vmatpush2.msra.mxu0 0.0
  %1827 = vmatprep.subr.mxu0 0.0
  %1828 = vmatpush2.msra.mxu0 0.0
  %1829 = vmatprep.subr.mxu0 0.0
  %1830 = vmatpush2.msra.mxu0 0.0
  %1831 = vmatprep.subr.mxu0 0.0
  %1832 = vmatpush2.msra.mxu0 0.0
  %1833 = vmatprep.subr.mxu0 0.0
  %1834 = vmatpush2.msra.mxu0 0.0
  %1835 = vmatprep.subr.mxu0 0.0
  %1836 = vmatpush2.msra.mxu0 0.0
  %1837 = vmatprep.subr.mxu0 0.0
  %1838 = vmatpush2.msra.mxu0 0.0
  %1839 = vmatprep.subr.mxu0 0.0
  %1840 = vmatpush2.msra.mxu0 0.0
  %1841 = vmatprep.mubr.f32.mxu0 0.0
  %1842 = vmatmul.mubr.f32.gmra.mxu0 %v1278
  %v1843 = vpop.f32.mrf.mxu0
  %v1844 = vadd.f32 %v571, %v1843
  %v1845 = vpop.f32.mrf.mxu0
  %v1846 = vadd.f32 %v571, %v1845
  %1847 = vdwg.mxu0
  %1848 = vmatprep.subr.mxu0 0.0
  %1849 = vmatpush1.msra.mxu0 0.0
  %1850 = vmatprep.subr.mxu0 0.0
  %1851 = vmatpush1.msra.mxu0 0.0
  %1852 = vmatprep.subr.mxu0 0.0
  %1853 = vmatpush1.msra.mxu0 0.0
  %1854 = vmatprep.subr.mxu0 0.0
  %1855 = vmatpush1.msra.mxu0 0.0
  %1856 = vmatprep.subr.mxu0 0.0
  %1857 = vmatpush1.msra.mxu0 0.0
  %1858 = vmatprep.subr.mxu0 0.0
  %1859 = vmatpush1.msra.mxu0 0.0
  %1860 = vmatprep.subr.mxu0 0.0
  %1861 = vmatpush1.msra.mxu0 0.0
  %1862 = vmatprep.subr.mxu0 %v1103
  %1863 = vmatpush1.msra.mxu0 %v1102
  %1864 = vmatprep.subr.mxu0 %v1084
  %1865 = vmatpush1.msra.mxu0 %v1083
  %1866 = vmatprep.subr.mxu0 %v1065
  %1867 = vmatpush1.msra.mxu0 %v1064
  %1868 = vmatprep.subr.mxu0 %v1046
  %1869 = vmatpush1.msra.mxu0 %v1045
  %1870 = vmatprep.subr.mxu0 %v1027
  %1871 = vmatpush1.msra.mxu0 %v1026
  %1872 = vmatprep.subr.mxu0 %v1008
  %1873 = vmatpush1.msra.mxu0 %v1007
  %1874 = vmatprep.subr.mxu0 %v989
  %1875 = vmatpush1.msra.mxu0 %v988
  %1876 = vmatprep.subr.mxu0 %v970
  %1877 = vmatpush1.msra.mxu0 %v969
  %1878 = vmatprep.subr.mxu0 %v951
  %1879 = vmatpush1.msra.mxu0 %v950
  %1880 = vmatprep.subr.mxu0 0.0
  %1881 = vmatpush2.msra.mxu0 0.0
  %1882 = vmatprep.subr.mxu0 0.0
  %1883 = vmatpush2.msra.mxu0 0.0
  %1884 = vmatprep.subr.mxu0 0.0
  %1885 = vmatpush2.msra.mxu0 0.0
  %1886 = vmatprep.subr.mxu0 0.0
  %1887 = vmatpush2.msra.mxu0 0.0
  %1888 = vmatprep.subr.mxu0 0.0
  %1889 = vmatpush2.msra.mxu0 0.0
  %1890 = vmatprep.subr.mxu0 0.0
  %1891 = vmatpush2.msra.mxu0 0.0
  %1892 = vmatprep.subr.mxu0 0.0
  %1893 = vmatpush2.msra.mxu0 0.0
  %1894 = vmatprep.subr.mxu0 0.0
  %1895 = vmatpush2.msra.mxu0 0.0
  %1896 = vmatprep.subr.mxu0 0.0
  %1897 = vmatpush2.msra.mxu0 0.0
  %1898 = vmatprep.subr.mxu0 0.0
  %1899 = vmatpush2.msra.mxu0 0.0
  %1900 = vmatprep.subr.mxu0 0.0
  %1901 = vmatpush2.msra.mxu0 0.0
  %1902 = vmatprep.subr.mxu0 0.0
  %1903 = vmatpush2.msra.mxu0 0.0
  %1904 = vmatprep.subr.mxu0 0.0
  %1905 = vmatpush2.msra.mxu0 0.0
  %1906 = vmatprep.subr.mxu0 0.0
  %1907 = vmatpush2.msra.mxu0 0.0
  %1908 = vmatprep.subr.mxu0 0.0
  %1909 = vmatpush2.msra.mxu0 0.0
  %1910 = vmatprep.subr.mxu0 0.0
  %1911 = vmatpush2.msra.mxu0 0.0
  %1912 = vmatprep.mubr.f32.mxu0 0.0
  %1913 = vmatmul.mubr.f32.gmra.mxu0 %v1278
  %v1914 = vpop.f32.mrf.mxu0
  %v1915 = vadd.f32 %v571, %v1914
  %v1916 = vpop.f32.mrf.mxu0
  %v1917 = vadd.f32 %v571, %v1916
  %1918 = vdwg.mxu0
  %1919 = vmatprep.subr.mxu0 0.0
  %1920 = vmatpush1.msra.mxu0 0.0
  %1921 = vmatprep.subr.mxu0 0.0
  %1922 = vmatpush1.msra.mxu0 0.0
  %1923 = vmatprep.subr.mxu0 0.0
  %1924 = vmatpush1.msra.mxu0 0.0
  %1925 = vmatprep.subr.mxu0 0.0
  %1926 = vmatpush1.msra.mxu0 0.0
  %1927 = vmatprep.subr.mxu0 0.0
  %1928 = vmatpush1.msra.mxu0 0.0
  %1929 = vmatprep.subr.mxu0 0.0
  %1930 = vmatpush1.msra.mxu0 0.0
  %1931 = vmatprep.subr.mxu0 0.0
  %1932 = vmatpush1.msra.mxu0 0.0
  %1933 = vmatprep.subr.mxu0 0.0
  %1934 = vmatpush1.msra.mxu0 %v1104
  %1935 = vmatprep.subr.mxu0 0.0
  %1936 = vmatpush1.msra.mxu0 %v1085
  %1937 = vmatprep.subr.mxu0 0.0
  %1938 = vmatpush1.msra.mxu0 %v1066
  %1939 = vmatprep.subr.mxu0 0.0
  %1940 = vmatpush1.msra.mxu0 %v1047
  %1941 = vmatprep.subr.mxu0 0.0
  %1942 = vmatpush1.msra.mxu0 %v1028
  %1943 = vmatprep.subr.mxu0 0.0
  %1944 = vmatpush1.msra.mxu0 %v1009
  %1945 = vmatprep.subr.mxu0 0.0
  %1946 = vmatpush1.msra.mxu0 %v990
  %1947 = vmatprep.subr.mxu0 0.0
  %1948 = vmatpush1.msra.mxu0 %v971
  %1949 = vmatprep.subr.mxu0 0.0
  %1950 = vmatpush1.msra.mxu0 %v952
  %1951 = vmatprep.subr.mxu0 0.0
  %1952 = vmatpush2.msra.mxu0 0.0
  %1953 = vmatprep.subr.mxu0 0.0
  %1954 = vmatpush2.msra.mxu0 0.0
  %1955 = vmatprep.subr.mxu0 0.0
  %1956 = vmatpush2.msra.mxu0 0.0
  %1957 = vmatprep.subr.mxu0 0.0
  %1958 = vmatpush2.msra.mxu0 0.0
  %1959 = vmatprep.subr.mxu0 0.0
  %1960 = vmatpush2.msra.mxu0 0.0
  %1961 = vmatprep.subr.mxu0 0.0
  %1962 = vmatpush2.msra.mxu0 0.0
  %1963 = vmatprep.subr.mxu0 0.0
  %1964 = vmatpush2.msra.mxu0 0.0
  %1965 = vmatprep.subr.mxu0 0.0
  %1966 = vmatpush2.msra.mxu0 0.0
  %1967 = vmatprep.subr.mxu0 0.0
  %1968 = vmatpush2.msra.mxu0 0.0
  %1969 = vmatprep.subr.mxu0 0.0
  %1970 = vmatpush2.msra.mxu0 0.0
  %1971 = vmatprep.subr.mxu0 0.0
  %1972 = vmatpush2.msra.mxu0 0.0
  %1973 = vmatprep.subr.mxu0 0.0
  %1974 = vmatpush2.msra.mxu0 0.0
  %1975 = vmatprep.subr.mxu0 0.0
  %1976 = vmatpush2.msra.mxu0 0.0
  %1977 = vmatprep.subr.mxu0 0.0
  %1978 = vmatpush2.msra.mxu0 0.0
  %1979 = vmatprep.subr.mxu0 0.0
  %1980 = vmatpush2.msra.mxu0 0.0
  %1981 = vmatprep.subr.mxu0 0.0
  %1982 = vmatpush2.msra.mxu0 0.0
  %1983 = vmatprep.mubr.f32.mxu0 0.0
  %1984 = vmatmul.mubr.f32.gmra.mxu0 %v1278
  %v1985 = vpop.f32.mrf.mxu0
  %v1986 = vadd.f32 %v571, %v1985
  %v1987 = vpop.f32.mrf.mxu0
  %1988 = vdwg.mxu0
  %v1989 = vmax.f32 %v1347, 0.0
  %v1990 = vmax.f32 %v1349, 0.0
  %v1991 = vmax.f32 %v1418, 0.0
  %v1992 = vmax.f32 %v1420, 0.0
  %v1993 = vmax.f32 %v1489, 0.0
  %v1994 = vmax.f32 %v1491, 0.0
  %v1995 = vmax.f32 %v1560, 0.0
  %v1996 = vmax.f32 %v1562, 0.0
  %v1997 = vmax.f32 %v1631, 0.0
  %v1998 = vmax.f32 %v1633, 0.0
  %v1999 = vmax.f32 %v1702, 0.0
  %v2000 = vmax.f32 %v1704, 0.0
  %v2001 = vmax.f32 %v1773, 0.0
  %v2002 = vmax.f32 %v1775, 0.0
  %v2003 = vmax.f32 %v1844, 0.0
  %v2004 = vmax.f32 %v1846, 0.0
  %v2005 = vmax.f32 %v1915, 0.0
  %v2006 = vmax.f32 %v1917, 0.0
  %v2007 = vmax.f32 %v1986, 0.0
  %v2008 = vsel %vm44, 1, 0
  %v2009 = vsel %vm45, 1, 0
  %v2010 = vsel %vm46, 1, 0
  %v2011 = vlaneseq
  %v2012 = vshrl.u32 %v2011, 7
  %v2013 = vsub.s32 0, %v2012
  %v2014 = vrot.slane %v2008, %v2013
  %v2015 = vlaneseq
  %v2016 = vshrl.u32 %v2015, 7
  %v2017 = vsub.s32 1, %v2016
  %v2018 = vrot.slane %v2008, %v2017
  %v2019 = vlaneseq
  %v2020 = vshrl.u32 %v2019, 7
  %v2021 = vsub.s32 2, %v2020
  %v2022 = vrot.slane %v2008, %v2021
  %v2023 = vlaneseq
  %v2024 = vshrl.u32 %v2023, 7
  %v2025 = vsub.s32 3, %v2024
  %v2026 = vrot.slane %v2008, %v2025
  %v2027 = vlaneseq
  %v2028 = vshrl.u32 %v2027, 7
  %v2029 = vsub.s32 4, %v2028
  %v2030 = vrot.slane %v2008, %v2029
  %v2031 = vlaneseq
  %v2032 = vshrl.u32 %v2031, 7
  %v2033 = vsub.s32 5, %v2032
  %v2034 = vrot.slane %v2008, %v2033
  %v2035 = vlaneseq
  %v2036 = vshrl.u32 %v2035, 7
  %v2037 = vsub.s32 6, %v2036
  %v2038 = vrot.slane %v2008, %v2037
  %v2039 = vlaneseq
  %v2040 = vshrl.u32 %v2039, 7
  %v2041 = vsub.s32 7, %v2040
  %v2042 = vrot.slane %v2008, %v2041
  %v2043 = vlaneseq
  %v2044 = vshrl.u32 %v2043, 7
  %v2045 = vsub.s32 0, %v2044
  %v2046 = vrot.slane %v2009, %v2045
  %v2047 = vlaneseq
  %v2048 = vshrl.u32 %v2047, 7
  %v2049 = vsub.s32 1, %v2048
  %v2050 = vrot.slane %v2009, %v2049
  %v2051 = vlaneseq
  %v2052 = vshrl.u32 %v2051, 7
  %v2053 = vsub.s32 2, %v2052
  %v2054 = vrot.slane %v2009, %v2053
  %v2055 = vlaneseq
  %v2056 = vshrl.u32 %v2055, 7
  %v2057 = vsub.s32 3, %v2056
  %v2058 = vrot.slane %v2009, %v2057
  %v2059 = vlaneseq
  %v2060 = vshrl.u32 %v2059, 7
  %v2061 = vsub.s32 4, %v2060
  %v2062 = vrot.slane %v2009, %v2061
  %v2063 = vlaneseq
  %v2064 = vshrl.u32 %v2063, 7
  %v2065 = vsub.s32 5, %v2064
  %v2066 = vrot.slane %v2009, %v2065
  %v2067 = vlaneseq
  %v2068 = vshrl.u32 %v2067, 7
  %v2069 = vsub.s32 6, %v2068
  %v2070 = vrot.slane %v2009, %v2069
  %v2071 = vlaneseq
  %v2072 = vshrl.u32 %v2071, 7
  %v2073 = vsub.s32 7, %v2072
  %v2074 = vrot.slane %v2009, %v2073
  %v2075 = vlaneseq
  %v2076 = vshrl.u32 %v2075, 7
  %v2077 = vsub.s32 0, %v2076
  %v2078 = vrot.slane %v2010, %v2077
  %v2079 = vlaneseq
  %v2080 = vshrl.u32 %v2079, 7
  %v2081 = vsub.s32 1, %v2080
  %v2082 = vrot.slane %v2010, %v2081
  %v2083 = vlaneseq
  %v2084 = vshrl.u32 %v2083, 7
  %v2085 = vsub.s32 2, %v2084
  %v2086 = vrot.slane %v2010, %v2085
  %vm2087 = vcmp.eq.s32.totalorder %v2014, 1
  %vm2088 = vcmp.eq.s32.totalorder %v2018, 1
  %vm2089 = vcmp.eq.s32.totalorder %v2022, 1
  %vm2090 = vcmp.eq.s32.totalorder %v2026, 1
  %vm2091 = vcmp.eq.s32.totalorder %v2030, 1
  %vm2092 = vcmp.eq.s32.totalorder %v2034, 1
  %vm2093 = vcmp.eq.s32.totalorder %v2038, 1
  %vm2094 = vcmp.eq.s32.totalorder %v2042, 1
  %vm2095 = vcmp.eq.s32.totalorder %v2046, 1
  %vm2096 = vcmp.eq.s32.totalorder %v2050, 1
  %vm2097 = vcmp.eq.s32.totalorder %v2054, 1
  %vm2098 = vcmp.eq.s32.totalorder %v2058, 1
  %vm2099 = vcmp.eq.s32.totalorder %v2062, 1
  %vm2100 = vcmp.eq.s32.totalorder %v2066, 1
  %vm2101 = vcmp.eq.s32.totalorder %v2070, 1
  %vm2102 = vcmp.eq.s32.totalorder %v2074, 1
  %vm2103 = vcmp.eq.s32.totalorder %v2078, 1
  %vm2104 = vcmp.eq.s32.totalorder %v2082, 1
  %vm2105 = vcmp.eq.s32.totalorder %v2086, 1
  %v2106 = vsel %vm2087, %v1989, 0.0
  %v2107 = vsel %vm2088, %v1990, 0.0
  %v2108 = vsel %vm2089, %v1991, 0.0
  %v2109 = vsel %vm2090, %v1992, 0.0
  %v2110 = vsel %vm2091, %v1993, 0.0
  %v2111 = vsel %vm2092, %v1994, 0.0
  %v2112 = vsel %vm2093, %v1995, 0.0
  %v2113 = vsel %vm2094, %v1996, 0.0
  %v2114 = vsel %vm2095, %v1997, 0.0
  %v2115 = vsel %vm2096, %v1998, 0.0
  %v2116 = vsel %vm2097, %v1999, 0.0
  %v2117 = vsel %vm2098, %v2000, 0.0
  %v2118 = vsel %vm2099, %v2001, 0.0
  %v2119 = vsel %vm2100, %v2002, 0.0
  %v2120 = vsel %vm2101, %v2003, 0.0
  %v2121 = vsel %vm2102, %v2004, 0.0
  %v2122 = vsel %vm2103, %v2005, 0.0
  %v2123 = vsel %vm2104, %v2006, 0.0
  %v2124 = vsel %vm2105, %v2007, 0.0
  %v2125 = vadd.f32 %v2106, %v2107
  %v2126 = vadd.f32 %v2125, %v2108
  %v2127 = vadd.f32 %v2126, %v2109
  %v2128 = vadd.f32 %v2127, %v2110
  %v2129 = vadd.f32 %v2128, %v2111
  %v2130 = vadd.f32 %v2129, %v2112
  %v2131 = vadd.f32 %v2130, %v2113
  %v2132 = vadd.f32 %v2131, %v2114
  %v2133 = vadd.f32 %v2132, %v2115
  %v2134 = vadd.f32 %v2133, %v2116
  %v2135 = vadd.f32 %v2134, %v2117
  %v2136 = vadd.f32 %v2135, %v2118
  %v2137 = vadd.f32 %v2136, %v2119
  %v2138 = vadd.f32 %v2137, %v2120
  %v2139 = vadd.f32 %v2138, %v2121
  %v2140 = vadd.f32 %v2139, %v2122
  %v2141 = vadd.f32 %v2140, %v2123
  %v2142 = vadd.f32 %v2141, %v2124
  %2143 = vadd.xlane.f32.xlu0 %v2142
  %v2144 = vpop.xlane.xlu0 %2143
  %v2145 = vmul.f32 %v2106, %v2106
  %v2146 = vmul.f32 %v2107, %v2107
  %v2147 = vmul.f32 %v2108, %v2108
  %v2148 = vmul.f32 %v2109, %v2109
  %v2149 = vmul.f32 %v2110, %v2110
  %v2150 = vmul.f32 %v2111, %v2111
  %v2151 = vmul.f32 %v2112, %v2112
  %v2152 = vmul.f32 %v2113, %v2113
  %v2153 = vmul.f32 %v2114, %v2114
  %v2154 = vmul.f32 %v2115, %v2115
  %v2155 = vmul.f32 %v2116, %v2116
  %v2156 = vmul.f32 %v2117, %v2117
  %v2157 = vmul.f32 %v2118, %v2118
  %v2158 = vmul.f32 %v2119, %v2119
  %v2159 = vmul.f32 %v2120, %v2120
  %v2160 = vmul.f32 %v2121, %v2121
  %v2161 = vmul.f32 %v2122, %v2122
  %v2162 = vmul.f32 %v2123, %v2123
  %v2163 = vmul.f32 %v2124, %v2124
  %v2164 = vadd.f32 %v2145, %v2146
  %v2165 = vadd.f32 %v2164, %v2147
  %v2166 = vadd.f32 %v2165, %v2148
  %v2167 = vadd.f32 %v2166, %v2149
  %v2168 = vadd.f32 %v2167, %v2150
  %v2169 = vadd.f32 %v2168, %v2151
  %v2170 = vadd.f32 %v2169, %v2152
  %v2171 = vadd.f32 %v2170, %v2153
  %v2172 = vadd.f32 %v2171, %v2154
  %v2173 = vadd.f32 %v2172, %v2155
  %v2174 = vadd.f32 %v2173, %v2156
  %v2175 = vadd.f32 %v2174, %v2157
  %v2176 = vadd.f32 %v2175, %v2158
  %v2177 = vadd.f32 %v2176, %v2159
  %v2178 = vadd.f32 %v2177, %v2160
  %v2179 = vadd.f32 %v2178, %v2161
  %v2180 = vadd.f32 %v2179, %v2162
  %v2181 = vadd.f32 %v2180, %v2163
  %2182 = vadd.xlane.f32.xlu0 %v2181
  %v2183 = vpop.xlane.xlu0 %2182
  %v2184 = vmul.f32 %v2144, 0.00048828125
  %v2185 = vmul.f32 %v2183, 0.00048828125
  %v2186 = vmul.f32 %v2184, %v2184
  %v2187 = vsub.f32 %v2185, %v2186
  %v2188 = vmax.f32 %v2187, 0.0
  %v2189 = vld [vmem:[%s4] sm:$0xff]
  %v2190 = vadd.f32 %v2188, 1e-05
  %v2191 = vrsqrt.pop %v2190
  %v2192 = vmul.f32 %v2189, %v2191
  %v2193 = vld [vmem:[%s5] sm:$0xff]
  %v2194 = vmul.f32 %v2184, %v2192
  %v2195 = vsub.f32 %v2193, %v2194
  %2197 = vset.pattern.permute.xlu0 0
  %2198 = vperm.xlu0 %2197, %v2192
  %v2199 = vpop.permute.xlu0 %2198
  %v2201 = vmul.f32 %v2199, %v2106
  %v2202 = vmul.f32 %v2199, %v2107
  %v2203 = vmul.f32 %v2199, %v2108
  %v2204 = vmul.f32 %v2199, %v2109
  %v2205 = vmul.f32 %v2199, %v2110
  %v2206 = vmul.f32 %v2199, %v2111
  %v2207 = vmul.f32 %v2199, %v2112
  %v2208 = vmul.f32 %v2199, %v2113
  %v2209 = vmul.f32 %v2199, %v2114
  %v2210 = vmul.f32 %v2199, %v2115
  %v2211 = vmul.f32 %v2199, %v2116
  %v2212 = vmul.f32 %v2199, %v2117
  %v2213 = vmul.f32 %v2199, %v2118
  %v2214 = vmul.f32 %v2199, %v2119
  %v2215 = vmul.f32 %v2199, %v2120
  %v2216 = vmul.f32 %v2199, %v2121
  %v2217 = vmul.f32 %v2199, %v2122
  %v2218 = vmul.f32 %v2199, %v2123
  %v2219 = vmul.f32 %v2199, %v2124
  %2221 = vset.pattern.permute.xlu0 0
  %2222 = vperm.xlu0 %2221, %v2195
  %v2223 = vpop.permute.xlu0 %2222
  %v2225 = vadd.f32 %v2201, %v2223
  %v2226 = vadd.f32 %v2202, %v2223
  %v2227 = vadd.f32 %v2203, %v2223
  %v2228 = vadd.f32 %v2204, %v2223
  %v2229 = vadd.f32 %v2205, %v2223
  %v2230 = vadd.f32 %v2206, %v2223
  %v2231 = vadd.f32 %v2207, %v2223
  %v2232 = vadd.f32 %v2208, %v2223
  %v2233 = vadd.f32 %v2209, %v2223
  %v2234 = vadd.f32 %v2210, %v2223
  %v2235 = vadd.f32 %v2211, %v2223
  %v2236 = vadd.f32 %v2212, %v2223
  %v2237 = vadd.f32 %v2213, %v2223
  %v2238 = vadd.f32 %v2214, %v2223
  %v2239 = vadd.f32 %v2215, %v2223
  %v2240 = vadd.f32 %v2216, %v2223
  %v2241 = vadd.f32 %v2217, %v2223
  %v2242 = vadd.f32 %v2218, %v2223
  %v2243 = vadd.f32 %v2219, %v2223
  %v2244 = vsel %vm2087, %v2225, 0.0
  %v2245 = vsel %vm2088, %v2226, 0.0
  %v2246 = vsel %vm2089, %v2227, 0.0
  %v2247 = vsel %vm2090, %v2228, 0.0
  %v2248 = vsel %vm2091, %v2229, 0.0
  %v2249 = vsel %vm2092, %v2230, 0.0
  %v2250 = vsel %vm2093, %v2231, 0.0
  %v2251 = vsel %vm2094, %v2232, 0.0
  %v2252 = vsel %vm2095, %v2233, 0.0
  %v2253 = vsel %vm2096, %v2234, 0.0
  %v2254 = vsel %vm2097, %v2235, 0.0
  %v2255 = vsel %vm2098, %v2236, 0.0
  %v2256 = vsel %vm2099, %v2237, 0.0
  %v2257 = vsel %vm2100, %v2238, 0.0
  %v2258 = vsel %vm2101, %v2239, 0.0
  %v2259 = vsel %vm2102, %v2240, 0.0
  %v2260 = vsel %vm2103, %v2241, 0.0
  %v2261 = vsel %vm2104, %v2242, 0.0
  %v2262 = vsel %vm2105, %v2243, 0.0
  %2283 = vrot.lane.b32.xlu0 0.0, 127
  %v2284 = vpop.permute.xlu0 %2283
  %2285 = vrot.lane.b32.xlu0 %v2244, 127
  %v2286 = vpop.permute.xlu0 %2285
  %2287 = vrot.lane.b32.xlu0 %v2245, 127
  %v2288 = vpop.permute.xlu0 %2287
  %2289 = vrot.lane.b32.xlu0 %v2246, 127
  %v2290 = vpop.permute.xlu0 %2289
  %2291 = vrot.lane.b32.xlu0 %v2247, 127
  %v2292 = vpop.permute.xlu0 %2291
  %2293 = vrot.lane.b32.xlu0 %v2248, 127
  %v2294 = vpop.permute.xlu0 %2293
  %2295 = vrot.lane.b32.xlu0 %v2249, 127
  %v2296 = vpop.permute.xlu0 %2295
  %2297 = vrot.lane.b32.xlu0 %v2250, 127
  %v2298 = vpop.permute.xlu0 %2297
  %2299 = vrot.lane.b32.xlu0 %v2251, 127
  %v2300 = vpop.permute.xlu0 %2299
  %2301 = vrot.lane.b32.xlu0 %v2252, 127
  %v2302 = vpop.permute.xlu0 %2301
  %2303 = vrot.lane.b32.xlu0 %v2253, 127
  %v2304 = vpop.permute.xlu0 %2303
  %2305 = vrot.lane.b32.xlu0 %v2254, 127
  %v2306 = vpop.permute.xlu0 %2305
  %2307 = vrot.lane.b32.xlu0 %v2255, 127
  %v2308 = vpop.permute.xlu0 %2307
  %2309 = vrot.lane.b32.xlu0 %v2256, 127
  %v2310 = vpop.permute.xlu0 %2309
  %2311 = vrot.lane.b32.xlu0 %v2257, 127
  %v2312 = vpop.permute.xlu0 %2311
  %2313 = vrot.lane.b32.xlu0 %v2258, 127
  %v2314 = vpop.permute.xlu0 %2313
  %2315 = vrot.lane.b32.xlu0 %v2259, 127
  %v2316 = vpop.permute.xlu0 %2315
  %2317 = vrot.lane.b32.xlu0 %v2260, 127
  %v2318 = vpop.permute.xlu0 %2317
  %2319 = vrot.lane.b32.xlu0 %v2261, 127
  %v2320 = vpop.permute.xlu0 %2319
  %2321 = vrot.lane.b32.xlu0 %v2262, 127
  %v2322 = vpop.permute.xlu0 %2321
  %v2323 = vsel %vm128, %v2284, %v2286
  %v2324 = vsel %vm128, %v2286, %v2288
  %v2325 = vsel %vm128, %v2288, %v2290
  %v2326 = vsel %vm128, %v2290, %v2292
  %v2327 = vsel %vm128, %v2292, %v2294
  %v2328 = vsel %vm128, %v2294, %v2296
  %v2329 = vsel %vm128, %v2296, %v2298
  %v2330 = vsel %vm128, %v2298, %v2300
  %v2331 = vsel %vm128, %v2300, %v2302
  %v2332 = vsel %vm128, %v2302, %v2304
  %v2333 = vsel %vm128, %v2304, %v2306
  %v2334 = vsel %vm128, %v2306, %v2308
  %v2335 = vsel %vm128, %v2308, %v2310
  %v2336 = vsel %vm128, %v2310, %v2312
  %v2337 = vsel %vm128, %v2312, %v2314
  %v2338 = vsel %vm128, %v2314, %v2316
  %v2339 = vsel %vm128, %v2316, %v2318
  %v2340 = vsel %vm128, %v2318, %v2320
  %v2341 = vsel %vm128, %v2320, %v2322
  %2342 = vrot.lane.b32.xlu0 0.0, 126
  %v2343 = vpop.permute.xlu0 %2342
  %2344 = vrot.lane.b32.xlu0 %v2244, 126
  %v2345 = vpop.permute.xlu0 %2344
  %2346 = vrot.lane.b32.xlu0 %v2245, 126
  %v2347 = vpop.permute.xlu0 %2346
  %2348 = vrot.lane.b32.xlu0 %v2246, 126
  %v2349 = vpop.permute.xlu0 %2348
  %2350 = vrot.lane.b32.xlu0 %v2247, 126
  %v2351 = vpop.permute.xlu0 %2350
  %2352 = vrot.lane.b32.xlu0 %v2248, 126
  %v2353 = vpop.permute.xlu0 %2352
  %2354 = vrot.lane.b32.xlu0 %v2249, 126
  %v2355 = vpop.permute.xlu0 %2354
  %2356 = vrot.lane.b32.xlu0 %v2250, 126
  %v2357 = vpop.permute.xlu0 %2356
  %2358 = vrot.lane.b32.xlu0 %v2251, 126
  %v2359 = vpop.permute.xlu0 %2358
  %2360 = vrot.lane.b32.xlu0 %v2252, 126
  %v2361 = vpop.permute.xlu0 %2360
  %2362 = vrot.lane.b32.xlu0 %v2253, 126
  %v2363 = vpop.permute.xlu0 %2362
  %2364 = vrot.lane.b32.xlu0 %v2254, 126
  %v2365 = vpop.permute.xlu0 %2364
  %2366 = vrot.lane.b32.xlu0 %v2255, 126
  %v2367 = vpop.permute.xlu0 %2366
  %2368 = vrot.lane.b32.xlu0 %v2256, 126
  %v2369 = vpop.permute.xlu0 %2368
  %2370 = vrot.lane.b32.xlu0 %v2257, 126
  %v2371 = vpop.permute.xlu0 %2370
  %2372 = vrot.lane.b32.xlu0 %v2258, 126
  %v2373 = vpop.permute.xlu0 %2372
  %2374 = vrot.lane.b32.xlu0 %v2259, 126
  %v2375 = vpop.permute.xlu0 %2374
  %2376 = vrot.lane.b32.xlu0 %v2260, 126
  %v2377 = vpop.permute.xlu0 %2376
  %2378 = vrot.lane.b32.xlu0 %v2261, 126
  %v2379 = vpop.permute.xlu0 %2378
  %2380 = vrot.lane.b32.xlu0 %v2262, 126
  %v2381 = vpop.permute.xlu0 %2380
  %v2382 = vsel %vm188, %v2343, %v2345
  %v2383 = vsel %vm188, %v2345, %v2347
  %v2384 = vsel %vm188, %v2347, %v2349
  %v2385 = vsel %vm188, %v2349, %v2351
  %v2386 = vsel %vm188, %v2351, %v2353
  %v2387 = vsel %vm188, %v2353, %v2355
  %v2388 = vsel %vm188, %v2355, %v2357
  %v2389 = vsel %vm188, %v2357, %v2359
  %v2390 = vsel %vm188, %v2359, %v2361
  %v2391 = vsel %vm188, %v2361, %v2363
  %v2392 = vsel %vm188, %v2363, %v2365
  %v2393 = vsel %vm188, %v2365, %v2367
  %v2394 = vsel %vm188, %v2367, %v2369
  %v2395 = vsel %vm188, %v2369, %v2371
  %v2396 = vsel %vm188, %v2371, %v2373
  %v2397 = vsel %vm188, %v2373, %v2375
  %v2398 = vsel %vm188, %v2375, %v2377
  %v2399 = vsel %vm188, %v2377, %v2379
  %v2400 = vsel %vm188, %v2379, %v2381
  %2401 = vrot.lane.b32.xlu0 0.0, 94
  %v2402 = vpop.permute.xlu0 %2401
  %2403 = vrot.lane.b32.xlu0 %v2244, 94
  %v2404 = vpop.permute.xlu0 %2403
  %2405 = vrot.lane.b32.xlu0 %v2245, 94
  %v2406 = vpop.permute.xlu0 %2405
  %2407 = vrot.lane.b32.xlu0 %v2246, 94
  %v2408 = vpop.permute.xlu0 %2407
  %2409 = vrot.lane.b32.xlu0 %v2247, 94
  %v2410 = vpop.permute.xlu0 %2409
  %2411 = vrot.lane.b32.xlu0 %v2248, 94
  %v2412 = vpop.permute.xlu0 %2411
  %2413 = vrot.lane.b32.xlu0 %v2249, 94
  %v2414 = vpop.permute.xlu0 %2413
  %2415 = vrot.lane.b32.xlu0 %v2250, 94
  %v2416 = vpop.permute.xlu0 %2415
  %2417 = vrot.lane.b32.xlu0 %v2251, 94
  %v2418 = vpop.permute.xlu0 %2417
  %2419 = vrot.lane.b32.xlu0 %v2252, 94
  %v2420 = vpop.permute.xlu0 %2419
  %2421 = vrot.lane.b32.xlu0 %v2253, 94
  %v2422 = vpop.permute.xlu0 %2421
  %2423 = vrot.lane.b32.xlu0 %v2254, 94
  %v2424 = vpop.permute.xlu0 %2423
  %2425 = vrot.lane.b32.xlu0 %v2255, 94
  %v2426 = vpop.permute.xlu0 %2425
  %2427 = vrot.lane.b32.xlu0 %v2256, 94
  %v2428 = vpop.permute.xlu0 %2427
  %2429 = vrot.lane.b32.xlu0 %v2257, 94
  %v2430 = vpop.permute.xlu0 %2429
  %2431 = vrot.lane.b32.xlu0 %v2258, 94
  %v2432 = vpop.permute.xlu0 %2431
  %2433 = vrot.lane.b32.xlu0 %v2259, 94
  %v2434 = vpop.permute.xlu0 %2433
  %2435 = vrot.lane.b32.xlu0 %v2260, 94
  %v2436 = vpop.permute.xlu0 %2435
  %2437 = vrot.lane.b32.xlu0 %v2261, 94
  %v2438 = vpop.permute.xlu0 %2437
  %2439 = vrot.lane.b32.xlu0 %v2262, 94
  %v2440 = vpop.permute.xlu0 %2439
  %v2441 = vsel %vm248, %v2402, %v2404
  %v2442 = vsel %vm248, %v2404, %v2406
  %v2443 = vsel %vm248, %v2406, %v2408
  %v2444 = vsel %vm248, %v2408, %v2410
  %v2445 = vsel %vm248, %v2410, %v2412
  %v2446 = vsel %vm248, %v2412, %v2414
  %v2447 = vsel %vm248, %v2414, %v2416
  %v2448 = vsel %vm248, %v2416, %v2418
  %v2449 = vsel %vm248, %v2418, %v2420
  %v2450 = vsel %vm248, %v2420, %v2422
  %v2451 = vsel %vm248, %v2422, %v2424
  %v2452 = vsel %vm248, %v2424, %v2426
  %v2453 = vsel %vm248, %v2426, %v2428
  %v2454 = vsel %vm248, %v2428, %v2430
  %v2455 = vsel %vm248, %v2430, %v2432
  %v2456 = vsel %vm248, %v2432, %v2434
  %v2457 = vsel %vm248, %v2434, %v2436
  %v2458 = vsel %vm248, %v2436, %v2438
  %v2459 = vsel %vm248, %v2438, %v2440
  %2460 = vrot.lane.b32.xlu0 %v2244, 93
  %v2461 = vpop.permute.xlu0 %2460
  %2462 = vrot.lane.b32.xlu0 %v2245, 93
  %v2463 = vpop.permute.xlu0 %2462
  %2464 = vrot.lane.b32.xlu0 %v2246, 93
  %v2465 = vpop.permute.xlu0 %2464
  %2466 = vrot.lane.b32.xlu0 %v2247, 93
  %v2467 = vpop.permute.xlu0 %2466
  %2468 = vrot.lane.b32.xlu0 %v2248, 93
  %v2469 = vpop.permute.xlu0 %2468
  %2470 = vrot.lane.b32.xlu0 %v2249, 93
  %v2471 = vpop.permute.xlu0 %2470
  %2472 = vrot.lane.b32.xlu0 %v2250, 93
  %v2473 = vpop.permute.xlu0 %2472
  %2474 = vrot.lane.b32.xlu0 %v2251, 93
  %v2475 = vpop.permute.xlu0 %2474
  %2476 = vrot.lane.b32.xlu0 %v2252, 93
  %v2477 = vpop.permute.xlu0 %2476
  %2478 = vrot.lane.b32.xlu0 %v2253, 93
  %v2479 = vpop.permute.xlu0 %2478
  %2480 = vrot.lane.b32.xlu0 %v2254, 93
  %v2481 = vpop.permute.xlu0 %2480
  %2482 = vrot.lane.b32.xlu0 %v2255, 93
  %v2483 = vpop.permute.xlu0 %2482
  %2484 = vrot.lane.b32.xlu0 %v2256, 93
  %v2485 = vpop.permute.xlu0 %2484
  %2486 = vrot.lane.b32.xlu0 %v2257, 93
  %v2487 = vpop.permute.xlu0 %2486
  %2488 = vrot.lane.b32.xlu0 %v2258, 93
  %v2489 = vpop.permute.xlu0 %2488
  %2490 = vrot.lane.b32.xlu0 %v2259, 93
  %v2491 = vpop.permute.xlu0 %2490
  %2492 = vrot.lane.b32.xlu0 %v2260, 93
  %v2493 = vpop.permute.xlu0 %2492
  %2494 = vrot.lane.b32.xlu0 %v2261, 93
  %v2495 = vpop.permute.xlu0 %2494
  %2496 = vrot.lane.b32.xlu0 %v2262, 93
  %v2497 = vpop.permute.xlu0 %2496
  %v2498 = vsel %vm306, %v2461, %v2463
  %v2499 = vsel %vm306, %v2463, %v2465
  %v2500 = vsel %vm306, %v2465, %v2467
  %v2501 = vsel %vm306, %v2467, %v2469
  %v2502 = vsel %vm306, %v2469, %v2471
  %v2503 = vsel %vm306, %v2471, %v2473
  %v2504 = vsel %vm306, %v2473, %v2475
  %v2505 = vsel %vm306, %v2475, %v2477
  %v2506 = vsel %vm306, %v2477, %v2479
  %v2507 = vsel %vm306, %v2479, %v2481
  %v2508 = vsel %vm306, %v2481, %v2483
  %v2509 = vsel %vm306, %v2483, %v2485
  %v2510 = vsel %vm306, %v2485, %v2487
  %v2511 = vsel %vm306, %v2487, %v2489
  %v2512 = vsel %vm306, %v2489, %v2491
  %v2513 = vsel %vm306, %v2491, %v2493
  %v2514 = vsel %vm306, %v2493, %v2495
  %v2515 = vsel %vm306, %v2495, %v2497
  %2516 = vrot.lane.b32.xlu0 %v2244, 92
  %v2517 = vpop.permute.xlu0 %2516
  %2518 = vrot.lane.b32.xlu0 %v2245, 92
  %v2519 = vpop.permute.xlu0 %2518
  %2520 = vrot.lane.b32.xlu0 %v2246, 92
  %v2521 = vpop.permute.xlu0 %2520
  %2522 = vrot.lane.b32.xlu0 %v2247, 92
  %v2523 = vpop.permute.xlu0 %2522
  %2524 = vrot.lane.b32.xlu0 %v2248, 92
  %v2525 = vpop.permute.xlu0 %2524
  %2526 = vrot.lane.b32.xlu0 %v2249, 92
  %v2527 = vpop.permute.xlu0 %2526
  %2528 = vrot.lane.b32.xlu0 %v2250, 92
  %v2529 = vpop.permute.xlu0 %2528
  %2530 = vrot.lane.b32.xlu0 %v2251, 92
  %v2531 = vpop.permute.xlu0 %2530
  %2532 = vrot.lane.b32.xlu0 %v2252, 92
  %v2533 = vpop.permute.xlu0 %2532
  %2534 = vrot.lane.b32.xlu0 %v2253, 92
  %v2535 = vpop.permute.xlu0 %2534
  %2536 = vrot.lane.b32.xlu0 %v2254, 92
  %v2537 = vpop.permute.xlu0 %2536
  %2538 = vrot.lane.b32.xlu0 %v2255, 92
  %v2539 = vpop.permute.xlu0 %2538
  %2540 = vrot.lane.b32.xlu0 %v2256, 92
  %v2541 = vpop.permute.xlu0 %2540
  %2542 = vrot.lane.b32.xlu0 %v2257, 92
  %v2543 = vpop.permute.xlu0 %2542
  %2544 = vrot.lane.b32.xlu0 %v2258, 92
  %v2545 = vpop.permute.xlu0 %2544
  %2546 = vrot.lane.b32.xlu0 %v2259, 92
  %v2547 = vpop.permute.xlu0 %2546
  %2548 = vrot.lane.b32.xlu0 %v2260, 92
  %v2549 = vpop.permute.xlu0 %2548
  %2550 = vrot.lane.b32.xlu0 %v2261, 92
  %v2551 = vpop.permute.xlu0 %2550
  %2552 = vrot.lane.b32.xlu0 %v2262, 92
  %v2553 = vpop.permute.xlu0 %2552
  %2554 = vrot.lane.b32.xlu0 0.0, 92
  %v2555 = vpop.permute.xlu0 %2554
  %v2556 = vsel %vm366, %v2517, %v2519
  %v2557 = vsel %vm366, %v2519, %v2521
  %v2558 = vsel %vm366, %v2521, %v2523
  %v2559 = vsel %vm366, %v2523, %v2525
  %v2560 = vsel %vm366, %v2525, %v2527
  %v2561 = vsel %vm366, %v2527, %v2529
  %v2562 = vsel %vm366, %v2529, %v2531
  %v2563 = vsel %vm366, %v2531, %v2533
  %v2564 = vsel %vm366, %v2533, %v2535
  %v2565 = vsel %vm366, %v2535, %v2537
  %v2566 = vsel %vm366, %v2537, %v2539
  %v2567 = vsel %vm366, %v2539, %v2541
  %v2568 = vsel %vm366, %v2541, %v2543
  %v2569 = vsel %vm366, %v2543, %v2545
  %v2570 = vsel %vm366, %v2545, %v2547
  %v2571 = vsel %vm366, %v2547, %v2549
  %v2572 = vsel %vm366, %v2549, %v2551
  %v2573 = vsel %vm366, %v2551, %v2553
  %v2574 = vsel %vm366, %v2553, %v2555
  %2575 = vrot.lane.b32.xlu0 %v2244, 60
  %v2576 = vpop.permute.xlu0 %2575
  %2577 = vrot.lane.b32.xlu0 %v2245, 60
  %v2578 = vpop.permute.xlu0 %2577
  %2579 = vrot.lane.b32.xlu0 %v2246, 60
  %v2580 = vpop.permute.xlu0 %2579
  %2581 = vrot.lane.b32.xlu0 %v2247, 60
  %v2582 = vpop.permute.xlu0 %2581
  %2583 = vrot.lane.b32.xlu0 %v2248, 60
  %v2584 = vpop.permute.xlu0 %2583
  %2585 = vrot.lane.b32.xlu0 %v2249, 60
  %v2586 = vpop.permute.xlu0 %2585
  %2587 = vrot.lane.b32.xlu0 %v2250, 60
  %v2588 = vpop.permute.xlu0 %2587
  %2589 = vrot.lane.b32.xlu0 %v2251, 60
  %v2590 = vpop.permute.xlu0 %2589
  %2591 = vrot.lane.b32.xlu0 %v2252, 60
  %v2592 = vpop.permute.xlu0 %2591
  %2593 = vrot.lane.b32.xlu0 %v2253, 60
  %v2594 = vpop.permute.xlu0 %2593
  %2595 = vrot.lane.b32.xlu0 %v2254, 60
  %v2596 = vpop.permute.xlu0 %2595
  %2597 = vrot.lane.b32.xlu0 %v2255, 60
  %v2598 = vpop.permute.xlu0 %2597
  %2599 = vrot.lane.b32.xlu0 %v2256, 60
  %v2600 = vpop.permute.xlu0 %2599
  %2601 = vrot.lane.b32.xlu0 %v2257, 60
  %v2602 = vpop.permute.xlu0 %2601
  %2603 = vrot.lane.b32.xlu0 %v2258, 60
  %v2604 = vpop.permute.xlu0 %2603
  %2605 = vrot.lane.b32.xlu0 %v2259, 60
  %v2606 = vpop.permute.xlu0 %2605
  %2607 = vrot.lane.b32.xlu0 %v2260, 60
  %v2608 = vpop.permute.xlu0 %2607
  %2609 = vrot.lane.b32.xlu0 %v2261, 60
  %v2610 = vpop.permute.xlu0 %2609
  %2611 = vrot.lane.b32.xlu0 %v2262, 60
  %v2612 = vpop.permute.xlu0 %2611
  %2613 = vrot.lane.b32.xlu0 0.0, 60
  %v2614 = vpop.permute.xlu0 %2613
  %v2615 = vsel %vm426, %v2576, %v2578
  %v2616 = vsel %vm426, %v2578, %v2580
  %v2617 = vsel %vm426, %v2580, %v2582
  %v2618 = vsel %vm426, %v2582, %v2584
  %v2619 = vsel %vm426, %v2584, %v2586
  %v2620 = vsel %vm426, %v2586, %v2588
  %v2621 = vsel %vm426, %v2588, %v2590
  %v2622 = vsel %vm426, %v2590, %v2592
  %v2623 = vsel %vm426, %v2592, %v2594
  %v2624 = vsel %vm426, %v2594, %v2596
  %v2625 = vsel %vm426, %v2596, %v2598
  %v2626 = vsel %vm426, %v2598, %v2600
  %v2627 = vsel %vm426, %v2600, %v2602
  %v2628 = vsel %vm426, %v2602, %v2604
  %v2629 = vsel %vm426, %v2604, %v2606
  %v2630 = vsel %vm426, %v2606, %v2608
  %v2631 = vsel %vm426, %v2608, %v2610
  %v2632 = vsel %vm426, %v2610, %v2612
  %v2633 = vsel %vm426, %v2612, %v2614
  %2634 = vrot.lane.b32.xlu0 %v2244, 59
  %v2635 = vpop.permute.xlu0 %2634
  %2636 = vrot.lane.b32.xlu0 %v2245, 59
  %v2637 = vpop.permute.xlu0 %2636
  %2638 = vrot.lane.b32.xlu0 %v2246, 59
  %v2639 = vpop.permute.xlu0 %2638
  %2640 = vrot.lane.b32.xlu0 %v2247, 59
  %v2641 = vpop.permute.xlu0 %2640
  %2642 = vrot.lane.b32.xlu0 %v2248, 59
  %v2643 = vpop.permute.xlu0 %2642
  %2644 = vrot.lane.b32.xlu0 %v2249, 59
  %v2645 = vpop.permute.xlu0 %2644
  %2646 = vrot.lane.b32.xlu0 %v2250, 59
  %v2647 = vpop.permute.xlu0 %2646
  %2648 = vrot.lane.b32.xlu0 %v2251, 59
  %v2649 = vpop.permute.xlu0 %2648
  %2650 = vrot.lane.b32.xlu0 %v2252, 59
  %v2651 = vpop.permute.xlu0 %2650
  %2652 = vrot.lane.b32.xlu0 %v2253, 59
  %v2653 = vpop.permute.xlu0 %2652
  %2654 = vrot.lane.b32.xlu0 %v2254, 59
  %v2655 = vpop.permute.xlu0 %2654
  %2656 = vrot.lane.b32.xlu0 %v2255, 59
  %v2657 = vpop.permute.xlu0 %2656
  %2658 = vrot.lane.b32.xlu0 %v2256, 59
  %v2659 = vpop.permute.xlu0 %2658
  %2660 = vrot.lane.b32.xlu0 %v2257, 59
  %v2661 = vpop.permute.xlu0 %2660
  %2662 = vrot.lane.b32.xlu0 %v2258, 59
  %v2663 = vpop.permute.xlu0 %2662
  %2664 = vrot.lane.b32.xlu0 %v2259, 59
  %v2665 = vpop.permute.xlu0 %2664
  %2666 = vrot.lane.b32.xlu0 %v2260, 59
  %v2667 = vpop.permute.xlu0 %2666
  %2668 = vrot.lane.b32.xlu0 %v2261, 59
  %v2669 = vpop.permute.xlu0 %2668
  %2670 = vrot.lane.b32.xlu0 %v2262, 59
  %v2671 = vpop.permute.xlu0 %2670
  %2672 = vrot.lane.b32.xlu0 0.0, 59
  %v2673 = vpop.permute.xlu0 %2672
  %v2674 = vsel %vm486, %v2635, %v2637
  %v2675 = vsel %vm486, %v2637, %v2639
  %v2676 = vsel %vm486, %v2639, %v2641
  %v2677 = vsel %vm486, %v2641, %v2643
  %v2678 = vsel %vm486, %v2643, %v2645
  %v2679 = vsel %vm486, %v2645, %v2647
  %v2680 = vsel %vm486, %v2647, %v2649
  %v2681 = vsel %vm486, %v2649, %v2651
  %v2682 = vsel %vm486, %v2651, %v2653
  %v2683 = vsel %vm486, %v2653, %v2655
  %v2684 = vsel %vm486, %v2655, %v2657
  %v2685 = vsel %vm486, %v2657, %v2659
  %v2686 = vsel %vm486, %v2659, %v2661
  %v2687 = vsel %vm486, %v2661, %v2663
  %v2688 = vsel %vm486, %v2663, %v2665
  %v2689 = vsel %vm486, %v2665, %v2667
  %v2690 = vsel %vm486, %v2667, %v2669
  %v2691 = vsel %vm486, %v2669, %v2671
  %v2692 = vsel %vm486, %v2671, %v2673
  %2693 = vrot.lane.b32.xlu0 %v2244, 58
  %v2694 = vpop.permute.xlu0 %2693
  %2695 = vrot.lane.b32.xlu0 %v2245, 58
  %v2696 = vpop.permute.xlu0 %2695
  %2697 = vrot.lane.b32.xlu0 %v2246, 58
  %v2698 = vpop.permute.xlu0 %2697
  %2699 = vrot.lane.b32.xlu0 %v2247, 58
  %v2700 = vpop.permute.xlu0 %2699
  %2701 = vrot.lane.b32.xlu0 %v2248, 58
  %v2702 = vpop.permute.xlu0 %2701
  %2703 = vrot.lane.b32.xlu0 %v2249, 58
  %v2704 = vpop.permute.xlu0 %2703
  %2705 = vrot.lane.b32.xlu0 %v2250, 58
  %v2706 = vpop.permute.xlu0 %2705
  %2707 = vrot.lane.b32.xlu0 %v2251, 58
  %v2708 = vpop.permute.xlu0 %2707
  %2709 = vrot.lane.b32.xlu0 %v2252, 58
  %v2710 = vpop.permute.xlu0 %2709
  %2711 = vrot.lane.b32.xlu0 %v2253, 58
  %v2712 = vpop.permute.xlu0 %2711
  %2713 = vrot.lane.b32.xlu0 %v2254, 58
  %v2714 = vpop.permute.xlu0 %2713
  %2715 = vrot.lane.b32.xlu0 %v2255, 58
  %v2716 = vpop.permute.xlu0 %2715
  %2717 = vrot.lane.b32.xlu0 %v2256, 58
  %v2718 = vpop.permute.xlu0 %2717
  %2719 = vrot.lane.b32.xlu0 %v2257, 58
  %v2720 = vpop.permute.xlu0 %2719
  %2721 = vrot.lane.b32.xlu0 %v2258, 58
  %v2722 = vpop.permute.xlu0 %2721
  %2723 = vrot.lane.b32.xlu0 %v2259, 58
  %v2724 = vpop.permute.xlu0 %2723
  %2725 = vrot.lane.b32.xlu0 %v2260, 58
  %v2726 = vpop.permute.xlu0 %2725
  %2727 = vrot.lane.b32.xlu0 %v2261, 58
  %v2728 = vpop.permute.xlu0 %2727
  %2729 = vrot.lane.b32.xlu0 %v2262, 58
  %v2730 = vpop.permute.xlu0 %2729
  %2731 = vrot.lane.b32.xlu0 0.0, 58
  %v2732 = vpop.permute.xlu0 %2731
  %v2733 = vsel %vm546, %v2694, %v2696
  %v2734 = vsel %vm546, %v2696, %v2698
  %v2735 = vsel %vm546, %v2698, %v2700
  %v2736 = vsel %vm546, %v2700, %v2702
  %v2737 = vsel %vm546, %v2702, %v2704
  %v2738 = vsel %vm546, %v2704, %v2706
  %v2739 = vsel %vm546, %v2706, %v2708
  %v2740 = vsel %vm546, %v2708, %v2710
  %v2741 = vsel %vm546, %v2710, %v2712
  %v2742 = vsel %vm546, %v2712, %v2714
  %v2743 = vsel %vm546, %v2714, %v2716
  %v2744 = vsel %vm546, %v2716, %v2718
  %v2745 = vsel %vm546, %v2718, %v2720
  %v2746 = vsel %vm546, %v2720, %v2722
  %v2747 = vsel %vm546, %v2722, %v2724
  %v2748 = vsel %vm546, %v2724, %v2726
  %v2749 = vsel %vm546, %v2726, %v2728
  %v2750 = vsel %vm546, %v2728, %v2730
  %v2751 = vsel %vm546, %v2730, %v2732
  %v2752 = vld [vmem:[%s6] sm:$0xff]
  %v2753 = vld [vmem:[%s7] sm:$0xff]
  %2755 = vset.pattern.permute.xlu0 0
  %2756 = vperm.xlu0 %2755, %v2753
  %v2757 = vpop.permute.xlu0 %2756
  %2759 = vrot.lane.b32.xlu0 0.0, 35
  %v2760 = vpop.permute.xlu0 %2759
  %2761 = vrot.lane.b32.xlu0 %v2244, 35
  %v2762 = vpop.permute.xlu0 %2761
  %2763 = vrot.lane.b32.xlu0 %v2245, 35
  %v2764 = vpop.permute.xlu0 %2763
  %2765 = vrot.lane.b32.xlu0 %v2246, 35
  %v2766 = vpop.permute.xlu0 %2765
  %2767 = vrot.lane.b32.xlu0 %v2247, 35
  %v2768 = vpop.permute.xlu0 %2767
  %2769 = vrot.lane.b32.xlu0 %v2248, 35
  %v2770 = vpop.permute.xlu0 %2769
  %2771 = vrot.lane.b32.xlu0 %v2249, 35
  %v2772 = vpop.permute.xlu0 %2771
  %2773 = vrot.lane.b32.xlu0 %v2250, 35
  %v2774 = vpop.permute.xlu0 %2773
  %2775 = vrot.lane.b32.xlu0 %v2251, 35
  %v2776 = vpop.permute.xlu0 %2775
  %2777 = vrot.lane.b32.xlu0 %v2252, 35
  %v2778 = vpop.permute.xlu0 %2777
  %2779 = vrot.lane.b32.xlu0 %v2253, 35
  %v2780 = vpop.permute.xlu0 %2779
  %2781 = vrot.lane.b32.xlu0 %v2254, 35
  %v2782 = vpop.permute.xlu0 %2781
  %2783 = vrot.lane.b32.xlu0 %v2255, 35
  %v2784 = vpop.permute.xlu0 %2783
  %2785 = vrot.lane.b32.xlu0 %v2256, 35
  %v2786 = vpop.permute.xlu0 %2785
  %2787 = vrot.lane.b32.xlu0 %v2257, 35
  %v2788 = vpop.permute.xlu0 %2787
  %2789 = vrot.lane.b32.xlu0 %v2258, 35
  %v2790 = vpop.permute.xlu0 %2789
  %2791 = vrot.lane.b32.xlu0 %v2259, 35
  %v2792 = vpop.permute.xlu0 %2791
  %2793 = vrot.lane.b32.xlu0 %v2260, 35
  %v2794 = vpop.permute.xlu0 %2793
  %2795 = vrot.lane.b32.xlu0 %v2261, 35
  %v2796 = vpop.permute.xlu0 %2795
  %2797 = vrot.lane.b32.xlu0 %v2262, 35
  %v2798 = vpop.permute.xlu0 %2797
  %2799 = vrot.lane.b32.xlu0 %v2323, 35
  %v2800 = vpop.permute.xlu0 %2799
  %2801 = vrot.lane.b32.xlu0 %v2324, 35
  %v2802 = vpop.permute.xlu0 %2801
  %2803 = vrot.lane.b32.xlu0 %v2325, 35
  %v2804 = vpop.permute.xlu0 %2803
  %2805 = vrot.lane.b32.xlu0 %v2326, 35
  %v2806 = vpop.permute.xlu0 %2805
  %2807 = vrot.lane.b32.xlu0 %v2327, 35
  %v2808 = vpop.permute.xlu0 %2807
  %2809 = vrot.lane.b32.xlu0 %v2328, 35
  %v2810 = vpop.permute.xlu0 %2809
  %2811 = vrot.lane.b32.xlu0 %v2329, 35
  %v2812 = vpop.permute.xlu0 %2811
  %2813 = vrot.lane.b32.xlu0 %v2330, 35
  %v2814 = vpop.permute.xlu0 %2813
  %2815 = vrot.lane.b32.xlu0 %v2331, 35
  %v2816 = vpop.permute.xlu0 %2815
  %2817 = vrot.lane.b32.xlu0 %v2332, 35
  %v2818 = vpop.permute.xlu0 %2817
  %2819 = vrot.lane.b32.xlu0 %v2333, 35
  %v2820 = vpop.permute.xlu0 %2819
  %2821 = vrot.lane.b32.xlu0 %v2334, 35
  %v2822 = vpop.permute.xlu0 %2821
  %2823 = vrot.lane.b32.xlu0 %v2335, 35
  %v2824 = vpop.permute.xlu0 %2823
  %2825 = vrot.lane.b32.xlu0 %v2336, 35
  %v2826 = vpop.permute.xlu0 %2825
  %2827 = vrot.lane.b32.xlu0 %v2337, 35
  %v2828 = vpop.permute.xlu0 %2827
  %2829 = vrot.lane.b32.xlu0 %v2338, 35
  %v2830 = vpop.permute.xlu0 %2829
  %2831 = vrot.lane.b32.xlu0 %v2339, 35
  %v2832 = vpop.permute.xlu0 %2831
  %2833 = vrot.lane.b32.xlu0 %v2340, 35
  %v2834 = vpop.permute.xlu0 %2833
  %2835 = vrot.lane.b32.xlu0 %v2341, 35
  %v2836 = vpop.permute.xlu0 %2835
  %2837 = vrot.lane.b32.xlu0 %v2322, 35
  %v2838 = vpop.permute.xlu0 %2837
  %2839 = vrot.lane.b32.xlu0 %v2382, 35
  %v2840 = vpop.permute.xlu0 %2839
  %2841 = vrot.lane.b32.xlu0 %v2383, 35
  %v2842 = vpop.permute.xlu0 %2841
  %2843 = vrot.lane.b32.xlu0 %v2384, 35
  %v2844 = vpop.permute.xlu0 %2843
  %2845 = vrot.lane.b32.xlu0 %v2385, 35
  %v2846 = vpop.permute.xlu0 %2845
  %2847 = vrot.lane.b32.xlu0 %v2386, 35
  %v2848 = vpop.permute.xlu0 %2847
  %2849 = vrot.lane.b32.xlu0 %v2387, 35
  %v2850 = vpop.permute.xlu0 %2849
  %2851 = vrot.lane.b32.xlu0 %v2388, 35
  %v2852 = vpop.permute.xlu0 %2851
  %2853 = vrot.lane.b32.xlu0 %v2389, 35
  %v2854 = vpop.permute.xlu0 %2853
  %2855 = vrot.lane.b32.xlu0 %v2390, 35
  %v2856 = vpop.permute.xlu0 %2855
  %2857 = vrot.lane.b32.xlu0 %v2391, 35
  %v2858 = vpop.permute.xlu0 %2857
  %2859 = vrot.lane.b32.xlu0 %v2392, 35
  %v2860 = vpop.permute.xlu0 %2859
  %2861 = vrot.lane.b32.xlu0 %v2393, 35
  %v2862 = vpop.permute.xlu0 %2861
  %2863 = vrot.lane.b32.xlu0 %v2394, 35
  %v2864 = vpop.permute.xlu0 %2863
  %2865 = vrot.lane.b32.xlu0 %v2395, 35
  %v2866 = vpop.permute.xlu0 %2865
  %2867 = vrot.lane.b32.xlu0 %v2396, 35
  %v2868 = vpop.permute.xlu0 %2867
  %2869 = vrot.lane.b32.xlu0 %v2397, 35
  %v2870 = vpop.permute.xlu0 %2869
  %2871 = vrot.lane.b32.xlu0 %v2398, 35
  %v2872 = vpop.permute.xlu0 %2871
  %2873 = vrot.lane.b32.xlu0 %v2399, 35
  %v2874 = vpop.permute.xlu0 %2873
  %2875 = vrot.lane.b32.xlu0 %v2400, 35
  %v2876 = vpop.permute.xlu0 %2875
  %2877 = vrot.lane.b32.xlu0 %v2381, 35
  %v2878 = vpop.permute.xlu0 %2877
  %2879 = vrot.lane.b32.xlu0 %v2441, 35
  %v2880 = vpop.permute.xlu0 %2879
  %2881 = vrot.lane.b32.xlu0 %v2442, 35
  %v2882 = vpop.permute.xlu0 %2881
  %2883 = vrot.lane.b32.xlu0 %v2443, 35
  %v2884 = vpop.permute.xlu0 %2883
  %2885 = vrot.lane.b32.xlu0 %v2444, 35
  %v2886 = vpop.permute.xlu0 %2885
  %2887 = vrot.lane.b32.xlu0 %v2445, 35
  %v2888 = vpop.permute.xlu0 %2887
  %2889 = vrot.lane.b32.xlu0 %v2446, 35
  %v2890 = vpop.permute.xlu0 %2889
  %2891 = vrot.lane.b32.xlu0 %v2447, 35
  %v2892 = vpop.permute.xlu0 %2891
  %2893 = vrot.lane.b32.xlu0 %v2448, 35
  %v2894 = vpop.permute.xlu0 %2893
  %2895 = vrot.lane.b32.xlu0 %v2449, 35
  %v2896 = vpop.permute.xlu0 %2895
  %2897 = vrot.lane.b32.xlu0 %v2450, 35
  %v2898 = vpop.permute.xlu0 %2897
  %2899 = vrot.lane.b32.xlu0 %v2451, 35
  %v2900 = vpop.permute.xlu0 %2899
  %2901 = vrot.lane.b32.xlu0 %v2452, 35
  %v2902 = vpop.permute.xlu0 %2901
  %2903 = vrot.lane.b32.xlu0 %v2453, 35
  %v2904 = vpop.permute.xlu0 %2903
  %2905 = vrot.lane.b32.xlu0 %v2454, 35
  %v2906 = vpop.permute.xlu0 %2905
  %2907 = vrot.lane.b32.xlu0 %v2455, 35
  %v2908 = vpop.permute.xlu0 %2907
  %2909 = vrot.lane.b32.xlu0 %v2456, 35
  %v2910 = vpop.permute.xlu0 %2909
  %2911 = vrot.lane.b32.xlu0 %v2457, 35
  %v2912 = vpop.permute.xlu0 %2911
  %2913 = vrot.lane.b32.xlu0 %v2458, 35
  %v2914 = vpop.permute.xlu0 %2913
  %2915 = vrot.lane.b32.xlu0 %v2459, 35
  %v2916 = vpop.permute.xlu0 %2915
  %2917 = vrot.lane.b32.xlu0 %v2440, 35
  %v2918 = vpop.permute.xlu0 %2917
  %2919 = vrot.lane.b32.xlu0 %v2461, 35
  %v2920 = vpop.permute.xlu0 %2919
  %2921 = vrot.lane.b32.xlu0 %v2498, 35
  %v2922 = vpop.permute.xlu0 %2921
  %2923 = vrot.lane.b32.xlu0 %v2499, 35
  %v2924 = vpop.permute.xlu0 %2923
  %2925 = vrot.lane.b32.xlu0 %v2500, 35
  %v2926 = vpop.permute.xlu0 %2925
  %2927 = vrot.lane.b32.xlu0 %v2501, 35
  %v2928 = vpop.permute.xlu0 %2927
  %2929 = vrot.lane.b32.xlu0 %v2502, 35
  %v2930 = vpop.permute.xlu0 %2929
  %2931 = vrot.lane.b32.xlu0 %v2503, 35
  %v2932 = vpop.permute.xlu0 %2931
  %2933 = vrot.lane.b32.xlu0 %v2504, 35
  %v2934 = vpop.permute.xlu0 %2933
  %2935 = vrot.lane.b32.xlu0 %v2505, 35
  %v2936 = vpop.permute.xlu0 %2935
  %2937 = vrot.lane.b32.xlu0 %v2506, 35
  %v2938 = vpop.permute.xlu0 %2937
  %2939 = vrot.lane.b32.xlu0 %v2507, 35
  %v2940 = vpop.permute.xlu0 %2939
  %2941 = vrot.lane.b32.xlu0 %v2508, 35
  %v2942 = vpop.permute.xlu0 %2941
  %2943 = vrot.lane.b32.xlu0 %v2509, 35
  %v2944 = vpop.permute.xlu0 %2943
  %2945 = vrot.lane.b32.xlu0 %v2510, 35
  %v2946 = vpop.permute.xlu0 %2945
  %2947 = vrot.lane.b32.xlu0 %v2511, 35
  %v2948 = vpop.permute.xlu0 %2947
  %2949 = vrot.lane.b32.xlu0 %v2512, 35
  %v2950 = vpop.permute.xlu0 %2949
  %2951 = vrot.lane.b32.xlu0 %v2513, 35
  %v2952 = vpop.permute.xlu0 %2951
  %2953 = vrot.lane.b32.xlu0 %v2514, 35
  %v2954 = vpop.permute.xlu0 %2953
  %2955 = vrot.lane.b32.xlu0 %v2515, 35
  %v2956 = vpop.permute.xlu0 %2955
  %2957 = vrot.lane.b32.xlu0 %v2497, 35
  %v2958 = vpop.permute.xlu0 %2957
  %2959 = vrot.lane.b32.xlu0 %v2517, 35
  %v2960 = vpop.permute.xlu0 %2959
  %2961 = vrot.lane.b32.xlu0 %v2556, 35
  %v2962 = vpop.permute.xlu0 %2961
  %2963 = vrot.lane.b32.xlu0 %v2557, 35
  %v2964 = vpop.permute.xlu0 %2963
  %2965 = vrot.lane.b32.xlu0 %v2558, 35
  %v2966 = vpop.permute.xlu0 %2965
  %2967 = vrot.lane.b32.xlu0 %v2559, 35
  %v2968 = vpop.permute.xlu0 %2967
  %2969 = vrot.lane.b32.xlu0 %v2560, 35
  %v2970 = vpop.permute.xlu0 %2969
  %2971 = vrot.lane.b32.xlu0 %v2561, 35
  %v2972 = vpop.permute.xlu0 %2971
  %2973 = vrot.lane.b32.xlu0 %v2562, 35
  %v2974 = vpop.permute.xlu0 %2973
  %2975 = vrot.lane.b32.xlu0 %v2563, 35
  %v2976 = vpop.permute.xlu0 %2975
  %2977 = vrot.lane.b32.xlu0 %v2564, 35
  %v2978 = vpop.permute.xlu0 %2977
  %2979 = vrot.lane.b32.xlu0 %v2565, 35
  %v2980 = vpop.permute.xlu0 %2979
  %2981 = vrot.lane.b32.xlu0 %v2566, 35
  %v2982 = vpop.permute.xlu0 %2981
  %2983 = vrot.lane.b32.xlu0 %v2567, 35
  %v2984 = vpop.permute.xlu0 %2983
  %2985 = vrot.lane.b32.xlu0 %v2568, 35
  %v2986 = vpop.permute.xlu0 %2985
  %2987 = vrot.lane.b32.xlu0 %v2569, 35
  %v2988 = vpop.permute.xlu0 %2987
  %2989 = vrot.lane.b32.xlu0 %v2570, 35
  %v2990 = vpop.permute.xlu0 %2989
  %2991 = vrot.lane.b32.xlu0 %v2571, 35
  %v2992 = vpop.permute.xlu0 %2991
  %2993 = vrot.lane.b32.xlu0 %v2572, 35
  %v2994 = vpop.permute.xlu0 %2993
  %2995 = vrot.lane.b32.xlu0 %v2573, 35
  %v2996 = vpop.permute.xlu0 %2995
  %2997 = vrot.lane.b32.xlu0 %v2574, 35
  %v2998 = vpop.permute.xlu0 %2997
  %2999 = vrot.lane.b32.xlu0 %v2576, 35
  %v3000 = vpop.permute.xlu0 %2999
  %3001 = vrot.lane.b32.xlu0 %v2615, 35
  %v3002 = vpop.permute.xlu0 %3001
  %3003 = vrot.lane.b32.xlu0 %v2616, 35
  %v3004 = vpop.permute.xlu0 %3003
  %3005 = vrot.lane.b32.xlu0 %v2617, 35
  %v3006 = vpop.permute.xlu0 %3005
  %3007 = vrot.lane.b32.xlu0 %v2618, 35
  %v3008 = vpop.permute.xlu0 %3007
  %3009 = vrot.lane.b32.xlu0 %v2619, 35
  %v3010 = vpop.permute.xlu0 %3009
  %3011 = vrot.lane.b32.xlu0 %v2620, 35
  %v3012 = vpop.permute.xlu0 %3011
  %3013 = vrot.lane.b32.xlu0 %v2621, 35
  %v3014 = vpop.permute.xlu0 %3013
  %3015 = vrot.lane.b32.xlu0 %v2622, 35
  %v3016 = vpop.permute.xlu0 %3015
  %3017 = vrot.lane.b32.xlu0 %v2623, 35
  %v3018 = vpop.permute.xlu0 %3017
  %3019 = vrot.lane.b32.xlu0 %v2624, 35
  %v3020 = vpop.permute.xlu0 %3019
  %3021 = vrot.lane.b32.xlu0 %v2625, 35
  %v3022 = vpop.permute.xlu0 %3021
  %3023 = vrot.lane.b32.xlu0 %v2626, 35
  %v3024 = vpop.permute.xlu0 %3023
  %3025 = vrot.lane.b32.xlu0 %v2627, 35
  %v3026 = vpop.permute.xlu0 %3025
  %3027 = vrot.lane.b32.xlu0 %v2628, 35
  %v3028 = vpop.permute.xlu0 %3027
  %3029 = vrot.lane.b32.xlu0 %v2629, 35
  %v3030 = vpop.permute.xlu0 %3029
  %3031 = vrot.lane.b32.xlu0 %v2630, 35
  %v3032 = vpop.permute.xlu0 %3031
  %3033 = vrot.lane.b32.xlu0 %v2631, 35
  %v3034 = vpop.permute.xlu0 %3033
  %3035 = vrot.lane.b32.xlu0 %v2632, 35
  %v3036 = vpop.permute.xlu0 %3035
  %3037 = vrot.lane.b32.xlu0 %v2633, 35
  %v3038 = vpop.permute.xlu0 %3037
  %3039 = vrot.lane.b32.xlu0 %v2635, 35
  %v3040 = vpop.permute.xlu0 %3039
  %3041 = vrot.lane.b32.xlu0 %v2674, 35
  %v3042 = vpop.permute.xlu0 %3041
  %3043 = vrot.lane.b32.xlu0 %v2675, 35
  %v3044 = vpop.permute.xlu0 %3043
  %3045 = vrot.lane.b32.xlu0 %v2676, 35
  %v3046 = vpop.permute.xlu0 %3045
  %3047 = vrot.lane.b32.xlu0 %v2677, 35
  %v3048 = vpop.permute.xlu0 %3047
  %3049 = vrot.lane.b32.xlu0 %v2678, 35
  %v3050 = vpop.permute.xlu0 %3049
  %3051 = vrot.lane.b32.xlu0 %v2679, 35
  %v3052 = vpop.permute.xlu0 %3051
  %3053 = vrot.lane.b32.xlu0 %v2680, 35
  %v3054 = vpop.permute.xlu0 %3053
  %3055 = vrot.lane.b32.xlu0 %v2681, 35
  %v3056 = vpop.permute.xlu0 %3055
  %3057 = vrot.lane.b32.xlu0 %v2682, 35
  %v3058 = vpop.permute.xlu0 %3057
  %3059 = vrot.lane.b32.xlu0 %v2683, 35
  %v3060 = vpop.permute.xlu0 %3059
  %3061 = vrot.lane.b32.xlu0 %v2684, 35
  %v3062 = vpop.permute.xlu0 %3061
  %3063 = vrot.lane.b32.xlu0 %v2685, 35
  %v3064 = vpop.permute.xlu0 %3063
  %3065 = vrot.lane.b32.xlu0 %v2686, 35
  %v3066 = vpop.permute.xlu0 %3065
  %3067 = vrot.lane.b32.xlu0 %v2687, 35
  %v3068 = vpop.permute.xlu0 %3067
  %3069 = vrot.lane.b32.xlu0 %v2688, 35
  %v3070 = vpop.permute.xlu0 %3069
  %3071 = vrot.lane.b32.xlu0 %v2689, 35
  %v3072 = vpop.permute.xlu0 %3071
  %3073 = vrot.lane.b32.xlu0 %v2690, 35
  %v3074 = vpop.permute.xlu0 %3073
  %3075 = vrot.lane.b32.xlu0 %v2691, 35
  %v3076 = vpop.permute.xlu0 %3075
  %3077 = vrot.lane.b32.xlu0 %v2692, 35
  %v3078 = vpop.permute.xlu0 %3077
  %3079 = vrot.lane.b32.xlu0 %v2694, 35
  %v3080 = vpop.permute.xlu0 %3079
  %3081 = vrot.lane.b32.xlu0 %v2733, 35
  %v3082 = vpop.permute.xlu0 %3081
  %3083 = vrot.lane.b32.xlu0 %v2734, 35
  %v3084 = vpop.permute.xlu0 %3083
  %3085 = vrot.lane.b32.xlu0 %v2735, 35
  %v3086 = vpop.permute.xlu0 %3085
  %3087 = vrot.lane.b32.xlu0 %v2736, 35
  %v3088 = vpop.permute.xlu0 %3087
  %3089 = vrot.lane.b32.xlu0 %v2737, 35
  %v3090 = vpop.permute.xlu0 %3089
  %3091 = vrot.lane.b32.xlu0 %v2738, 35
  %v3092 = vpop.permute.xlu0 %3091
  %3093 = vrot.lane.b32.xlu0 %v2739, 35
  %v3094 = vpop.permute.xlu0 %3093
  %3095 = vrot.lane.b32.xlu0 %v2740, 35
  %v3096 = vpop.permute.xlu0 %3095
  %3097 = vrot.lane.b32.xlu0 %v2741, 35
  %v3098 = vpop.permute.xlu0 %3097
  %3099 = vrot.lane.b32.xlu0 %v2742, 35
  %v3100 = vpop.permute.xlu0 %3099
  %3101 = vrot.lane.b32.xlu0 %v2743, 35
  %v3102 = vpop.permute.xlu0 %3101
  %3103 = vrot.lane.b32.xlu0 %v2744, 35
  %v3104 = vpop.permute.xlu0 %3103
  %3105 = vrot.lane.b32.xlu0 %v2745, 35
  %v3106 = vpop.permute.xlu0 %3105
  %3107 = vrot.lane.b32.xlu0 %v2746, 35
  %v3108 = vpop.permute.xlu0 %3107
  %3109 = vrot.lane.b32.xlu0 %v2747, 35
  %v3110 = vpop.permute.xlu0 %3109
  %3111 = vrot.lane.b32.xlu0 %v2748, 35
  %v3112 = vpop.permute.xlu0 %3111
  %3113 = vrot.lane.b32.xlu0 %v2749, 35
  %v3114 = vpop.permute.xlu0 %3113
  %3115 = vrot.lane.b32.xlu0 %v2750, 35
  %v3116 = vpop.permute.xlu0 %3115
  %3117 = vrot.lane.b32.xlu0 %v2751, 35
  %v3118 = vpop.permute.xlu0 %3117
  %v3119 = vsel %vm933, %v2760, %v2762
  %v3120 = vsel %vm933, %v2762, %v2764
  %v3121 = vsel %vm933, %v2764, %v2766
  %v3122 = vsel %vm933, %v2766, %v2768
  %v3123 = vsel %vm933, %v2768, %v2770
  %v3124 = vsel %vm933, %v2770, %v2772
  %v3125 = vsel %vm933, %v2772, %v2774
  %v3126 = vsel %vm933, %v2774, %v2776
  %v3127 = vsel %vm933, %v2776, %v2778
  %v3128 = vsel %vm933, %v2778, %v2780
  %v3129 = vsel %vm933, %v2780, %v2782
  %v3130 = vsel %vm933, %v2782, %v2784
  %v3131 = vsel %vm933, %v2784, %v2786
  %v3132 = vsel %vm933, %v2786, %v2788
  %v3133 = vsel %vm933, %v2788, %v2790
  %v3134 = vsel %vm933, %v2790, %v2792
  %v3135 = vsel %vm933, %v2792, %v2794
  %v3136 = vsel %vm933, %v2794, %v2796
  %v3137 = vsel %vm933, %v2796, %v2798
  %v3138 = vsel %vm933, %v2800, %v2802
  %v3139 = vsel %vm933, %v2802, %v2804
  %v3140 = vsel %vm933, %v2804, %v2806
  %v3141 = vsel %vm933, %v2806, %v2808
  %v3142 = vsel %vm933, %v2808, %v2810
  %v3143 = vsel %vm933, %v2810, %v2812
  %v3144 = vsel %vm933, %v2812, %v2814
  %v3145 = vsel %vm933, %v2814, %v2816
  %v3146 = vsel %vm933, %v2816, %v2818
  %v3147 = vsel %vm933, %v2818, %v2820
  %v3148 = vsel %vm933, %v2820, %v2822
  %v3149 = vsel %vm933, %v2822, %v2824
  %v3150 = vsel %vm933, %v2824, %v2826
  %v3151 = vsel %vm933, %v2826, %v2828
  %v3152 = vsel %vm933, %v2828, %v2830
  %v3153 = vsel %vm933, %v2830, %v2832
  %v3154 = vsel %vm933, %v2832, %v2834
  %v3155 = vsel %vm933, %v2834, %v2836
  %v3156 = vsel %vm933, %v2836, %v2838
  %v3157 = vsel %vm933, %v2840, %v2842
  %v3158 = vsel %vm933, %v2842, %v2844
  %v3159 = vsel %vm933, %v2844, %v2846
  %v3160 = vsel %vm933, %v2846, %v2848
  %v3161 = vsel %vm933, %v2848, %v2850
  %v3162 = vsel %vm933, %v2850, %v2852
  %v3163 = vsel %vm933, %v2852, %v2854
  %v3164 = vsel %vm933, %v2854, %v2856
  %v3165 = vsel %vm933, %v2856, %v2858
  %v3166 = vsel %vm933, %v2858, %v2860
  %v3167 = vsel %vm933, %v2860, %v2862
  %v3168 = vsel %vm933, %v2862, %v2864
  %v3169 = vsel %vm933, %v2864, %v2866
  %v3170 = vsel %vm933, %v2866, %v2868
  %v3171 = vsel %vm933, %v2868, %v2870
  %v3172 = vsel %vm933, %v2870, %v2872
  %v3173 = vsel %vm933, %v2872, %v2874
  %v3174 = vsel %vm933, %v2874, %v2876
  %v3175 = vsel %vm933, %v2876, %v2878
  %v3176 = vsel %vm933, %v2880, %v2882
  %v3177 = vsel %vm933, %v2882, %v2884
  %v3178 = vsel %vm933, %v2884, %v2886
  %v3179 = vsel %vm933, %v2886, %v2888
  %v3180 = vsel %vm933, %v2888, %v2890
  %v3181 = vsel %vm933, %v2890, %v2892
  %v3182 = vsel %vm933, %v2892, %v2894
  %v3183 = vsel %vm933, %v2894, %v2896
  %v3184 = vsel %vm933, %v2896, %v2898
  %v3185 = vsel %vm933, %v2898, %v2900
  %v3186 = vsel %vm933, %v2900, %v2902
  %v3187 = vsel %vm933, %v2902, %v2904
  %v3188 = vsel %vm933, %v2904, %v2906
  %v3189 = vsel %vm933, %v2906, %v2908
  %v3190 = vsel %vm933, %v2908, %v2910
  %v3191 = vsel %vm933, %v2910, %v2912
  %v3192 = vsel %vm933, %v2912, %v2914
  %v3193 = vsel %vm933, %v2914, %v2916
  %v3194 = vsel %vm933, %v2916, %v2918
  %v3195 = vsel %vm933, %v2920, %v2922
  %v3196 = vsel %vm933, %v2922, %v2924
  %v3197 = vsel %vm933, %v2924, %v2926
  %v3198 = vsel %vm933, %v2926, %v2928
  %v3199 = vsel %vm933, %v2928, %v2930
  %v3200 = vsel %vm933, %v2930, %v2932
  %v3201 = vsel %vm933, %v2932, %v2934
  %v3202 = vsel %vm933, %v2934, %v2936
  %v3203 = vsel %vm933, %v2936, %v2938
  %v3204 = vsel %vm933, %v2938, %v2940
  %v3205 = vsel %vm933, %v2940, %v2942
  %v3206 = vsel %vm933, %v2942, %v2944
  %v3207 = vsel %vm933, %v2944, %v2946
  %v3208 = vsel %vm933, %v2946, %v2948
  %v3209 = vsel %vm933, %v2948, %v2950
  %v3210 = vsel %vm933, %v2950, %v2952
  %v3211 = vsel %vm933, %v2952, %v2954
  %v3212 = vsel %vm933, %v2954, %v2956
  %v3213 = vsel %vm933, %v2956, %v2958
  %v3214 = vsel %vm933, %v2960, %v2962
  %v3215 = vsel %vm933, %v2962, %v2964
  %v3216 = vsel %vm933, %v2964, %v2966
  %v3217 = vsel %vm933, %v2966, %v2968
  %v3218 = vsel %vm933, %v2968, %v2970
  %v3219 = vsel %vm933, %v2970, %v2972
  %v3220 = vsel %vm933, %v2972, %v2974
  %v3221 = vsel %vm933, %v2974, %v2976
  %v3222 = vsel %vm933, %v2976, %v2978
  %v3223 = vsel %vm933, %v2978, %v2980
  %v3224 = vsel %vm933, %v2980, %v2982
  %v3225 = vsel %vm933, %v2982, %v2984
  %v3226 = vsel %vm933, %v2984, %v2986
  %v3227 = vsel %vm933, %v2986, %v2988
  %v3228 = vsel %vm933, %v2988, %v2990
  %v3229 = vsel %vm933, %v2990, %v2992
  %v3230 = vsel %vm933, %v2992, %v2994
  %v3231 = vsel %vm933, %v2994, %v2996
  %v3232 = vsel %vm933, %v2996, %v2998
  %v3233 = vsel %vm933, %v3000, %v3002
  %v3234 = vsel %vm933, %v3002, %v3004
  %v3235 = vsel %vm933, %v3004, %v3006
  %v3236 = vsel %vm933, %v3006, %v3008
  %v3237 = vsel %vm933, %v3008, %v3010
  %v3238 = vsel %vm933, %v3010, %v3012
  %v3239 = vsel %vm933, %v3012, %v3014
  %v3240 = vsel %vm933, %v3014, %v3016
  %v3241 = vsel %vm933, %v3016, %v3018
  %v3242 = vsel %vm933, %v3018, %v3020
  %v3243 = vsel %vm933, %v3020, %v3022
  %v3244 = vsel %vm933, %v3022, %v3024
  %v3245 = vsel %vm933, %v3024, %v3026
  %v3246 = vsel %vm933, %v3026, %v3028
  %v3247 = vsel %vm933, %v3028, %v3030
  %v3248 = vsel %vm933, %v3030, %v3032
  %v3249 = vsel %vm933, %v3032, %v3034
  %v3250 = vsel %vm933, %v3034, %v3036
  %v3251 = vsel %vm933, %v3036, %v3038
  %v3252 = vsel %vm933, %v3040, %v3042
  %v3253 = vsel %vm933, %v3042, %v3044
  %v3254 = vsel %vm933, %v3044, %v3046
  %v3255 = vsel %vm933, %v3046, %v3048
  %v3256 = vsel %vm933, %v3048, %v3050
  %v3257 = vsel %vm933, %v3050, %v3052
  %v3258 = vsel %vm933, %v3052, %v3054
  %v3259 = vsel %vm933, %v3054, %v3056
  %v3260 = vsel %vm933, %v3056, %v3058
  %v3261 = vsel %vm933, %v3058, %v3060
  %v3262 = vsel %vm933, %v3060, %v3062
  %v3263 = vsel %vm933, %v3062, %v3064
  %v3264 = vsel %vm933, %v3064, %v3066
  %v3265 = vsel %vm933, %v3066, %v3068
  %v3266 = vsel %vm933, %v3068, %v3070
  %v3267 = vsel %vm933, %v3070, %v3072
  %v3268 = vsel %vm933, %v3072, %v3074
  %v3269 = vsel %vm933, %v3074, %v3076
  %v3270 = vsel %vm933, %v3076, %v3078
  %v3271 = vsel %vm933, %v3080, %v3082
  %v3272 = vsel %vm933, %v3082, %v3084
  %v3273 = vsel %vm933, %v3084, %v3086
  %v3274 = vsel %vm933, %v3086, %v3088
  %v3275 = vsel %vm933, %v3088, %v3090
  %v3276 = vsel %vm933, %v3090, %v3092
  %v3277 = vsel %vm933, %v3092, %v3094
  %v3278 = vsel %vm933, %v3094, %v3096
  %v3279 = vsel %vm933, %v3096, %v3098
  %v3280 = vsel %vm933, %v3098, %v3100
  %v3281 = vsel %vm933, %v3100, %v3102
  %v3282 = vsel %vm933, %v3102, %v3104
  %v3283 = vsel %vm933, %v3104, %v3106
  %v3284 = vsel %vm933, %v3106, %v3108
  %v3285 = vsel %vm933, %v3108, %v3110
  %v3286 = vsel %vm933, %v3110, %v3112
  %v3287 = vsel %vm933, %v3112, %v3114
  %v3288 = vsel %vm933, %v3114, %v3116
  %v3289 = vsel %vm933, %v3116, %v3118
  %v3462 = vsel %vm1276, %v2752, 0
  %3464 = vmatprep.subr.mxu0 0.0
  %3465 = vmatpush1.msra.mxu0 0.0
  %3466 = vmatprep.subr.mxu0 0.0
  %3467 = vmatpush1.msra.mxu0 0.0
  %3468 = vmatprep.subr.mxu0 0.0
  %3469 = vmatpush1.msra.mxu0 0.0
  %3470 = vmatprep.subr.mxu0 0.0
  %3471 = vmatpush1.msra.mxu0 0.0
  %3472 = vmatprep.subr.mxu0 0.0
  %3473 = vmatpush1.msra.mxu0 0.0
  %3474 = vmatprep.subr.mxu0 0.0
  %3475 = vmatpush1.msra.mxu0 0.0
  %3476 = vmatprep.subr.mxu0 0.0
  %3477 = vmatpush1.msra.mxu0 0.0
  %3478 = vmatprep.subr.mxu0 %v3272
  %3479 = vmatpush1.msra.mxu0 %v3271
  %3480 = vmatprep.subr.mxu0 %v3253
  %3481 = vmatpush1.msra.mxu0 %v3252
  %3482 = vmatprep.subr.mxu0 %v3234
  %3483 = vmatpush1.msra.mxu0 %v3233
  %3484 = vmatprep.subr.mxu0 %v3215
  %3485 = vmatpush1.msra.mxu0 %v3214
  %3486 = vmatprep.subr.mxu0 %v3196
  %3487 = vmatpush1.msra.mxu0 %v3195
  %3488 = vmatprep.subr.mxu0 %v3177
  %3489 = vmatpush1.msra.mxu0 %v3176
  %3490 = vmatprep.subr.mxu0 %v3158
  %3491 = vmatpush1.msra.mxu0 %v3157
  %3492 = vmatprep.subr.mxu0 %v3139
  %3493 = vmatpush1.msra.mxu0 %v3138
  %3494 = vmatprep.subr.mxu0 %v3120
  %3495 = vmatpush1.msra.mxu0 %v3119
  %3496 = vmatprep.subr.mxu0 0.0
  %3497 = vmatpush2.msra.mxu0 0.0
  %3498 = vmatprep.subr.mxu0 0.0
  %3499 = vmatpush2.msra.mxu0 0.0
  %3500 = vmatprep.subr.mxu0 0.0
  %3501 = vmatpush2.msra.mxu0 0.0
  %3502 = vmatprep.subr.mxu0 0.0
  %3503 = vmatpush2.msra.mxu0 0.0
  %3504 = vmatprep.subr.mxu0 0.0
  %3505 = vmatpush2.msra.mxu0 0.0
  %3506 = vmatprep.subr.mxu0 0.0
  %3507 = vmatpush2.msra.mxu0 0.0
  %3508 = vmatprep.subr.mxu0 0.0
  %3509 = vmatpush2.msra.mxu0 0.0
  %3510 = vmatprep.subr.mxu0 0.0
  %3511 = vmatpush2.msra.mxu0 0.0
  %3512 = vmatprep.subr.mxu0 0.0
  %3513 = vmatpush2.msra.mxu0 0.0
  %3514 = vmatprep.subr.mxu0 0.0
  %3515 = vmatpush2.msra.mxu0 0.0
  %3516 = vmatprep.subr.mxu0 0.0
  %3517 = vmatpush2.msra.mxu0 0.0
  %3518 = vmatprep.subr.mxu0 0.0
  %3519 = vmatpush2.msra.mxu0 0.0
  %3520 = vmatprep.subr.mxu0 0.0
  %3521 = vmatpush2.msra.mxu0 0.0
  %3522 = vmatprep.subr.mxu0 0.0
  %3523 = vmatpush2.msra.mxu0 0.0
  %3524 = vmatprep.subr.mxu0 0.0
  %3525 = vmatpush2.msra.mxu0 0.0
  %3526 = vmatprep.subr.mxu0 0.0
  %3527 = vmatpush2.msra.mxu0 0.0
  %3528 = vmatprep.mubr.f32.mxu0 0.0
  %3529 = vmatmul.mubr.f32.gmra.mxu0 %v3462
  %v3530 = vpop.f32.mrf.mxu0
  %v3531 = vadd.f32 %v2757, %v3530
  %v3532 = vpop.f32.mrf.mxu0
  %v3533 = vadd.f32 %v2757, %v3532
  %3534 = vdwg.mxu0
  %3535 = vmatprep.subr.mxu0 0.0
  %3536 = vmatpush1.msra.mxu0 0.0
  %3537 = vmatprep.subr.mxu0 0.0
  %3538 = vmatpush1.msra.mxu0 0.0
  %3539 = vmatprep.subr.mxu0 0.0
  %3540 = vmatpush1.msra.mxu0 0.0
  %3541 = vmatprep.subr.mxu0 0.0
  %3542 = vmatpush1.msra.mxu0 0.0
  %3543 = vmatprep.subr.mxu0 0.0
  %3544 = vmatpush1.msra.mxu0 0.0
  %3545 = vmatprep.subr.mxu0 0.0
  %3546 = vmatpush1.msra.mxu0 0.0
  %3547 = vmatprep.subr.mxu0 0.0
  %3548 = vmatpush1.msra.mxu0 0.0
  %3549 = vmatprep.subr.mxu0 %v3274
  %3550 = vmatpush1.msra.mxu0 %v3273
  %3551 = vmatprep.subr.mxu0 %v3255
  %3552 = vmatpush1.msra.mxu0 %v3254
  %3553 = vmatprep.subr.mxu0 %v3236
  %3554 = vmatpush1.msra.mxu0 %v3235
  %3555 = vmatprep.subr.mxu0 %v3217
  %3556 = vmatpush1.msra.mxu0 %v3216
  %3557 = vmatprep.subr.mxu0 %v3198
  %3558 = vmatpush1.msra.mxu0 %v3197
  %3559 = vmatprep.subr.mxu0 %v3179
  %3560 = vmatpush1.msra.mxu0 %v3178
  %3561 = vmatprep.subr.mxu0 %v3160
  %3562 = vmatpush1.msra.mxu0 %v3159
  %3563 = vmatprep.subr.mxu0 %v3141
  %3564 = vmatpush1.msra.mxu0 %v3140
  %3565 = vmatprep.subr.mxu0 %v3122
  %3566 = vmatpush1.msra.mxu0 %v3121
  %3567 = vmatprep.subr.mxu0 0.0
  %3568 = vmatpush2.msra.mxu0 0.0
  %3569 = vmatprep.subr.mxu0 0.0
  %3570 = vmatpush2.msra.mxu0 0.0
  %3571 = vmatprep.subr.mxu0 0.0
  %3572 = vmatpush2.msra.mxu0 0.0
  %3573 = vmatprep.subr.mxu0 0.0
  %3574 = vmatpush2.msra.mxu0 0.0
  %3575 = vmatprep.subr.mxu0 0.0
  %3576 = vmatpush2.msra.mxu0 0.0
  %3577 = vmatprep.subr.mxu0 0.0
  %3578 = vmatpush2.msra.mxu0 0.0
  %3579 = vmatprep.subr.mxu0 0.0
  %3580 = vmatpush2.msra.mxu0 0.0
  %3581 = vmatprep.subr.mxu0 0.0
  %3582 = vmatpush2.msra.mxu0 0.0
  %3583 = vmatprep.subr.mxu0 0.0
  %3584 = vmatpush2.msra.mxu0 0.0
  %3585 = vmatprep.subr.mxu0 0.0
  %3586 = vmatpush2.msra.mxu0 0.0
  %3587 = vmatprep.subr.mxu0 0.0
  %3588 = vmatpush2.msra.mxu0 0.0
  %3589 = vmatprep.subr.mxu0 0.0
  %3590 = vmatpush2.msra.mxu0 0.0
  %3591 = vmatprep.subr.mxu0 0.0
  %3592 = vmatpush2.msra.mxu0 0.0
  %3593 = vmatprep.subr.mxu0 0.0
  %3594 = vmatpush2.msra.mxu0 0.0
  %3595 = vmatprep.subr.mxu0 0.0
  %3596 = vmatpush2.msra.mxu0 0.0
  %3597 = vmatprep.subr.mxu0 0.0
  %3598 = vmatpush2.msra.mxu0 0.0
  %3599 = vmatprep.mubr.f32.mxu0 0.0
  %3600 = vmatmul.mubr.f32.gmra.mxu0 %v3462
  %v3601 = vpop.f32.mrf.mxu0
  %v3602 = vadd.f32 %v2757, %v3601
  %v3603 = vpop.f32.mrf.mxu0
  %v3604 = vadd.f32 %v2757, %v3603
  %3605 = vdwg.mxu0
  %3606 = vmatprep.subr.mxu0 0.0
  %3607 = vmatpush1.msra.mxu0 0.0
  %3608 = vmatprep.subr.mxu0 0.0
  %3609 = vmatpush1.msra.mxu0 0.0
  %3610 = vmatprep.subr.mxu0 0.0
  %3611 = vmatpush1.msra.mxu0 0.0
  %3612 = vmatprep.subr.mxu0 0.0
  %3613 = vmatpush1.msra.mxu0 0.0
  %3614 = vmatprep.subr.mxu0 0.0
  %3615 = vmatpush1.msra.mxu0 0.0
  %3616 = vmatprep.subr.mxu0 0.0
  %3617 = vmatpush1.msra.mxu0 0.0
  %3618 = vmatprep.subr.mxu0 0.0
  %3619 = vmatpush1.msra.mxu0 0.0
  %3620 = vmatprep.subr.mxu0 %v3276
  %3621 = vmatpush1.msra.mxu0 %v3275
  %3622 = vmatprep.subr.mxu0 %v3257
  %3623 = vmatpush1.msra.mxu0 %v3256
  %3624 = vmatprep.subr.mxu0 %v3238
  %3625 = vmatpush1.msra.mxu0 %v3237
  %3626 = vmatprep.subr.mxu0 %v3219
  %3627 = vmatpush1.msra.mxu0 %v3218
  %3628 = vmatprep.subr.mxu0 %v3200
  %3629 = vmatpush1.msra.mxu0 %v3199
  %3630 = vmatprep.subr.mxu0 %v3181
  %3631 = vmatpush1.msra.mxu0 %v3180
  %3632 = vmatprep.subr.mxu0 %v3162
  %3633 = vmatpush1.msra.mxu0 %v3161
  %3634 = vmatprep.subr.mxu0 %v3143
  %3635 = vmatpush1.msra.mxu0 %v3142
  %3636 = vmatprep.subr.mxu0 %v3124
  %3637 = vmatpush1.msra.mxu0 %v3123
  %3638 = vmatprep.subr.mxu0 0.0
  %3639 = vmatpush2.msra.mxu0 0.0
  %3640 = vmatprep.subr.mxu0 0.0
  %3641 = vmatpush2.msra.mxu0 0.0
  %3642 = vmatprep.subr.mxu0 0.0
  %3643 = vmatpush2.msra.mxu0 0.0
  %3644 = vmatprep.subr.mxu0 0.0
  %3645 = vmatpush2.msra.mxu0 0.0
  %3646 = vmatprep.subr.mxu0 0.0
  %3647 = vmatpush2.msra.mxu0 0.0
  %3648 = vmatprep.subr.mxu0 0.0
  %3649 = vmatpush2.msra.mxu0 0.0
  %3650 = vmatprep.subr.mxu0 0.0
  %3651 = vmatpush2.msra.mxu0 0.0
  %3652 = vmatprep.subr.mxu0 0.0
  %3653 = vmatpush2.msra.mxu0 0.0
  %3654 = vmatprep.subr.mxu0 0.0
  %3655 = vmatpush2.msra.mxu0 0.0
  %3656 = vmatprep.subr.mxu0 0.0
  %3657 = vmatpush2.msra.mxu0 0.0
  %3658 = vmatprep.subr.mxu0 0.0
  %3659 = vmatpush2.msra.mxu0 0.0
  %3660 = vmatprep.subr.mxu0 0.0
  %3661 = vmatpush2.msra.mxu0 0.0
  %3662 = vmatprep.subr.mxu0 0.0
  %3663 = vmatpush2.msra.mxu0 0.0
  %3664 = vmatprep.subr.mxu0 0.0
  %3665 = vmatpush2.msra.mxu0 0.0
  %3666 = vmatprep.subr.mxu0 0.0
  %3667 = vmatpush2.msra.mxu0 0.0
  %3668 = vmatprep.subr.mxu0 0.0
  %3669 = vmatpush2.msra.mxu0 0.0
  %3670 = vmatprep.mubr.f32.mxu0 0.0
  %3671 = vmatmul.mubr.f32.gmra.mxu0 %v3462
  %v3672 = vpop.f32.mrf.mxu0
  %v3673 = vadd.f32 %v2757, %v3672
  %v3674 = vpop.f32.mrf.mxu0
  %v3675 = vadd.f32 %v2757, %v3674
  %3676 = vdwg.mxu0
  %3677 = vmatprep.subr.mxu0 0.0
  %3678 = vmatpush1.msra.mxu0 0.0
  %3679 = vmatprep.subr.mxu0 0.0
  %3680 = vmatpush1.msra.mxu0 0.0
  %3681 = vmatprep.subr.mxu0 0.0
  %3682 = vmatpush1.msra.mxu0 0.0
  %3683 = vmatprep.subr.mxu0 0.0
  %3684 = vmatpush1.msra.mxu0 0.0
  %3685 = vmatprep.subr.mxu0 0.0
  %3686 = vmatpush1.msra.mxu0 0.0
  %3687 = vmatprep.subr.mxu0 0.0
  %3688 = vmatpush1.msra.mxu0 0.0
  %3689 = vmatprep.subr.mxu0 0.0
  %3690 = vmatpush1.msra.mxu0 0.0
  %3691 = vmatprep.subr.mxu0 %v3278
  %3692 = vmatpush1.msra.mxu0 %v3277
  %3693 = vmatprep.subr.mxu0 %v3259
  %3694 = vmatpush1.msra.mxu0 %v3258
  %3695 = vmatprep.subr.mxu0 %v3240
  %3696 = vmatpush1.msra.mxu0 %v3239
  %3697 = vmatprep.subr.mxu0 %v3221
  %3698 = vmatpush1.msra.mxu0 %v3220
  %3699 = vmatprep.subr.mxu0 %v3202
  %3700 = vmatpush1.msra.mxu0 %v3201
  %3701 = vmatprep.subr.mxu0 %v3183
  %3702 = vmatpush1.msra.mxu0 %v3182
  %3703 = vmatprep.subr.mxu0 %v3164
  %3704 = vmatpush1.msra.mxu0 %v3163
  %3705 = vmatprep.subr.mxu0 %v3145
  %3706 = vmatpush1.msra.mxu0 %v3144
  %3707 = vmatprep.subr.mxu0 %v3126
  %3708 = vmatpush1.msra.mxu0 %v3125
  %3709 = vmatprep.subr.mxu0 0.0
  %3710 = vmatpush2.msra.mxu0 0.0
  %3711 = vmatprep.subr.mxu0 0.0
  %3712 = vmatpush2.msra.mxu0 0.0
  %3713 = vmatprep.subr.mxu0 0.0
  %3714 = vmatpush2.msra.mxu0 0.0
  %3715 = vmatprep.subr.mxu0 0.0
  %3716 = vmatpush2.msra.mxu0 0.0
  %3717 = vmatprep.subr.mxu0 0.0
  %3718 = vmatpush2.msra.mxu0 0.0
  %3719 = vmatprep.subr.mxu0 0.0
  %3720 = vmatpush2.msra.mxu0 0.0
  %3721 = vmatprep.subr.mxu0 0.0
  %3722 = vmatpush2.msra.mxu0 0.0
  %3723 = vmatprep.subr.mxu0 0.0
  %3724 = vmatpush2.msra.mxu0 0.0
  %3725 = vmatprep.subr.mxu0 0.0
  %3726 = vmatpush2.msra.mxu0 0.0
  %3727 = vmatprep.subr.mxu0 0.0
  %3728 = vmatpush2.msra.mxu0 0.0
  %3729 = vmatprep.subr.mxu0 0.0
  %3730 = vmatpush2.msra.mxu0 0.0
  %3731 = vmatprep.subr.mxu0 0.0
  %3732 = vmatpush2.msra.mxu0 0.0
  %3733 = vmatprep.subr.mxu0 0.0
  %3734 = vmatpush2.msra.mxu0 0.0
  %3735 = vmatprep.subr.mxu0 0.0
  %3736 = vmatpush2.msra.mxu0 0.0
  %3737 = vmatprep.subr.mxu0 0.0
  %3738 = vmatpush2.msra.mxu0 0.0
  %3739 = vmatprep.subr.mxu0 0.0
  %3740 = vmatpush2.msra.mxu0 0.0
  %3741 = vmatprep.mubr.f32.mxu0 0.0
  %3742 = vmatmul.mubr.f32.gmra.mxu0 %v3462
  %v3743 = vpop.f32.mrf.mxu0
  %v3744 = vadd.f32 %v2757, %v3743
  %v3745 = vpop.f32.mrf.mxu0
  %v3746 = vadd.f32 %v2757, %v3745
  %3747 = vdwg.mxu0
  %3748 = vmatprep.subr.mxu0 0.0
  %3749 = vmatpush1.msra.mxu0 0.0
  %3750 = vmatprep.subr.mxu0 0.0
  %3751 = vmatpush1.msra.mxu0 0.0
  %3752 = vmatprep.subr.mxu0 0.0
  %3753 = vmatpush1.msra.mxu0 0.0
  %3754 = vmatprep.subr.mxu0 0.0
  %3755 = vmatpush1.msra.mxu0 0.0
  %3756 = vmatprep.subr.mxu0 0.0
  %3757 = vmatpush1.msra.mxu0 0.0
  %3758 = vmatprep.subr.mxu0 0.0
  %3759 = vmatpush1.msra.mxu0 0.0
  %3760 = vmatprep.subr.mxu0 0.0
  %3761 = vmatpush1.msra.mxu0 0.0
  %3762 = vmatprep.subr.mxu0 %v3280
  %3763 = vmatpush1.msra.mxu0 %v3279
  %3764 = vmatprep.subr.mxu0 %v3261
  %3765 = vmatpush1.msra.mxu0 %v3260
  %3766 = vmatprep.subr.mxu0 %v3242
  %3767 = vmatpush1.msra.mxu0 %v3241
  %3768 = vmatprep.subr.mxu0 %v3223
  %3769 = vmatpush1.msra.mxu0 %v3222
  %3770 = vmatprep.subr.mxu0 %v3204
  %3771 = vmatpush1.msra.mxu0 %v3203
  %3772 = vmatprep.subr.mxu0 %v3185
  %3773 = vmatpush1.msra.mxu0 %v3184
  %3774 = vmatprep.subr.mxu0 %v3166
  %3775 = vmatpush1.msra.mxu0 %v3165
  %3776 = vmatprep.subr.mxu0 %v3147
  %3777 = vmatpush1.msra.mxu0 %v3146
  %3778 = vmatprep.subr.mxu0 %v3128
  %3779 = vmatpush1.msra.mxu0 %v3127
  %3780 = vmatprep.subr.mxu0 0.0
  %3781 = vmatpush2.msra.mxu0 0.0
  %3782 = vmatprep.subr.mxu0 0.0
  %3783 = vmatpush2.msra.mxu0 0.0
  %3784 = vmatprep.subr.mxu0 0.0
  %3785 = vmatpush2.msra.mxu0 0.0
  %3786 = vmatprep.subr.mxu0 0.0
  %3787 = vmatpush2.msra.mxu0 0.0
  %3788 = vmatprep.subr.mxu0 0.0
  %3789 = vmatpush2.msra.mxu0 0.0
  %3790 = vmatprep.subr.mxu0 0.0
  %3791 = vmatpush2.msra.mxu0 0.0
  %3792 = vmatprep.subr.mxu0 0.0
  %3793 = vmatpush2.msra.mxu0 0.0
  %3794 = vmatprep.subr.mxu0 0.0
  %3795 = vmatpush2.msra.mxu0 0.0
  %3796 = vmatprep.subr.mxu0 0.0
  %3797 = vmatpush2.msra.mxu0 0.0
  %3798 = vmatprep.subr.mxu0 0.0
  %3799 = vmatpush2.msra.mxu0 0.0
  %3800 = vmatprep.subr.mxu0 0.0
  %3801 = vmatpush2.msra.mxu0 0.0
  %3802 = vmatprep.subr.mxu0 0.0
  %3803 = vmatpush2.msra.mxu0 0.0
  %3804 = vmatprep.subr.mxu0 0.0
  %3805 = vmatpush2.msra.mxu0 0.0
  %3806 = vmatprep.subr.mxu0 0.0
  %3807 = vmatpush2.msra.mxu0 0.0
  %3808 = vmatprep.subr.mxu0 0.0
  %3809 = vmatpush2.msra.mxu0 0.0
  %3810 = vmatprep.subr.mxu0 0.0
  %3811 = vmatpush2.msra.mxu0 0.0
  %3812 = vmatprep.mubr.f32.mxu0 0.0
  %3813 = vmatmul.mubr.f32.gmra.mxu0 %v3462
  %v3814 = vpop.f32.mrf.mxu0
  %v3815 = vadd.f32 %v2757, %v3814
  %v3816 = vpop.f32.mrf.mxu0
  %v3817 = vadd.f32 %v2757, %v3816
  %3818 = vdwg.mxu0
  %3819 = vmatprep.subr.mxu0 0.0
  %3820 = vmatpush1.msra.mxu0 0.0
  %3821 = vmatprep.subr.mxu0 0.0
  %3822 = vmatpush1.msra.mxu0 0.0
  %3823 = vmatprep.subr.mxu0 0.0
  %3824 = vmatpush1.msra.mxu0 0.0
  %3825 = vmatprep.subr.mxu0 0.0
  %3826 = vmatpush1.msra.mxu0 0.0
  %3827 = vmatprep.subr.mxu0 0.0
  %3828 = vmatpush1.msra.mxu0 0.0
  %3829 = vmatprep.subr.mxu0 0.0
  %3830 = vmatpush1.msra.mxu0 0.0
  %3831 = vmatprep.subr.mxu0 0.0
  %3832 = vmatpush1.msra.mxu0 0.0
  %3833 = vmatprep.subr.mxu0 %v3282
  %3834 = vmatpush1.msra.mxu0 %v3281
  %3835 = vmatprep.subr.mxu0 %v3263
  %3836 = vmatpush1.msra.mxu0 %v3262
  %3837 = vmatprep.subr.mxu0 %v3244
  %3838 = vmatpush1.msra.mxu0 %v3243
  %3839 = vmatprep.subr.mxu0 %v3225
  %3840 = vmatpush1.msra.mxu0 %v3224
  %3841 = vmatprep.subr.mxu0 %v3206
  %3842 = vmatpush1.msra.mxu0 %v3205
  %3843 = vmatprep.subr.mxu0 %v3187
  %3844 = vmatpush1.msra.mxu0 %v3186
  %3845 = vmatprep.subr.mxu0 %v3168
  %3846 = vmatpush1.msra.mxu0 %v3167
  %3847 = vmatprep.subr.mxu0 %v3149
  %3848 = vmatpush1.msra.mxu0 %v3148
  %3849 = vmatprep.subr.mxu0 %v3130
  %3850 = vmatpush1.msra.mxu0 %v3129
  %3851 = vmatprep.subr.mxu0 0.0
  %3852 = vmatpush2.msra.mxu0 0.0
  %3853 = vmatprep.subr.mxu0 0.0
  %3854 = vmatpush2.msra.mxu0 0.0
  %3855 = vmatprep.subr.mxu0 0.0
  %3856 = vmatpush2.msra.mxu0 0.0
  %3857 = vmatprep.subr.mxu0 0.0
  %3858 = vmatpush2.msra.mxu0 0.0
  %3859 = vmatprep.subr.mxu0 0.0
  %3860 = vmatpush2.msra.mxu0 0.0
  %3861 = vmatprep.subr.mxu0 0.0
  %3862 = vmatpush2.msra.mxu0 0.0
  %3863 = vmatprep.subr.mxu0 0.0
  %3864 = vmatpush2.msra.mxu0 0.0
  %3865 = vmatprep.subr.mxu0 0.0
  %3866 = vmatpush2.msra.mxu0 0.0
  %3867 = vmatprep.subr.mxu0 0.0
  %3868 = vmatpush2.msra.mxu0 0.0
  %3869 = vmatprep.subr.mxu0 0.0
  %3870 = vmatpush2.msra.mxu0 0.0
  %3871 = vmatprep.subr.mxu0 0.0
  %3872 = vmatpush2.msra.mxu0 0.0
  %3873 = vmatprep.subr.mxu0 0.0
  %3874 = vmatpush2.msra.mxu0 0.0
  %3875 = vmatprep.subr.mxu0 0.0
  %3876 = vmatpush2.msra.mxu0 0.0
  %3877 = vmatprep.subr.mxu0 0.0
  %3878 = vmatpush2.msra.mxu0 0.0
  %3879 = vmatprep.subr.mxu0 0.0
  %3880 = vmatpush2.msra.mxu0 0.0
  %3881 = vmatprep.subr.mxu0 0.0
  %3882 = vmatpush2.msra.mxu0 0.0
  %3883 = vmatprep.mubr.f32.mxu0 0.0
  %3884 = vmatmul.mubr.f32.gmra.mxu0 %v3462
  %v3885 = vpop.f32.mrf.mxu0
  %v3886 = vadd.f32 %v2757, %v3885
  %v3887 = vpop.f32.mrf.mxu0
  %v3888 = vadd.f32 %v2757, %v3887
  %3889 = vdwg.mxu0
  %3890 = vmatprep.subr.mxu0 0.0
  %3891 = vmatpush1.msra.mxu0 0.0
  %3892 = vmatprep.subr.mxu0 0.0
  %3893 = vmatpush1.msra.mxu0 0.0
  %3894 = vmatprep.subr.mxu0 0.0
  %3895 = vmatpush1.msra.mxu0 0.0
  %3896 = vmatprep.subr.mxu0 0.0
  %3897 = vmatpush1.msra.mxu0 0.0
  %3898 = vmatprep.subr.mxu0 0.0
  %3899 = vmatpush1.msra.mxu0 0.0
  %3900 = vmatprep.subr.mxu0 0.0
  %3901 = vmatpush1.msra.mxu0 0.0
  %3902 = vmatprep.subr.mxu0 0.0
  %3903 = vmatpush1.msra.mxu0 0.0
  %3904 = vmatprep.subr.mxu0 %v3284
  %3905 = vmatpush1.msra.mxu0 %v3283
  %3906 = vmatprep.subr.mxu0 %v3265
  %3907 = vmatpush1.msra.mxu0 %v3264
  %3908 = vmatprep.subr.mxu0 %v3246
  %3909 = vmatpush1.msra.mxu0 %v3245
  %3910 = vmatprep.subr.mxu0 %v3227
  %3911 = vmatpush1.msra.mxu0 %v3226
  %3912 = vmatprep.subr.mxu0 %v3208
  %3913 = vmatpush1.msra.mxu0 %v3207
  %3914 = vmatprep.subr.mxu0 %v3189
  %3915 = vmatpush1.msra.mxu0 %v3188
  %3916 = vmatprep.subr.mxu0 %v3170
  %3917 = vmatpush1.msra.mxu0 %v3169
  %3918 = vmatprep.subr.mxu0 %v3151
  %3919 = vmatpush1.msra.mxu0 %v3150
  %3920 = vmatprep.subr.mxu0 %v3132
  %3921 = vmatpush1.msra.mxu0 %v3131
  %3922 = vmatprep.subr.mxu0 0.0
  %3923 = vmatpush2.msra.mxu0 0.0
  %3924 = vmatprep.subr.mxu0 0.0
  %3925 = vmatpush2.msra.mxu0 0.0
  %3926 = vmatprep.subr.mxu0 0.0
  %3927 = vmatpush2.msra.mxu0 0.0
  %3928 = vmatprep.subr.mxu0 0.0
  %3929 = vmatpush2.msra.mxu0 0.0
  %3930 = vmatprep.subr.mxu0 0.0
  %3931 = vmatpush2.msra.mxu0 0.0
  %3932 = vmatprep.subr.mxu0 0.0
  %3933 = vmatpush2.msra.mxu0 0.0
  %3934 = vmatprep.subr.mxu0 0.0
  %3935 = vmatpush2.msra.mxu0 0.0
  %3936 = vmatprep.subr.mxu0 0.0
  %3937 = vmatpush2.msra.mxu0 0.0
  %3938 = vmatprep.subr.mxu0 0.0
  %3939 = vmatpush2.msra.mxu0 0.0
  %3940 = vmatprep.subr.mxu0 0.0
  %3941 = vmatpush2.msra.mxu0 0.0
  %3942 = vmatprep.subr.mxu0 0.0
  %3943 = vmatpush2.msra.mxu0 0.0
  %3944 = vmatprep.subr.mxu0 0.0
  %3945 = vmatpush2.msra.mxu0 0.0
  %3946 = vmatprep.subr.mxu0 0.0
  %3947 = vmatpush2.msra.mxu0 0.0
  %3948 = vmatprep.subr.mxu0 0.0
  %3949 = vmatpush2.msra.mxu0 0.0
  %3950 = vmatprep.subr.mxu0 0.0
  %3951 = vmatpush2.msra.mxu0 0.0
  %3952 = vmatprep.subr.mxu0 0.0
  %3953 = vmatpush2.msra.mxu0 0.0
  %3954 = vmatprep.mubr.f32.mxu0 0.0
  %3955 = vmatmul.mubr.f32.gmra.mxu0 %v3462
  %v3956 = vpop.f32.mrf.mxu0
  %v3957 = vadd.f32 %v2757, %v3956
  %v3958 = vpop.f32.mrf.mxu0
  %v3959 = vadd.f32 %v2757, %v3958
  %3960 = vdwg.mxu0
  %3961 = vmatprep.subr.mxu0 0.0
  %3962 = vmatpush1.msra.mxu0 0.0
  %3963 = vmatprep.subr.mxu0 0.0
  %3964 = vmatpush1.msra.mxu0 0.0
  %3965 = vmatprep.subr.mxu0 0.0
  %3966 = vmatpush1.msra.mxu0 0.0
  %3967 = vmatprep.subr.mxu0 0.0
  %3968 = vmatpush1.msra.mxu0 0.0
  %3969 = vmatprep.subr.mxu0 0.0
  %3970 = vmatpush1.msra.mxu0 0.0
  %3971 = vmatprep.subr.mxu0 0.0
  %3972 = vmatpush1.msra.mxu0 0.0
  %3973 = vmatprep.subr.mxu0 0.0
  %3974 = vmatpush1.msra.mxu0 0.0
  %3975 = vmatprep.subr.mxu0 %v3286
  %3976 = vmatpush1.msra.mxu0 %v3285
  %3977 = vmatprep.subr.mxu0 %v3267
  %3978 = vmatpush1.msra.mxu0 %v3266
  %3979 = vmatprep.subr.mxu0 %v3248
  %3980 = vmatpush1.msra.mxu0 %v3247
  %3981 = vmatprep.subr.mxu0 %v3229
  %3982 = vmatpush1.msra.mxu0 %v3228
  %3983 = vmatprep.subr.mxu0 %v3210
  %3984 = vmatpush1.msra.mxu0 %v3209
  %3985 = vmatprep.subr.mxu0 %v3191
  %3986 = vmatpush1.msra.mxu0 %v3190
  %3987 = vmatprep.subr.mxu0 %v3172
  %3988 = vmatpush1.msra.mxu0 %v3171
  %3989 = vmatprep.subr.mxu0 %v3153
  %3990 = vmatpush1.msra.mxu0 %v3152
  %3991 = vmatprep.subr.mxu0 %v3134
  %3992 = vmatpush1.msra.mxu0 %v3133
  %3993 = vmatprep.subr.mxu0 0.0
  %3994 = vmatpush2.msra.mxu0 0.0
  %3995 = vmatprep.subr.mxu0 0.0
  %3996 = vmatpush2.msra.mxu0 0.0
  %3997 = vmatprep.subr.mxu0 0.0
  %3998 = vmatpush2.msra.mxu0 0.0
  %3999 = vmatprep.subr.mxu0 0.0
  %4000 = vmatpush2.msra.mxu0 0.0
  %4001 = vmatprep.subr.mxu0 0.0
  %4002 = vmatpush2.msra.mxu0 0.0
  %4003 = vmatprep.subr.mxu0 0.0
  %4004 = vmatpush2.msra.mxu0 0.0
  %4005 = vmatprep.subr.mxu0 0.0
  %4006 = vmatpush2.msra.mxu0 0.0
  %4007 = vmatprep.subr.mxu0 0.0
  %4008 = vmatpush2.msra.mxu0 0.0
  %4009 = vmatprep.subr.mxu0 0.0
  %4010 = vmatpush2.msra.mxu0 0.0
  %4011 = vmatprep.subr.mxu0 0.0
  %4012 = vmatpush2.msra.mxu0 0.0
  %4013 = vmatprep.subr.mxu0 0.0
  %4014 = vmatpush2.msra.mxu0 0.0
  %4015 = vmatprep.subr.mxu0 0.0
  %4016 = vmatpush2.msra.mxu0 0.0
  %4017 = vmatprep.subr.mxu0 0.0
  %4018 = vmatpush2.msra.mxu0 0.0
  %4019 = vmatprep.subr.mxu0 0.0
  %4020 = vmatpush2.msra.mxu0 0.0
  %4021 = vmatprep.subr.mxu0 0.0
  %4022 = vmatpush2.msra.mxu0 0.0
  %4023 = vmatprep.subr.mxu0 0.0
  %4024 = vmatpush2.msra.mxu0 0.0
  %4025 = vmatprep.mubr.f32.mxu0 0.0
  %4026 = vmatmul.mubr.f32.gmra.mxu0 %v3462
  %v4027 = vpop.f32.mrf.mxu0
  %v4028 = vadd.f32 %v2757, %v4027
  %v4029 = vpop.f32.mrf.mxu0
  %v4030 = vadd.f32 %v2757, %v4029
  %4031 = vdwg.mxu0
  %4032 = vmatprep.subr.mxu0 0.0
  %4033 = vmatpush1.msra.mxu0 0.0
  %4034 = vmatprep.subr.mxu0 0.0
  %4035 = vmatpush1.msra.mxu0 0.0
  %4036 = vmatprep.subr.mxu0 0.0
  %4037 = vmatpush1.msra.mxu0 0.0
  %4038 = vmatprep.subr.mxu0 0.0
  %4039 = vmatpush1.msra.mxu0 0.0
  %4040 = vmatprep.subr.mxu0 0.0
  %4041 = vmatpush1.msra.mxu0 0.0
  %4042 = vmatprep.subr.mxu0 0.0
  %4043 = vmatpush1.msra.mxu0 0.0
  %4044 = vmatprep.subr.mxu0 0.0
  %4045 = vmatpush1.msra.mxu0 0.0
  %4046 = vmatprep.subr.mxu0 %v3288
  %4047 = vmatpush1.msra.mxu0 %v3287
  %4048 = vmatprep.subr.mxu0 %v3269
  %4049 = vmatpush1.msra.mxu0 %v3268
  %4050 = vmatprep.subr.mxu0 %v3250
  %4051 = vmatpush1.msra.mxu0 %v3249
  %4052 = vmatprep.subr.mxu0 %v3231
  %4053 = vmatpush1.msra.mxu0 %v3230
  %4054 = vmatprep.subr.mxu0 %v3212
  %4055 = vmatpush1.msra.mxu0 %v3211
  %4056 = vmatprep.subr.mxu0 %v3193
  %4057 = vmatpush1.msra.mxu0 %v3192
  %4058 = vmatprep.subr.mxu0 %v3174
  %4059 = vmatpush1.msra.mxu0 %v3173
  %4060 = vmatprep.subr.mxu0 %v3155
  %4061 = vmatpush1.msra.mxu0 %v3154
  %4062 = vmatprep.subr.mxu0 %v3136
  %4063 = vmatpush1.msra.mxu0 %v3135
  %4064 = vmatprep.subr.mxu0 0.0
  %4065 = vmatpush2.msra.mxu0 0.0
  %4066 = vmatprep.subr.mxu0 0.0
  %4067 = vmatpush2.msra.mxu0 0.0
  %4068 = vmatprep.subr.mxu0 0.0
  %4069 = vmatpush2.msra.mxu0 0.0
  %4070 = vmatprep.subr.mxu0 0.0
  %4071 = vmatpush2.msra.mxu0 0.0
  %4072 = vmatprep.subr.mxu0 0.0
  %4073 = vmatpush2.msra.mxu0 0.0
  %4074 = vmatprep.subr.mxu0 0.0
  %4075 = vmatpush2.msra.mxu0 0.0
  %4076 = vmatprep.subr.mxu0 0.0
  %4077 = vmatpush2.msra.mxu0 0.0
  %4078 = vmatprep.subr.mxu0 0.0
  %4079 = vmatpush2.msra.mxu0 0.0
  %4080 = vmatprep.subr.mxu0 0.0
  %4081 = vmatpush2.msra.mxu0 0.0
  %4082 = vmatprep.subr.mxu0 0.0
  %4083 = vmatpush2.msra.mxu0 0.0
  %4084 = vmatprep.subr.mxu0 0.0
  %4085 = vmatpush2.msra.mxu0 0.0
  %4086 = vmatprep.subr.mxu0 0.0
  %4087 = vmatpush2.msra.mxu0 0.0
  %4088 = vmatprep.subr.mxu0 0.0
  %4089 = vmatpush2.msra.mxu0 0.0
  %4090 = vmatprep.subr.mxu0 0.0
  %4091 = vmatpush2.msra.mxu0 0.0
  %4092 = vmatprep.subr.mxu0 0.0
  %4093 = vmatpush2.msra.mxu0 0.0
  %4094 = vmatprep.subr.mxu0 0.0
  %4095 = vmatpush2.msra.mxu0 0.0
  %4096 = vmatprep.mubr.f32.mxu0 0.0
  %4097 = vmatmul.mubr.f32.gmra.mxu0 %v3462
  %v4098 = vpop.f32.mrf.mxu0
  %v4099 = vadd.f32 %v2757, %v4098
  %v4100 = vpop.f32.mrf.mxu0
  %v4101 = vadd.f32 %v2757, %v4100
  %4102 = vdwg.mxu0
  %4103 = vmatprep.subr.mxu0 0.0
  %4104 = vmatpush1.msra.mxu0 0.0
  %4105 = vmatprep.subr.mxu0 0.0
  %4106 = vmatpush1.msra.mxu0 0.0
  %4107 = vmatprep.subr.mxu0 0.0
  %4108 = vmatpush1.msra.mxu0 0.0
  %4109 = vmatprep.subr.mxu0 0.0
  %4110 = vmatpush1.msra.mxu0 0.0
  %4111 = vmatprep.subr.mxu0 0.0
  %4112 = vmatpush1.msra.mxu0 0.0
  %4113 = vmatprep.subr.mxu0 0.0
  %4114 = vmatpush1.msra.mxu0 0.0
  %4115 = vmatprep.subr.mxu0 0.0
  %4116 = vmatpush1.msra.mxu0 0.0
  %4117 = vmatprep.subr.mxu0 0.0
  %4118 = vmatpush1.msra.mxu0 %v3289
  %4119 = vmatprep.subr.mxu0 0.0
  %4120 = vmatpush1.msra.mxu0 %v3270
  %4121 = vmatprep.subr.mxu0 0.0
  %4122 = vmatpush1.msra.mxu0 %v3251
  %4123 = vmatprep.subr.mxu0 0.0
  %4124 = vmatpush1.msra.mxu0 %v3232
  %4125 = vmatprep.subr.mxu0 0.0
  %4126 = vmatpush1.msra.mxu0 %v3213
  %4127 = vmatprep.subr.mxu0 0.0
  %4128 = vmatpush1.msra.mxu0 %v3194
  %4129 = vmatprep.subr.mxu0 0.0
  %4130 = vmatpush1.msra.mxu0 %v3175
  %4131 = vmatprep.subr.mxu0 0.0
  %4132 = vmatpush1.msra.mxu0 %v3156
  %4133 = vmatprep.subr.mxu0 0.0
  %4134 = vmatpush1.msra.mxu0 %v3137
  %4135 = vmatprep.subr.mxu0 0.0
  %4136 = vmatpush2.msra.mxu0 0.0
  %4137 = vmatprep.subr.mxu0 0.0
  %4138 = vmatpush2.msra.mxu0 0.0
  %4139 = vmatprep.subr.mxu0 0.0
  %4140 = vmatpush2.msra.mxu0 0.0
  %4141 = vmatprep.subr.mxu0 0.0
  %4142 = vmatpush2.msra.mxu0 0.0
  %4143 = vmatprep.subr.mxu0 0.0
  %4144 = vmatpush2.msra.mxu0 0.0
  %4145 = vmatprep.subr.mxu0 0.0
  %4146 = vmatpush2.msra.mxu0 0.0
  %4147 = vmatprep.subr.mxu0 0.0
  %4148 = vmatpush2.msra.mxu0 0.0
  %4149 = vmatprep.subr.mxu0 0.0
  %4150 = vmatpush2.msra.mxu0 0.0
  %4151 = vmatprep.subr.mxu0 0.0
  %4152 = vmatpush2.msra.mxu0 0.0
  %4153 = vmatprep.subr.mxu0 0.0
  %4154 = vmatpush2.msra.mxu0 0.0
  %4155 = vmatprep.subr.mxu0 0.0
  %4156 = vmatpush2.msra.mxu0 0.0
  %4157 = vmatprep.subr.mxu0 0.0
  %4158 = vmatpush2.msra.mxu0 0.0
  %4159 = vmatprep.subr.mxu0 0.0
  %4160 = vmatpush2.msra.mxu0 0.0
  %4161 = vmatprep.subr.mxu0 0.0
  %4162 = vmatpush2.msra.mxu0 0.0
  %4163 = vmatprep.subr.mxu0 0.0
  %4164 = vmatpush2.msra.mxu0 0.0
  %4165 = vmatprep.subr.mxu0 0.0
  %4166 = vmatpush2.msra.mxu0 0.0
  %4167 = vmatprep.mubr.f32.mxu0 0.0
  %4168 = vmatmul.mubr.f32.gmra.mxu0 %v3462
  %v4169 = vpop.f32.mrf.mxu0
  %v4170 = vadd.f32 %v2757, %v4169
  %v4171 = vpop.f32.mrf.mxu0
  %4172 = vdwg.mxu0
  %v4173 = vmax.f32 %v3531, 0.0
  %v4174 = vmax.f32 %v3533, 0.0
  %v4175 = vmax.f32 %v3602, 0.0
  %v4176 = vmax.f32 %v3604, 0.0
  %v4177 = vmax.f32 %v3673, 0.0
  %v4178 = vmax.f32 %v3675, 0.0
  %v4179 = vmax.f32 %v3744, 0.0
  %v4180 = vmax.f32 %v3746, 0.0
  %v4181 = vmax.f32 %v3815, 0.0
  %v4182 = vmax.f32 %v3817, 0.0
  %v4183 = vmax.f32 %v3886, 0.0
  %v4184 = vmax.f32 %v3888, 0.0
  %v4185 = vmax.f32 %v3957, 0.0
  %v4186 = vmax.f32 %v3959, 0.0
  %v4187 = vmax.f32 %v4028, 0.0
  %v4188 = vmax.f32 %v4030, 0.0
  %v4189 = vmax.f32 %v4099, 0.0
  %v4190 = vmax.f32 %v4101, 0.0
  %v4191 = vmax.f32 %v4170, 0.0
  %v4192 = vsel %vm2087, %v4173, 0.0
  %v4193 = vsel %vm2088, %v4174, 0.0
  %v4194 = vsel %vm2089, %v4175, 0.0
  %v4195 = vsel %vm2090, %v4176, 0.0
  %v4196 = vsel %vm2091, %v4177, 0.0
  %v4197 = vsel %vm2092, %v4178, 0.0
  %v4198 = vsel %vm2093, %v4179, 0.0
  %v4199 = vsel %vm2094, %v4180, 0.0
  %v4200 = vsel %vm2095, %v4181, 0.0
  %v4201 = vsel %vm2096, %v4182, 0.0
  %v4202 = vsel %vm2097, %v4183, 0.0
  %v4203 = vsel %vm2098, %v4184, 0.0
  %v4204 = vsel %vm2099, %v4185, 0.0
  %v4205 = vsel %vm2100, %v4186, 0.0
  %v4206 = vsel %vm2101, %v4187, 0.0
  %v4207 = vsel %vm2102, %v4188, 0.0
  %v4208 = vsel %vm2103, %v4189, 0.0
  %v4209 = vsel %vm2104, %v4190, 0.0
  %v4210 = vsel %vm2105, %v4191, 0.0
  %v4211 = vadd.f32 %v4192, %v4193
  %v4212 = vadd.f32 %v4211, %v4194
  %v4213 = vadd.f32 %v4212, %v4195
  %v4214 = vadd.f32 %v4213, %v4196
  %v4215 = vadd.f32 %v4214, %v4197
  %v4216 = vadd.f32 %v4215, %v4198
  %v4217 = vadd.f32 %v4216, %v4199
  %v4218 = vadd.f32 %v4217, %v4200
  %v4219 = vadd.f32 %v4218, %v4201
  %v4220 = vadd.f32 %v4219, %v4202
  %v4221 = vadd.f32 %v4220, %v4203
  %v4222 = vadd.f32 %v4221, %v4204
  %v4223 = vadd.f32 %v4222, %v4205
  %v4224 = vadd.f32 %v4223, %v4206
  %v4225 = vadd.f32 %v4224, %v4207
  %v4226 = vadd.f32 %v4225, %v4208
  %v4227 = vadd.f32 %v4226, %v4209
  %v4228 = vadd.f32 %v4227, %v4210
  %4229 = vadd.xlane.f32.xlu0 %v4228
  %v4230 = vpop.xlane.xlu0 %4229
  %v4231 = vmul.f32 %v4192, %v4192
  %v4232 = vmul.f32 %v4193, %v4193
  %v4233 = vmul.f32 %v4194, %v4194
  %v4234 = vmul.f32 %v4195, %v4195
  %v4235 = vmul.f32 %v4196, %v4196
  %v4236 = vmul.f32 %v4197, %v4197
  %v4237 = vmul.f32 %v4198, %v4198
  %v4238 = vmul.f32 %v4199, %v4199
  %v4239 = vmul.f32 %v4200, %v4200
  %v4240 = vmul.f32 %v4201, %v4201
  %v4241 = vmul.f32 %v4202, %v4202
  %v4242 = vmul.f32 %v4203, %v4203
  %v4243 = vmul.f32 %v4204, %v4204
  %v4244 = vmul.f32 %v4205, %v4205
  %v4245 = vmul.f32 %v4206, %v4206
  %v4246 = vmul.f32 %v4207, %v4207
  %v4247 = vmul.f32 %v4208, %v4208
  %v4248 = vmul.f32 %v4209, %v4209
  %v4249 = vmul.f32 %v4210, %v4210
  %v4250 = vadd.f32 %v4231, %v4232
  %v4251 = vadd.f32 %v4250, %v4233
  %v4252 = vadd.f32 %v4251, %v4234
  %v4253 = vadd.f32 %v4252, %v4235
  %v4254 = vadd.f32 %v4253, %v4236
  %v4255 = vadd.f32 %v4254, %v4237
  %v4256 = vadd.f32 %v4255, %v4238
  %v4257 = vadd.f32 %v4256, %v4239
  %v4258 = vadd.f32 %v4257, %v4240
  %v4259 = vadd.f32 %v4258, %v4241
  %v4260 = vadd.f32 %v4259, %v4242
  %v4261 = vadd.f32 %v4260, %v4243
  %v4262 = vadd.f32 %v4261, %v4244
  %v4263 = vadd.f32 %v4262, %v4245
  %v4264 = vadd.f32 %v4263, %v4246
  %v4265 = vadd.f32 %v4264, %v4247
  %v4266 = vadd.f32 %v4265, %v4248
  %v4267 = vadd.f32 %v4266, %v4249
  %4268 = vadd.xlane.f32.xlu0 %v4267
  %v4269 = vpop.xlane.xlu0 %4268
  %v4270 = vmul.f32 %v4230, 0.00048828125
  %v4271 = vmul.f32 %v4269, 0.00048828125
  %v4272 = vmul.f32 %v4270, %v4270
  %v4273 = vsub.f32 %v4271, %v4272
  %v4274 = vmax.f32 %v4273, 0.0
  %v4275 = vld [vmem:[%s8] sm:$0xff]
  %v4276 = vadd.f32 %v4274, 1e-05
  %v4277 = vrsqrt.pop %v4276
  %v4278 = vmul.f32 %v4275, %v4277
  %v4279 = vld [vmem:[%s9] sm:$0xff]
  %v4280 = vmul.f32 %v4270, %v4278
  %v4281 = vsub.f32 %v4279, %v4280
  %4283 = vset.pattern.permute.xlu0 0
  %4284 = vperm.xlu0 %4283, %v4278
  %v4285 = vpop.permute.xlu0 %4284
  %v4287 = vmul.f32 %v4285, %v4192
  %v4288 = vmul.f32 %v4285, %v4193
  %v4289 = vmul.f32 %v4285, %v4194
  %v4290 = vmul.f32 %v4285, %v4195
  %v4291 = vmul.f32 %v4285, %v4196
  %v4292 = vmul.f32 %v4285, %v4197
  %v4293 = vmul.f32 %v4285, %v4198
  %v4294 = vmul.f32 %v4285, %v4199
  %v4295 = vmul.f32 %v4285, %v4200
  %v4296 = vmul.f32 %v4285, %v4201
  %v4297 = vmul.f32 %v4285, %v4202
  %v4298 = vmul.f32 %v4285, %v4203
  %v4299 = vmul.f32 %v4285, %v4204
  %v4300 = vmul.f32 %v4285, %v4205
  %v4301 = vmul.f32 %v4285, %v4206
  %v4302 = vmul.f32 %v4285, %v4207
  %v4303 = vmul.f32 %v4285, %v4208
  %v4304 = vmul.f32 %v4285, %v4209
  %v4305 = vmul.f32 %v4285, %v4210
  %4307 = vset.pattern.permute.xlu0 0
  %4308 = vperm.xlu0 %4307, %v4281
  %v4309 = vpop.permute.xlu0 %4308
  %v4311 = vadd.f32 %v4287, %v4309
  %v4312 = vadd.f32 %v4288, %v4309
  %v4313 = vadd.f32 %v4289, %v4309
  %v4314 = vadd.f32 %v4290, %v4309
  %v4315 = vadd.f32 %v4291, %v4309
  %v4316 = vadd.f32 %v4292, %v4309
  %v4317 = vadd.f32 %v4293, %v4309
  %v4318 = vadd.f32 %v4294, %v4309
  %v4319 = vadd.f32 %v4295, %v4309
  %v4320 = vadd.f32 %v4296, %v4309
  %v4321 = vadd.f32 %v4297, %v4309
  %v4322 = vadd.f32 %v4298, %v4309
  %v4323 = vadd.f32 %v4299, %v4309
  %v4324 = vadd.f32 %v4300, %v4309
  %v4325 = vadd.f32 %v4301, %v4309
  %v4326 = vadd.f32 %v4302, %v4309
  %v4327 = vadd.f32 %v4303, %v4309
  %v4328 = vadd.f32 %v4304, %v4309
  %v4329 = vadd.f32 %v4305, %v4309
  %v4330 = vsel %vm2087, %v4311, 0.0
  %v4331 = vsel %vm2088, %v4312, 0.0
  %v4332 = vsel %vm2089, %v4313, 0.0
  %v4333 = vsel %vm2090, %v4314, 0.0
  %v4334 = vsel %vm2091, %v4315, 0.0
  %v4335 = vsel %vm2092, %v4316, 0.0
  %v4336 = vsel %vm2093, %v4317, 0.0
  %v4337 = vsel %vm2094, %v4318, 0.0
  %v4338 = vsel %vm2095, %v4319, 0.0
  %v4339 = vsel %vm2096, %v4320, 0.0
  %v4340 = vsel %vm2097, %v4321, 0.0
  %v4341 = vsel %vm2098, %v4322, 0.0
  %v4342 = vsel %vm2099, %v4323, 0.0
  %v4343 = vsel %vm2100, %v4324, 0.0
  %v4344 = vsel %vm2101, %v4325, 0.0
  %v4345 = vsel %vm2102, %v4326, 0.0
  %v4346 = vsel %vm2103, %v4327, 0.0
  %v4347 = vsel %vm2104, %v4328, 0.0
  %v4348 = vsel %vm2105, %v4329, 0.0
  %4368 = vrot.lane.b32.xlu0 %v4330, 127
  %v4369 = vpop.permute.xlu0 %4368
  %4370 = vrot.lane.b32.xlu0 %v4331, 127
  %v4371 = vpop.permute.xlu0 %4370
  %4372 = vrot.lane.b32.xlu0 %v4332, 127
  %v4373 = vpop.permute.xlu0 %4372
  %4374 = vrot.lane.b32.xlu0 %v4333, 127
  %v4375 = vpop.permute.xlu0 %4374
  %4376 = vrot.lane.b32.xlu0 %v4334, 127
  %v4377 = vpop.permute.xlu0 %4376
  %4378 = vrot.lane.b32.xlu0 %v4335, 127
  %v4379 = vpop.permute.xlu0 %4378
  %4380 = vrot.lane.b32.xlu0 %v4336, 127
  %v4381 = vpop.permute.xlu0 %4380
  %4382 = vrot.lane.b32.xlu0 %v4337, 127
  %v4383 = vpop.permute.xlu0 %4382
  %4384 = vrot.lane.b32.xlu0 %v4338, 127
  %v4385 = vpop.permute.xlu0 %4384
  %4386 = vrot.lane.b32.xlu0 %v4339, 127
  %v4387 = vpop.permute.xlu0 %4386
  %4388 = vrot.lane.b32.xlu0 %v4340, 127
  %v4389 = vpop.permute.xlu0 %4388
  %4390 = vrot.lane.b32.xlu0 %v4341, 127
  %v4391 = vpop.permute.xlu0 %4390
  %4392 = vrot.lane.b32.xlu0 %v4342, 127
  %v4393 = vpop.permute.xlu0 %4392
  %4394 = vrot.lane.b32.xlu0 %v4343, 127
  %v4395 = vpop.permute.xlu0 %4394
  %4396 = vrot.lane.b32.xlu0 %v4344, 127
  %v4397 = vpop.permute.xlu0 %4396
  %4398 = vrot.lane.b32.xlu0 %v4345, 127
  %v4399 = vpop.permute.xlu0 %4398
  %4400 = vrot.lane.b32.xlu0 %v4346, 127
  %v4401 = vpop.permute.xlu0 %4400
  %4402 = vrot.lane.b32.xlu0 %v4347, 127
  %v4403 = vpop.permute.xlu0 %4402
  %4404 = vrot.lane.b32.xlu0 %v4348, 127
  %v4405 = vpop.permute.xlu0 %4404
  %v4406 = vsel %vm128, %v2284, %v4369
  %v4407 = vsel %vm128, %v4369, %v4371
  %v4408 = vsel %vm128, %v4371, %v4373
  %v4409 = vsel %vm128, %v4373, %v4375
  %v4410 = vsel %vm128, %v4375, %v4377
  %v4411 = vsel %vm128, %v4377, %v4379
  %v4412 = vsel %vm128, %v4379, %v4381
  %v4413 = vsel %vm128, %v4381, %v4383
  %v4414 = vsel %vm128, %v4383, %v4385
  %v4415 = vsel %vm128, %v4385, %v4387
  %v4416 = vsel %vm128, %v4387, %v4389
  %v4417 = vsel %vm128, %v4389, %v4391
  %v4418 = vsel %vm128, %v4391, %v4393
  %v4419 = vsel %vm128, %v4393, %v4395
  %v4420 = vsel %vm128, %v4395, %v4397
  %v4421 = vsel %vm128, %v4397, %v4399
  %v4422 = vsel %vm128, %v4399, %v4401
  %v4423 = vsel %vm128, %v4401, %v4403
  %v4424 = vsel %vm128, %v4403, %v4405
  %4425 = vrot.lane.b32.xlu0 %v4330, 126
  %v4426 = vpop.permute.xlu0 %4425
  %4427 = vrot.lane.b32.xlu0 %v4331, 126
  %v4428 = vpop.permute.xlu0 %4427
  %4429 = vrot.lane.b32.xlu0 %v4332, 126
  %v4430 = vpop.permute.xlu0 %4429
  %4431 = vrot.lane.b32.xlu0 %v4333, 126
  %v4432 = vpop.permute.xlu0 %4431
  %4433 = vrot.lane.b32.xlu0 %v4334, 126
  %v4434 = vpop.permute.xlu0 %4433
  %4435 = vrot.lane.b32.xlu0 %v4335, 126
  %v4436 = vpop.permute.xlu0 %4435
  %4437 = vrot.lane.b32.xlu0 %v4336, 126
  %v4438 = vpop.permute.xlu0 %4437
  %4439 = vrot.lane.b32.xlu0 %v4337, 126
  %v4440 = vpop.permute.xlu0 %4439
  %4441 = vrot.lane.b32.xlu0 %v4338, 126
  %v4442 = vpop.permute.xlu0 %4441
  %4443 = vrot.lane.b32.xlu0 %v4339, 126
  %v4444 = vpop.permute.xlu0 %4443
  %4445 = vrot.lane.b32.xlu0 %v4340, 126
  %v4446 = vpop.permute.xlu0 %4445
  %4447 = vrot.lane.b32.xlu0 %v4341, 126
  %v4448 = vpop.permute.xlu0 %4447
  %4449 = vrot.lane.b32.xlu0 %v4342, 126
  %v4450 = vpop.permute.xlu0 %4449
  %4451 = vrot.lane.b32.xlu0 %v4343, 126
  %v4452 = vpop.permute.xlu0 %4451
  %4453 = vrot.lane.b32.xlu0 %v4344, 126
  %v4454 = vpop.permute.xlu0 %4453
  %4455 = vrot.lane.b32.xlu0 %v4345, 126
  %v4456 = vpop.permute.xlu0 %4455
  %4457 = vrot.lane.b32.xlu0 %v4346, 126
  %v4458 = vpop.permute.xlu0 %4457
  %4459 = vrot.lane.b32.xlu0 %v4347, 126
  %v4460 = vpop.permute.xlu0 %4459
  %4461 = vrot.lane.b32.xlu0 %v4348, 126
  %v4462 = vpop.permute.xlu0 %4461
  %v4463 = vsel %vm188, %v2343, %v4426
  %v4464 = vsel %vm188, %v4426, %v4428
  %v4465 = vsel %vm188, %v4428, %v4430
  %v4466 = vsel %vm188, %v4430, %v4432
  %v4467 = vsel %vm188, %v4432, %v4434
  %v4468 = vsel %vm188, %v4434, %v4436
  %v4469 = vsel %vm188, %v4436, %v4438
  %v4470 = vsel %vm188, %v4438, %v4440
  %v4471 = vsel %vm188, %v4440, %v4442
  %v4472 = vsel %vm188, %v4442, %v4444
  %v4473 = vsel %vm188, %v4444, %v4446
  %v4474 = vsel %vm188, %v4446, %v4448
  %v4475 = vsel %vm188, %v4448, %v4450
  %v4476 = vsel %vm188, %v4450, %v4452
  %v4477 = vsel %vm188, %v4452, %v4454
  %v4478 = vsel %vm188, %v4454, %v4456
  %v4479 = vsel %vm188, %v4456, %v4458
  %v4480 = vsel %vm188, %v4458, %v4460
  %v4481 = vsel %vm188, %v4460, %v4462
  %4482 = vrot.lane.b32.xlu0 %v4330, 94
  %v4483 = vpop.permute.xlu0 %4482
  %4484 = vrot.lane.b32.xlu0 %v4331, 94
  %v4485 = vpop.permute.xlu0 %4484
  %4486 = vrot.lane.b32.xlu0 %v4332, 94
  %v4487 = vpop.permute.xlu0 %4486
  %4488 = vrot.lane.b32.xlu0 %v4333, 94
  %v4489 = vpop.permute.xlu0 %4488
  %4490 = vrot.lane.b32.xlu0 %v4334, 94
  %v4491 = vpop.permute.xlu0 %4490
  %4492 = vrot.lane.b32.xlu0 %v4335, 94
  %v4493 = vpop.permute.xlu0 %4492
  %4494 = vrot.lane.b32.xlu0 %v4336, 94
  %v4495 = vpop.permute.xlu0 %4494
  %4496 = vrot.lane.b32.xlu0 %v4337, 94
  %v4497 = vpop.permute.xlu0 %4496
  %4498 = vrot.lane.b32.xlu0 %v4338, 94
  %v4499 = vpop.permute.xlu0 %4498
  %4500 = vrot.lane.b32.xlu0 %v4339, 94
  %v4501 = vpop.permute.xlu0 %4500
  %4502 = vrot.lane.b32.xlu0 %v4340, 94
  %v4503 = vpop.permute.xlu0 %4502
  %4504 = vrot.lane.b32.xlu0 %v4341, 94
  %v4505 = vpop.permute.xlu0 %4504
  %4506 = vrot.lane.b32.xlu0 %v4342, 94
  %v4507 = vpop.permute.xlu0 %4506
  %4508 = vrot.lane.b32.xlu0 %v4343, 94
  %v4509 = vpop.permute.xlu0 %4508
  %4510 = vrot.lane.b32.xlu0 %v4344, 94
  %v4511 = vpop.permute.xlu0 %4510
  %4512 = vrot.lane.b32.xlu0 %v4345, 94
  %v4513 = vpop.permute.xlu0 %4512
  %4514 = vrot.lane.b32.xlu0 %v4346, 94
  %v4515 = vpop.permute.xlu0 %4514
  %4516 = vrot.lane.b32.xlu0 %v4347, 94
  %v4517 = vpop.permute.xlu0 %4516
  %4518 = vrot.lane.b32.xlu0 %v4348, 94
  %v4519 = vpop.permute.xlu0 %4518
  %v4520 = vsel %vm248, %v2402, %v4483
  %v4521 = vsel %vm248, %v4483, %v4485
  %v4522 = vsel %vm248, %v4485, %v4487
  %v4523 = vsel %vm248, %v4487, %v4489
  %v4524 = vsel %vm248, %v4489, %v4491
  %v4525 = vsel %vm248, %v4491, %v4493
  %v4526 = vsel %vm248, %v4493, %v4495
  %v4527 = vsel %vm248, %v4495, %v4497
  %v4528 = vsel %vm248, %v4497, %v4499
  %v4529 = vsel %vm248, %v4499, %v4501
  %v4530 = vsel %vm248, %v4501, %v4503
  %v4531 = vsel %vm248, %v4503, %v4505
  %v4532 = vsel %vm248, %v4505, %v4507
  %v4533 = vsel %vm248, %v4507, %v4509
  %v4534 = vsel %vm248, %v4509, %v4511
  %v4535 = vsel %vm248, %v4511, %v4513
  %v4536 = vsel %vm248, %v4513, %v4515
  %v4537 = vsel %vm248, %v4515, %v4517
  %v4538 = vsel %vm248, %v4517, %v4519
  %4539 = vrot.lane.b32.xlu0 %v4330, 93
  %v4540 = vpop.permute.xlu0 %4539
  %4541 = vrot.lane.b32.xlu0 %v4331, 93
  %v4542 = vpop.permute.xlu0 %4541
  %4543 = vrot.lane.b32.xlu0 %v4332, 93
  %v4544 = vpop.permute.xlu0 %4543
  %4545 = vrot.lane.b32.xlu0 %v4333, 93
  %v4546 = vpop.permute.xlu0 %4545
  %4547 = vrot.lane.b32.xlu0 %v4334, 93
  %v4548 = vpop.permute.xlu0 %4547
  %4549 = vrot.lane.b32.xlu0 %v4335, 93
  %v4550 = vpop.permute.xlu0 %4549
  %4551 = vrot.lane.b32.xlu0 %v4336, 93
  %v4552 = vpop.permute.xlu0 %4551
  %4553 = vrot.lane.b32.xlu0 %v4337, 93
  %v4554 = vpop.permute.xlu0 %4553
  %4555 = vrot.lane.b32.xlu0 %v4338, 93
  %v4556 = vpop.permute.xlu0 %4555
  %4557 = vrot.lane.b32.xlu0 %v4339, 93
  %v4558 = vpop.permute.xlu0 %4557
  %4559 = vrot.lane.b32.xlu0 %v4340, 93
  %v4560 = vpop.permute.xlu0 %4559
  %4561 = vrot.lane.b32.xlu0 %v4341, 93
  %v4562 = vpop.permute.xlu0 %4561
  %4563 = vrot.lane.b32.xlu0 %v4342, 93
  %v4564 = vpop.permute.xlu0 %4563
  %4565 = vrot.lane.b32.xlu0 %v4343, 93
  %v4566 = vpop.permute.xlu0 %4565
  %4567 = vrot.lane.b32.xlu0 %v4344, 93
  %v4568 = vpop.permute.xlu0 %4567
  %4569 = vrot.lane.b32.xlu0 %v4345, 93
  %v4570 = vpop.permute.xlu0 %4569
  %4571 = vrot.lane.b32.xlu0 %v4346, 93
  %v4572 = vpop.permute.xlu0 %4571
  %4573 = vrot.lane.b32.xlu0 %v4347, 93
  %v4574 = vpop.permute.xlu0 %4573
  %4575 = vrot.lane.b32.xlu0 %v4348, 93
  %v4576 = vpop.permute.xlu0 %4575
  %v4577 = vsel %vm306, %v4540, %v4542
  %v4578 = vsel %vm306, %v4542, %v4544
  %v4579 = vsel %vm306, %v4544, %v4546
  %v4580 = vsel %vm306, %v4546, %v4548
  %v4581 = vsel %vm306, %v4548, %v4550
  %v4582 = vsel %vm306, %v4550, %v4552
  %v4583 = vsel %vm306, %v4552, %v4554
  %v4584 = vsel %vm306, %v4554, %v4556
  %v4585 = vsel %vm306, %v4556, %v4558
  %v4586 = vsel %vm306, %v4558, %v4560
  %v4587 = vsel %vm306, %v4560, %v4562
  %v4588 = vsel %vm306, %v4562, %v4564
  %v4589 = vsel %vm306, %v4564, %v4566
  %v4590 = vsel %vm306, %v4566, %v4568
  %v4591 = vsel %vm306, %v4568, %v4570
  %v4592 = vsel %vm306, %v4570, %v4572
  %v4593 = vsel %vm306, %v4572, %v4574
  %v4594 = vsel %vm306, %v4574, %v4576
  %4595 = vrot.lane.b32.xlu0 %v4330, 92
  %v4596 = vpop.permute.xlu0 %4595
  %4597 = vrot.lane.b32.xlu0 %v4331, 92
  %v4598 = vpop.permute.xlu0 %4597
  %4599 = vrot.lane.b32.xlu0 %v4332, 92
  %v4600 = vpop.permute.xlu0 %4599
  %4601 = vrot.lane.b32.xlu0 %v4333, 92
  %v4602 = vpop.permute.xlu0 %4601
  %4603 = vrot.lane.b32.xlu0 %v4334, 92
  %v4604 = vpop.permute.xlu0 %4603
  %4605 = vrot.lane.b32.xlu0 %v4335, 92
  %v4606 = vpop.permute.xlu0 %4605
  %4607 = vrot.lane.b32.xlu0 %v4336, 92
  %v4608 = vpop.permute.xlu0 %4607
  %4609 = vrot.lane.b32.xlu0 %v4337, 92
  %v4610 = vpop.permute.xlu0 %4609
  %4611 = vrot.lane.b32.xlu0 %v4338, 92
  %v4612 = vpop.permute.xlu0 %4611
  %4613 = vrot.lane.b32.xlu0 %v4339, 92
  %v4614 = vpop.permute.xlu0 %4613
  %4615 = vrot.lane.b32.xlu0 %v4340, 92
  %v4616 = vpop.permute.xlu0 %4615
  %4617 = vrot.lane.b32.xlu0 %v4341, 92
  %v4618 = vpop.permute.xlu0 %4617
  %4619 = vrot.lane.b32.xlu0 %v4342, 92
  %v4620 = vpop.permute.xlu0 %4619
  %4621 = vrot.lane.b32.xlu0 %v4343, 92
  %v4622 = vpop.permute.xlu0 %4621
  %4623 = vrot.lane.b32.xlu0 %v4344, 92
  %v4624 = vpop.permute.xlu0 %4623
  %4625 = vrot.lane.b32.xlu0 %v4345, 92
  %v4626 = vpop.permute.xlu0 %4625
  %4627 = vrot.lane.b32.xlu0 %v4346, 92
  %v4628 = vpop.permute.xlu0 %4627
  %4629 = vrot.lane.b32.xlu0 %v4347, 92
  %v4630 = vpop.permute.xlu0 %4629
  %4631 = vrot.lane.b32.xlu0 %v4348, 92
  %v4632 = vpop.permute.xlu0 %4631
  %v4633 = vsel %vm366, %v4596, %v4598
  %v4634 = vsel %vm366, %v4598, %v4600
  %v4635 = vsel %vm366, %v4600, %v4602
  %v4636 = vsel %vm366, %v4602, %v4604
  %v4637 = vsel %vm366, %v4604, %v4606
  %v4638 = vsel %vm366, %v4606, %v4608
  %v4639 = vsel %vm366, %v4608, %v4610
  %v4640 = vsel %vm366, %v4610, %v4612
  %v4641 = vsel %vm366, %v4612, %v4614
  %v4642 = vsel %vm366, %v4614, %v4616
  %v4643 = vsel %vm366, %v4616, %v4618
  %v4644 = vsel %vm366, %v4618, %v4620
  %v4645 = vsel %vm366, %v4620, %v4622
  %v4646 = vsel %vm366, %v4622, %v4624
  %v4647 = vsel %vm366, %v4624, %v4626
  %v4648 = vsel %vm366, %v4626, %v4628
  %v4649 = vsel %vm366, %v4628, %v4630
  %v4650 = vsel %vm366, %v4630, %v4632
  %v4651 = vsel %vm366, %v4632, %v2555
  %4652 = vrot.lane.b32.xlu0 %v4330, 60
  %v4653 = vpop.permute.xlu0 %4652
  %4654 = vrot.lane.b32.xlu0 %v4331, 60
  %v4655 = vpop.permute.xlu0 %4654
  %4656 = vrot.lane.b32.xlu0 %v4332, 60
  %v4657 = vpop.permute.xlu0 %4656
  %4658 = vrot.lane.b32.xlu0 %v4333, 60
  %v4659 = vpop.permute.xlu0 %4658
  %4660 = vrot.lane.b32.xlu0 %v4334, 60
  %v4661 = vpop.permute.xlu0 %4660
  %4662 = vrot.lane.b32.xlu0 %v4335, 60
  %v4663 = vpop.permute.xlu0 %4662
  %4664 = vrot.lane.b32.xlu0 %v4336, 60
  %v4665 = vpop.permute.xlu0 %4664
  %4666 = vrot.lane.b32.xlu0 %v4337, 60
  %v4667 = vpop.permute.xlu0 %4666
  %4668 = vrot.lane.b32.xlu0 %v4338, 60
  %v4669 = vpop.permute.xlu0 %4668
  %4670 = vrot.lane.b32.xlu0 %v4339, 60
  %v4671 = vpop.permute.xlu0 %4670
  %4672 = vrot.lane.b32.xlu0 %v4340, 60
  %v4673 = vpop.permute.xlu0 %4672
  %4674 = vrot.lane.b32.xlu0 %v4341, 60
  %v4675 = vpop.permute.xlu0 %4674
  %4676 = vrot.lane.b32.xlu0 %v4342, 60
  %v4677 = vpop.permute.xlu0 %4676
  %4678 = vrot.lane.b32.xlu0 %v4343, 60
  %v4679 = vpop.permute.xlu0 %4678
  %4680 = vrot.lane.b32.xlu0 %v4344, 60
  %v4681 = vpop.permute.xlu0 %4680
  %4682 = vrot.lane.b32.xlu0 %v4345, 60
  %v4683 = vpop.permute.xlu0 %4682
  %4684 = vrot.lane.b32.xlu0 %v4346, 60
  %v4685 = vpop.permute.xlu0 %4684
  %4686 = vrot.lane.b32.xlu0 %v4347, 60
  %v4687 = vpop.permute.xlu0 %4686
  %4688 = vrot.lane.b32.xlu0 %v4348, 60
  %v4689 = vpop.permute.xlu0 %4688
  %v4690 = vsel %vm426, %v4653, %v4655
  %v4691 = vsel %vm426, %v4655, %v4657
  %v4692 = vsel %vm426, %v4657, %v4659
  %v4693 = vsel %vm426, %v4659, %v4661
  %v4694 = vsel %vm426, %v4661, %v4663
  %v4695 = vsel %vm426, %v4663, %v4665
  %v4696 = vsel %vm426, %v4665, %v4667
  %v4697 = vsel %vm426, %v4667, %v4669
  %v4698 = vsel %vm426, %v4669, %v4671
  %v4699 = vsel %vm426, %v4671, %v4673
  %v4700 = vsel %vm426, %v4673, %v4675
  %v4701 = vsel %vm426, %v4675, %v4677
  %v4702 = vsel %vm426, %v4677, %v4679
  %v4703 = vsel %vm426, %v4679, %v4681
  %v4704 = vsel %vm426, %v4681, %v4683
  %v4705 = vsel %vm426, %v4683, %v4685
  %v4706 = vsel %vm426, %v4685, %v4687
  %v4707 = vsel %vm426, %v4687, %v4689
  %v4708 = vsel %vm426, %v4689, %v2614
  %4709 = vrot.lane.b32.xlu0 %v4330, 59
  %v4710 = vpop.permute.xlu0 %4709
  %4711 = vrot.lane.b32.xlu0 %v4331, 59
  %v4712 = vpop.permute.xlu0 %4711
  %4713 = vrot.lane.b32.xlu0 %v4332, 59
  %v4714 = vpop.permute.xlu0 %4713
  %4715 = vrot.lane.b32.xlu0 %v4333, 59
  %v4716 = vpop.permute.xlu0 %4715
  %4717 = vrot.lane.b32.xlu0 %v4334, 59
  %v4718 = vpop.permute.xlu0 %4717
  %4719 = vrot.lane.b32.xlu0 %v4335, 59
  %v4720 = vpop.permute.xlu0 %4719
  %4721 = vrot.lane.b32.xlu0 %v4336, 59
  %v4722 = vpop.permute.xlu0 %4721
  %4723 = vrot.lane.b32.xlu0 %v4337, 59
  %v4724 = vpop.permute.xlu0 %4723
  %4725 = vrot.lane.b32.xlu0 %v4338, 59
  %v4726 = vpop.permute.xlu0 %4725
  %4727 = vrot.lane.b32.xlu0 %v4339, 59
  %v4728 = vpop.permute.xlu0 %4727
  %4729 = vrot.lane.b32.xlu0 %v4340, 59
  %v4730 = vpop.permute.xlu0 %4729
  %4731 = vrot.lane.b32.xlu0 %v4341, 59
  %v4732 = vpop.permute.xlu0 %4731
  %4733 = vrot.lane.b32.xlu0 %v4342, 59
  %v4734 = vpop.permute.xlu0 %4733
  %4735 = vrot.lane.b32.xlu0 %v4343, 59
  %v4736 = vpop.permute.xlu0 %4735
  %4737 = vrot.lane.b32.xlu0 %v4344, 59
  %v4738 = vpop.permute.xlu0 %4737
  %4739 = vrot.lane.b32.xlu0 %v4345, 59
  %v4740 = vpop.permute.xlu0 %4739
  %4741 = vrot.lane.b32.xlu0 %v4346, 59
  %v4742 = vpop.permute.xlu0 %4741
  %4743 = vrot.lane.b32.xlu0 %v4347, 59
  %v4744 = vpop.permute.xlu0 %4743
  %4745 = vrot.lane.b32.xlu0 %v4348, 59
  %v4746 = vpop.permute.xlu0 %4745
  %v4747 = vsel %vm486, %v4710, %v4712
  %v4748 = vsel %vm486, %v4712, %v4714
  %v4749 = vsel %vm486, %v4714, %v4716
  %v4750 = vsel %vm486, %v4716, %v4718
  %v4751 = vsel %vm486, %v4718, %v4720
  %v4752 = vsel %vm486, %v4720, %v4722
  %v4753 = vsel %vm486, %v4722, %v4724
  %v4754 = vsel %vm486, %v4724, %v4726
  %v4755 = vsel %vm486, %v4726, %v4728
  %v4756 = vsel %vm486, %v4728, %v4730
  %v4757 = vsel %vm486, %v4730, %v4732
  %v4758 = vsel %vm486, %v4732, %v4734
  %v4759 = vsel %vm486, %v4734, %v4736
  %v4760 = vsel %vm486, %v4736, %v4738
  %v4761 = vsel %vm486, %v4738, %v4740
  %v4762 = vsel %vm486, %v4740, %v4742
  %v4763 = vsel %vm486, %v4742, %v4744
  %v4764 = vsel %vm486, %v4744, %v4746
  %v4765 = vsel %vm486, %v4746, %v2673
  %4766 = vrot.lane.b32.xlu0 %v4330, 58
  %v4767 = vpop.permute.xlu0 %4766
  %4768 = vrot.lane.b32.xlu0 %v4331, 58
  %v4769 = vpop.permute.xlu0 %4768
  %4770 = vrot.lane.b32.xlu0 %v4332, 58
  %v4771 = vpop.permute.xlu0 %4770
  %4772 = vrot.lane.b32.xlu0 %v4333, 58
  %v4773 = vpop.permute.xlu0 %4772
  %4774 = vrot.lane.b32.xlu0 %v4334, 58
  %v4775 = vpop.permute.xlu0 %4774
  %4776 = vrot.lane.b32.xlu0 %v4335, 58
  %v4777 = vpop.permute.xlu0 %4776
  %4778 = vrot.lane.b32.xlu0 %v4336, 58
  %v4779 = vpop.permute.xlu0 %4778
  %4780 = vrot.lane.b32.xlu0 %v4337, 58
  %v4781 = vpop.permute.xlu0 %4780
  %4782 = vrot.lane.b32.xlu0 %v4338, 58
  %v4783 = vpop.permute.xlu0 %4782
  %4784 = vrot.lane.b32.xlu0 %v4339, 58
  %v4785 = vpop.permute.xlu0 %4784
  %4786 = vrot.lane.b32.xlu0 %v4340, 58
  %v4787 = vpop.permute.xlu0 %4786
  %4788 = vrot.lane.b32.xlu0 %v4341, 58
  %v4789 = vpop.permute.xlu0 %4788
  %4790 = vrot.lane.b32.xlu0 %v4342, 58
  %v4791 = vpop.permute.xlu0 %4790
  %4792 = vrot.lane.b32.xlu0 %v4343, 58
  %v4793 = vpop.permute.xlu0 %4792
  %4794 = vrot.lane.b32.xlu0 %v4344, 58
  %v4795 = vpop.permute.xlu0 %4794
  %4796 = vrot.lane.b32.xlu0 %v4345, 58
  %v4797 = vpop.permute.xlu0 %4796
  %4798 = vrot.lane.b32.xlu0 %v4346, 58
  %v4799 = vpop.permute.xlu0 %4798
  %4800 = vrot.lane.b32.xlu0 %v4347, 58
  %v4801 = vpop.permute.xlu0 %4800
  %4802 = vrot.lane.b32.xlu0 %v4348, 58
  %v4803 = vpop.permute.xlu0 %4802
  %v4804 = vsel %vm546, %v4767, %v4769
  %v4805 = vsel %vm546, %v4769, %v4771
  %v4806 = vsel %vm546, %v4771, %v4773
  %v4807 = vsel %vm546, %v4773, %v4775
  %v4808 = vsel %vm546, %v4775, %v4777
  %v4809 = vsel %vm546, %v4777, %v4779
  %v4810 = vsel %vm546, %v4779, %v4781
  %v4811 = vsel %vm546, %v4781, %v4783
  %v4812 = vsel %vm546, %v4783, %v4785
  %v4813 = vsel %vm546, %v4785, %v4787
  %v4814 = vsel %vm546, %v4787, %v4789
  %v4815 = vsel %vm546, %v4789, %v4791
  %v4816 = vsel %vm546, %v4791, %v4793
  %v4817 = vsel %vm546, %v4793, %v4795
  %v4818 = vsel %vm546, %v4795, %v4797
  %v4819 = vsel %vm546, %v4797, %v4799
  %v4820 = vsel %vm546, %v4799, %v4801
  %v4821 = vsel %vm546, %v4801, %v4803
  %v4822 = vsel %vm546, %v4803, %v2732
  %v4823 = vld [vmem:[%s10] sm:$0xf]
  %v4824 = vld [vmem:[%s11] sm:$0xf]
  %4826 = vset.pattern.permute.xlu0 0
  %4827 = vperm.xlu0 %4826, %v4824
  %v4828 = vpop.permute.xlu0 %4827
  %4830 = vrot.lane.b32.xlu0 %v4330, 35
  %v4831 = vpop.permute.xlu0 %4830
  %4832 = vrot.lane.b32.xlu0 %v4331, 35
  %v4833 = vpop.permute.xlu0 %4832
  %4834 = vrot.lane.b32.xlu0 %v4332, 35
  %v4835 = vpop.permute.xlu0 %4834
  %4836 = vrot.lane.b32.xlu0 %v4333, 35
  %v4837 = vpop.permute.xlu0 %4836
  %4838 = vrot.lane.b32.xlu0 %v4334, 35
  %v4839 = vpop.permute.xlu0 %4838
  %4840 = vrot.lane.b32.xlu0 %v4335, 35
  %v4841 = vpop.permute.xlu0 %4840
  %4842 = vrot.lane.b32.xlu0 %v4336, 35
  %v4843 = vpop.permute.xlu0 %4842
  %4844 = vrot.lane.b32.xlu0 %v4337, 35
  %v4845 = vpop.permute.xlu0 %4844
  %4846 = vrot.lane.b32.xlu0 %v4338, 35
  %v4847 = vpop.permute.xlu0 %4846
  %4848 = vrot.lane.b32.xlu0 %v4339, 35
  %v4849 = vpop.permute.xlu0 %4848
  %4850 = vrot.lane.b32.xlu0 %v4340, 35
  %v4851 = vpop.permute.xlu0 %4850
  %4852 = vrot.lane.b32.xlu0 %v4341, 35
  %v4853 = vpop.permute.xlu0 %4852
  %4854 = vrot.lane.b32.xlu0 %v4342, 35
  %v4855 = vpop.permute.xlu0 %4854
  %4856 = vrot.lane.b32.xlu0 %v4343, 35
  %v4857 = vpop.permute.xlu0 %4856
  %4858 = vrot.lane.b32.xlu0 %v4344, 35
  %v4859 = vpop.permute.xlu0 %4858
  %4860 = vrot.lane.b32.xlu0 %v4345, 35
  %v4861 = vpop.permute.xlu0 %4860
  %4862 = vrot.lane.b32.xlu0 %v4346, 35
  %v4863 = vpop.permute.xlu0 %4862
  %4864 = vrot.lane.b32.xlu0 %v4347, 35
  %v4865 = vpop.permute.xlu0 %4864
  %4866 = vrot.lane.b32.xlu0 %v4348, 35
  %v4867 = vpop.permute.xlu0 %4866
  %4868 = vrot.lane.b32.xlu0 %v4406, 35
  %v4869 = vpop.permute.xlu0 %4868
  %4870 = vrot.lane.b32.xlu0 %v4407, 35
  %v4871 = vpop.permute.xlu0 %4870
  %4872 = vrot.lane.b32.xlu0 %v4408, 35
  %v4873 = vpop.permute.xlu0 %4872
  %4874 = vrot.lane.b32.xlu0 %v4409, 35
  %v4875 = vpop.permute.xlu0 %4874
  %4876 = vrot.lane.b32.xlu0 %v4410, 35
  %v4877 = vpop.permute.xlu0 %4876
  %4878 = vrot.lane.b32.xlu0 %v4411, 35
  %v4879 = vpop.permute.xlu0 %4878
  %4880 = vrot.lane.b32.xlu0 %v4412, 35
  %v4881 = vpop.permute.xlu0 %4880
  %4882 = vrot.lane.b32.xlu0 %v4413, 35
  %v4883 = vpop.permute.xlu0 %4882
  %4884 = vrot.lane.b32.xlu0 %v4414, 35
  %v4885 = vpop.permute.xlu0 %4884
  %4886 = vrot.lane.b32.xlu0 %v4415, 35
  %v4887 = vpop.permute.xlu0 %4886
  %4888 = vrot.lane.b32.xlu0 %v4416, 35
  %v4889 = vpop.permute.xlu0 %4888
  %4890 = vrot.lane.b32.xlu0 %v4417, 35
  %v4891 = vpop.permute.xlu0 %4890
  %4892 = vrot.lane.b32.xlu0 %v4418, 35
  %v4893 = vpop.permute.xlu0 %4892
  %4894 = vrot.lane.b32.xlu0 %v4419, 35
  %v4895 = vpop.permute.xlu0 %4894
  %4896 = vrot.lane.b32.xlu0 %v4420, 35
  %v4897 = vpop.permute.xlu0 %4896
  %4898 = vrot.lane.b32.xlu0 %v4421, 35
  %v4899 = vpop.permute.xlu0 %4898
  %4900 = vrot.lane.b32.xlu0 %v4422, 35
  %v4901 = vpop.permute.xlu0 %4900
  %4902 = vrot.lane.b32.xlu0 %v4423, 35
  %v4903 = vpop.permute.xlu0 %4902
  %4904 = vrot.lane.b32.xlu0 %v4424, 35
  %v4905 = vpop.permute.xlu0 %4904
  %4906 = vrot.lane.b32.xlu0 %v4405, 35
  %v4907 = vpop.permute.xlu0 %4906
  %4908 = vrot.lane.b32.xlu0 %v4463, 35
  %v4909 = vpop.permute.xlu0 %4908
  %4910 = vrot.lane.b32.xlu0 %v4464, 35
  %v4911 = vpop.permute.xlu0 %4910
  %4912 = vrot.lane.b32.xlu0 %v4465, 35
  %v4913 = vpop.permute.xlu0 %4912
  %4914 = vrot.lane.b32.xlu0 %v4466, 35
  %v4915 = vpop.permute.xlu0 %4914
  %4916 = vrot.lane.b32.xlu0 %v4467, 35
  %v4917 = vpop.permute.xlu0 %4916
  %4918 = vrot.lane.b32.xlu0 %v4468, 35
  %v4919 = vpop.permute.xlu0 %4918
  %4920 = vrot.lane.b32.xlu0 %v4469, 35
  %v4921 = vpop.permute.xlu0 %4920
  %4922 = vrot.lane.b32.xlu0 %v4470, 35
  %v4923 = vpop.permute.xlu0 %4922
  %4924 = vrot.lane.b32.xlu0 %v4471, 35
  %v4925 = vpop.permute.xlu0 %4924
  %4926 = vrot.lane.b32.xlu0 %v4472, 35
  %v4927 = vpop.permute.xlu0 %4926
  %4928 = vrot.lane.b32.xlu0 %v4473, 35
  %v4929 = vpop.permute.xlu0 %4928
  %4930 = vrot.lane.b32.xlu0 %v4474, 35
  %v4931 = vpop.permute.xlu0 %4930
  %4932 = vrot.lane.b32.xlu0 %v4475, 35
  %v4933 = vpop.permute.xlu0 %4932
  %4934 = vrot.lane.b32.xlu0 %v4476, 35
  %v4935 = vpop.permute.xlu0 %4934
  %4936 = vrot.lane.b32.xlu0 %v4477, 35
  %v4937 = vpop.permute.xlu0 %4936
  %4938 = vrot.lane.b32.xlu0 %v4478, 35
  %v4939 = vpop.permute.xlu0 %4938
  %4940 = vrot.lane.b32.xlu0 %v4479, 35
  %v4941 = vpop.permute.xlu0 %4940
  %4942 = vrot.lane.b32.xlu0 %v4480, 35
  %v4943 = vpop.permute.xlu0 %4942
  %4944 = vrot.lane.b32.xlu0 %v4481, 35
  %v4945 = vpop.permute.xlu0 %4944
  %4946 = vrot.lane.b32.xlu0 %v4462, 35
  %v4947 = vpop.permute.xlu0 %4946
  %4948 = vrot.lane.b32.xlu0 %v4520, 35
  %v4949 = vpop.permute.xlu0 %4948
  %4950 = vrot.lane.b32.xlu0 %v4521, 35
  %v4951 = vpop.permute.xlu0 %4950
  %4952 = vrot.lane.b32.xlu0 %v4522, 35
  %v4953 = vpop.permute.xlu0 %4952
  %4954 = vrot.lane.b32.xlu0 %v4523, 35
  %v4955 = vpop.permute.xlu0 %4954
  %4956 = vrot.lane.b32.xlu0 %v4524, 35
  %v4957 = vpop.permute.xlu0 %4956
  %4958 = vrot.lane.b32.xlu0 %v4525, 35
  %v4959 = vpop.permute.xlu0 %4958
  %4960 = vrot.lane.b32.xlu0 %v4526, 35
  %v4961 = vpop.permute.xlu0 %4960
  %4962 = vrot.lane.b32.xlu0 %v4527, 35
  %v4963 = vpop.permute.xlu0 %4962
  %4964 = vrot.lane.b32.xlu0 %v4528, 35
  %v4965 = vpop.permute.xlu0 %4964
  %4966 = vrot.lane.b32.xlu0 %v4529, 35
  %v4967 = vpop.permute.xlu0 %4966
  %4968 = vrot.lane.b32.xlu0 %v4530, 35
  %v4969 = vpop.permute.xlu0 %4968
  %4970 = vrot.lane.b32.xlu0 %v4531, 35
  %v4971 = vpop.permute.xlu0 %4970
  %4972 = vrot.lane.b32.xlu0 %v4532, 35
  %v4973 = vpop.permute.xlu0 %4972
  %4974 = vrot.lane.b32.xlu0 %v4533, 35
  %v4975 = vpop.permute.xlu0 %4974
  %4976 = vrot.lane.b32.xlu0 %v4534, 35
  %v4977 = vpop.permute.xlu0 %4976
  %4978 = vrot.lane.b32.xlu0 %v4535, 35
  %v4979 = vpop.permute.xlu0 %4978
  %4980 = vrot.lane.b32.xlu0 %v4536, 35
  %v4981 = vpop.permute.xlu0 %4980
  %4982 = vrot.lane.b32.xlu0 %v4537, 35
  %v4983 = vpop.permute.xlu0 %4982
  %4984 = vrot.lane.b32.xlu0 %v4538, 35
  %v4985 = vpop.permute.xlu0 %4984
  %4986 = vrot.lane.b32.xlu0 %v4519, 35
  %v4987 = vpop.permute.xlu0 %4986
  %4988 = vrot.lane.b32.xlu0 %v4540, 35
  %v4989 = vpop.permute.xlu0 %4988
  %4990 = vrot.lane.b32.xlu0 %v4577, 35
  %v4991 = vpop.permute.xlu0 %4990
  %4992 = vrot.lane.b32.xlu0 %v4578, 35
  %v4993 = vpop.permute.xlu0 %4992
  %4994 = vrot.lane.b32.xlu0 %v4579, 35
  %v4995 = vpop.permute.xlu0 %4994
  %4996 = vrot.lane.b32.xlu0 %v4580, 35
  %v4997 = vpop.permute.xlu0 %4996
  %4998 = vrot.lane.b32.xlu0 %v4581, 35
  %v4999 = vpop.permute.xlu0 %4998
  %5000 = vrot.lane.b32.xlu0 %v4582, 35
  %v5001 = vpop.permute.xlu0 %5000
  %5002 = vrot.lane.b32.xlu0 %v4583, 35
  %v5003 = vpop.permute.xlu0 %5002
  %5004 = vrot.lane.b32.xlu0 %v4584, 35
  %v5005 = vpop.permute.xlu0 %5004
  %5006 = vrot.lane.b32.xlu0 %v4585, 35
  %v5007 = vpop.permute.xlu0 %5006
  %5008 = vrot.lane.b32.xlu0 %v4586, 35
  %v5009 = vpop.permute.xlu0 %5008
  %5010 = vrot.lane.b32.xlu0 %v4587, 35
  %v5011 = vpop.permute.xlu0 %5010
  %5012 = vrot.lane.b32.xlu0 %v4588, 35
  %v5013 = vpop.permute.xlu0 %5012
  %5014 = vrot.lane.b32.xlu0 %v4589, 35
  %v5015 = vpop.permute.xlu0 %5014
  %5016 = vrot.lane.b32.xlu0 %v4590, 35
  %v5017 = vpop.permute.xlu0 %5016
  %5018 = vrot.lane.b32.xlu0 %v4591, 35
  %v5019 = vpop.permute.xlu0 %5018
  %5020 = vrot.lane.b32.xlu0 %v4592, 35
  %v5021 = vpop.permute.xlu0 %5020
  %5022 = vrot.lane.b32.xlu0 %v4593, 35
  %v5023 = vpop.permute.xlu0 %5022
  %5024 = vrot.lane.b32.xlu0 %v4594, 35
  %v5025 = vpop.permute.xlu0 %5024
  %5026 = vrot.lane.b32.xlu0 %v4576, 35
  %v5027 = vpop.permute.xlu0 %5026
  %5028 = vrot.lane.b32.xlu0 %v4596, 35
  %v5029 = vpop.permute.xlu0 %5028
  %5030 = vrot.lane.b32.xlu0 %v4633, 35
  %v5031 = vpop.permute.xlu0 %5030
  %5032 = vrot.lane.b32.xlu0 %v4634, 35
  %v5033 = vpop.permute.xlu0 %5032
  %5034 = vrot.lane.b32.xlu0 %v4635, 35
  %v5035 = vpop.permute.xlu0 %5034
  %5036 = vrot.lane.b32.xlu0 %v4636, 35
  %v5037 = vpop.permute.xlu0 %5036
  %5038 = vrot.lane.b32.xlu0 %v4637, 35
  %v5039 = vpop.permute.xlu0 %5038
  %5040 = vrot.lane.b32.xlu0 %v4638, 35
  %v5041 = vpop.permute.xlu0 %5040
  %5042 = vrot.lane.b32.xlu0 %v4639, 35
  %v5043 = vpop.permute.xlu0 %5042
  %5044 = vrot.lane.b32.xlu0 %v4640, 35
  %v5045 = vpop.permute.xlu0 %5044
  %5046 = vrot.lane.b32.xlu0 %v4641, 35
  %v5047 = vpop.permute.xlu0 %5046
  %5048 = vrot.lane.b32.xlu0 %v4642, 35
  %v5049 = vpop.permute.xlu0 %5048
  %5050 = vrot.lane.b32.xlu0 %v4643, 35
  %v5051 = vpop.permute.xlu0 %5050
  %5052 = vrot.lane.b32.xlu0 %v4644, 35
  %v5053 = vpop.permute.xlu0 %5052
  %5054 = vrot.lane.b32.xlu0 %v4645, 35
  %v5055 = vpop.permute.xlu0 %5054
  %5056 = vrot.lane.b32.xlu0 %v4646, 35
  %v5057 = vpop.permute.xlu0 %5056
  %5058 = vrot.lane.b32.xlu0 %v4647, 35
  %v5059 = vpop.permute.xlu0 %5058
  %5060 = vrot.lane.b32.xlu0 %v4648, 35
  %v5061 = vpop.permute.xlu0 %5060
  %5062 = vrot.lane.b32.xlu0 %v4649, 35
  %v5063 = vpop.permute.xlu0 %5062
  %5064 = vrot.lane.b32.xlu0 %v4650, 35
  %v5065 = vpop.permute.xlu0 %5064
  %5066 = vrot.lane.b32.xlu0 %v4651, 35
  %v5067 = vpop.permute.xlu0 %5066
  %5068 = vrot.lane.b32.xlu0 %v4653, 35
  %v5069 = vpop.permute.xlu0 %5068
  %5070 = vrot.lane.b32.xlu0 %v4690, 35
  %v5071 = vpop.permute.xlu0 %5070
  %5072 = vrot.lane.b32.xlu0 %v4691, 35
  %v5073 = vpop.permute.xlu0 %5072
  %5074 = vrot.lane.b32.xlu0 %v4692, 35
  %v5075 = vpop.permute.xlu0 %5074
  %5076 = vrot.lane.b32.xlu0 %v4693, 35
  %v5077 = vpop.permute.xlu0 %5076
  %5078 = vrot.lane.b32.xlu0 %v4694, 35
  %v5079 = vpop.permute.xlu0 %5078
  %5080 = vrot.lane.b32.xlu0 %v4695, 35
  %v5081 = vpop.permute.xlu0 %5080
  %5082 = vrot.lane.b32.xlu0 %v4696, 35
  %v5083 = vpop.permute.xlu0 %5082
  %5084 = vrot.lane.b32.xlu0 %v4697, 35
  %v5085 = vpop.permute.xlu0 %5084
  %5086 = vrot.lane.b32.xlu0 %v4698, 35
  %v5087 = vpop.permute.xlu0 %5086
  %5088 = vrot.lane.b32.xlu0 %v4699, 35
  %v5089 = vpop.permute.xlu0 %5088
  %5090 = vrot.lane.b32.xlu0 %v4700, 35
  %v5091 = vpop.permute.xlu0 %5090
  %5092 = vrot.lane.b32.xlu0 %v4701, 35
  %v5093 = vpop.permute.xlu0 %5092
  %5094 = vrot.lane.b32.xlu0 %v4702, 35
  %v5095 = vpop.permute.xlu0 %5094
  %5096 = vrot.lane.b32.xlu0 %v4703, 35
  %v5097 = vpop.permute.xlu0 %5096
  %5098 = vrot.lane.b32.xlu0 %v4704, 35
  %v5099 = vpop.permute.xlu0 %5098
  %5100 = vrot.lane.b32.xlu0 %v4705, 35
  %v5101 = vpop.permute.xlu0 %5100
  %5102 = vrot.lane.b32.xlu0 %v4706, 35
  %v5103 = vpop.permute.xlu0 %5102
  %5104 = vrot.lane.b32.xlu0 %v4707, 35
  %v5105 = vpop.permute.xlu0 %5104
  %5106 = vrot.lane.b32.xlu0 %v4708, 35
  %v5107 = vpop.permute.xlu0 %5106
  %5108 = vrot.lane.b32.xlu0 %v4710, 35
  %v5109 = vpop.permute.xlu0 %5108
  %5110 = vrot.lane.b32.xlu0 %v4747, 35
  %v5111 = vpop.permute.xlu0 %5110
  %5112 = vrot.lane.b32.xlu0 %v4748, 35
  %v5113 = vpop.permute.xlu0 %5112
  %5114 = vrot.lane.b32.xlu0 %v4749, 35
  %v5115 = vpop.permute.xlu0 %5114
  %5116 = vrot.lane.b32.xlu0 %v4750, 35
  %v5117 = vpop.permute.xlu0 %5116
  %5118 = vrot.lane.b32.xlu0 %v4751, 35
  %v5119 = vpop.permute.xlu0 %5118
  %5120 = vrot.lane.b32.xlu0 %v4752, 35
  %v5121 = vpop.permute.xlu0 %5120
  %5122 = vrot.lane.b32.xlu0 %v4753, 35
  %v5123 = vpop.permute.xlu0 %5122
  %5124 = vrot.lane.b32.xlu0 %v4754, 35
  %v5125 = vpop.permute.xlu0 %5124
  %5126 = vrot.lane.b32.xlu0 %v4755, 35
  %v5127 = vpop.permute.xlu0 %5126
  %5128 = vrot.lane.b32.xlu0 %v4756, 35
  %v5129 = vpop.permute.xlu0 %5128
  %5130 = vrot.lane.b32.xlu0 %v4757, 35
  %v5131 = vpop.permute.xlu0 %5130
  %5132 = vrot.lane.b32.xlu0 %v4758, 35
  %v5133 = vpop.permute.xlu0 %5132
  %5134 = vrot.lane.b32.xlu0 %v4759, 35
  %v5135 = vpop.permute.xlu0 %5134
  %5136 = vrot.lane.b32.xlu0 %v4760, 35
  %v5137 = vpop.permute.xlu0 %5136
  %5138 = vrot.lane.b32.xlu0 %v4761, 35
  %v5139 = vpop.permute.xlu0 %5138
  %5140 = vrot.lane.b32.xlu0 %v4762, 35
  %v5141 = vpop.permute.xlu0 %5140
  %5142 = vrot.lane.b32.xlu0 %v4763, 35
  %v5143 = vpop.permute.xlu0 %5142
  %5144 = vrot.lane.b32.xlu0 %v4764, 35
  %v5145 = vpop.permute.xlu0 %5144
  %5146 = vrot.lane.b32.xlu0 %v4765, 35
  %v5147 = vpop.permute.xlu0 %5146
  %5148 = vrot.lane.b32.xlu0 %v4767, 35
  %v5149 = vpop.permute.xlu0 %5148
  %5150 = vrot.lane.b32.xlu0 %v4804, 35
  %v5151 = vpop.permute.xlu0 %5150
  %5152 = vrot.lane.b32.xlu0 %v4805, 35
  %v5153 = vpop.permute.xlu0 %5152
  %5154 = vrot.lane.b32.xlu0 %v4806, 35
  %v5155 = vpop.permute.xlu0 %5154
  %5156 = vrot.lane.b32.xlu0 %v4807, 35
  %v5157 = vpop.permute.xlu0 %5156
  %5158 = vrot.lane.b32.xlu0 %v4808, 35
  %v5159 = vpop.permute.xlu0 %5158
  %5160 = vrot.lane.b32.xlu0 %v4809, 35
  %v5161 = vpop.permute.xlu0 %5160
  %5162 = vrot.lane.b32.xlu0 %v4810, 35
  %v5163 = vpop.permute.xlu0 %5162
  %5164 = vrot.lane.b32.xlu0 %v4811, 35
  %v5165 = vpop.permute.xlu0 %5164
  %5166 = vrot.lane.b32.xlu0 %v4812, 35
  %v5167 = vpop.permute.xlu0 %5166
  %5168 = vrot.lane.b32.xlu0 %v4813, 35
  %v5169 = vpop.permute.xlu0 %5168
  %5170 = vrot.lane.b32.xlu0 %v4814, 35
  %v5171 = vpop.permute.xlu0 %5170
  %5172 = vrot.lane.b32.xlu0 %v4815, 35
  %v5173 = vpop.permute.xlu0 %5172
  %5174 = vrot.lane.b32.xlu0 %v4816, 35
  %v5175 = vpop.permute.xlu0 %5174
  %5176 = vrot.lane.b32.xlu0 %v4817, 35
  %v5177 = vpop.permute.xlu0 %5176
  %5178 = vrot.lane.b32.xlu0 %v4818, 35
  %v5179 = vpop.permute.xlu0 %5178
  %5180 = vrot.lane.b32.xlu0 %v4819, 35
  %v5181 = vpop.permute.xlu0 %5180
  %5182 = vrot.lane.b32.xlu0 %v4820, 35
  %v5183 = vpop.permute.xlu0 %5182
  %5184 = vrot.lane.b32.xlu0 %v4821, 35
  %v5185 = vpop.permute.xlu0 %5184
  %5186 = vrot.lane.b32.xlu0 %v4822, 35
  %v5187 = vpop.permute.xlu0 %5186
  %v5188 = vsel %vm933, %v2760, %v4831
  %v5189 = vsel %vm933, %v4831, %v4833
  %v5190 = vsel %vm933, %v4833, %v4835
  %v5191 = vsel %vm933, %v4835, %v4837
  %v5192 = vsel %vm933, %v4837, %v4839
  %v5193 = vsel %vm933, %v4839, %v4841
  %v5194 = vsel %vm933, %v4841, %v4843
  %v5195 = vsel %vm933, %v4843, %v4845
  %v5196 = vsel %vm933, %v4845, %v4847
  %v5197 = vsel %vm933, %v4847, %v4849
  %v5198 = vsel %vm933, %v4849, %v4851
  %v5199 = vsel %vm933, %v4851, %v4853
  %v5200 = vsel %vm933, %v4853, %v4855
  %v5201 = vsel %vm933, %v4855, %v4857
  %v5202 = vsel %vm933, %v4857, %v4859
  %v5203 = vsel %vm933, %v4859, %v4861
  %v5204 = vsel %vm933, %v4861, %v4863
  %v5205 = vsel %vm933, %v4863, %v4865
  %v5206 = vsel %vm933, %v4865, %v4867
  %v5207 = vsel %vm933, %v4869, %v4871
  %v5208 = vsel %vm933, %v4871, %v4873
  %v5209 = vsel %vm933, %v4873, %v4875
  %v5210 = vsel %vm933, %v4875, %v4877
  %v5211 = vsel %vm933, %v4877, %v4879
  %v5212 = vsel %vm933, %v4879, %v4881
  %v5213 = vsel %vm933, %v4881, %v4883
  %v5214 = vsel %vm933, %v4883, %v4885
  %v5215 = vsel %vm933, %v4885, %v4887
  %v5216 = vsel %vm933, %v4887, %v4889
  %v5217 = vsel %vm933, %v4889, %v4891
  %v5218 = vsel %vm933, %v4891, %v4893
  %v5219 = vsel %vm933, %v4893, %v4895
  %v5220 = vsel %vm933, %v4895, %v4897
  %v5221 = vsel %vm933, %v4897, %v4899
  %v5222 = vsel %vm933, %v4899, %v4901
  %v5223 = vsel %vm933, %v4901, %v4903
  %v5224 = vsel %vm933, %v4903, %v4905
  %v5225 = vsel %vm933, %v4905, %v4907
  %v5226 = vsel %vm933, %v4909, %v4911
  %v5227 = vsel %vm933, %v4911, %v4913
  %v5228 = vsel %vm933, %v4913, %v4915
  %v5229 = vsel %vm933, %v4915, %v4917
  %v5230 = vsel %vm933, %v4917, %v4919
  %v5231 = vsel %vm933, %v4919, %v4921
  %v5232 = vsel %vm933, %v4921, %v4923
  %v5233 = vsel %vm933, %v4923, %v4925
  %v5234 = vsel %vm933, %v4925, %v4927
  %v5235 = vsel %vm933, %v4927, %v4929
  %v5236 = vsel %vm933, %v4929, %v4931
  %v5237 = vsel %vm933, %v4931, %v4933
  %v5238 = vsel %vm933, %v4933, %v4935
  %v5239 = vsel %vm933, %v4935, %v4937
  %v5240 = vsel %vm933, %v4937, %v4939
  %v5241 = vsel %vm933, %v4939, %v4941
  %v5242 = vsel %vm933, %v4941, %v4943
  %v5243 = vsel %vm933, %v4943, %v4945
  %v5244 = vsel %vm933, %v4945, %v4947
  %v5245 = vsel %vm933, %v4949, %v4951
  %v5246 = vsel %vm933, %v4951, %v4953
  %v5247 = vsel %vm933, %v4953, %v4955
  %v5248 = vsel %vm933, %v4955, %v4957
  %v5249 = vsel %vm933, %v4957, %v4959
  %v5250 = vsel %vm933, %v4959, %v4961
  %v5251 = vsel %vm933, %v4961, %v4963
  %v5252 = vsel %vm933, %v4963, %v4965
  %v5253 = vsel %vm933, %v4965, %v4967
  %v5254 = vsel %vm933, %v4967, %v4969
  %v5255 = vsel %vm933, %v4969, %v4971
  %v5256 = vsel %vm933, %v4971, %v4973
  %v5257 = vsel %vm933, %v4973, %v4975
  %v5258 = vsel %vm933, %v4975, %v4977
  %v5259 = vsel %vm933, %v4977, %v4979
  %v5260 = vsel %vm933, %v4979, %v4981
  %v5261 = vsel %vm933, %v4981, %v4983
  %v5262 = vsel %vm933, %v4983, %v4985
  %v5263 = vsel %vm933, %v4985, %v4987
  %v5264 = vsel %vm933, %v4989, %v4991
  %v5265 = vsel %vm933, %v4991, %v4993
  %v5266 = vsel %vm933, %v4993, %v4995
  %v5267 = vsel %vm933, %v4995, %v4997
  %v5268 = vsel %vm933, %v4997, %v4999
  %v5269 = vsel %vm933, %v4999, %v5001
  %v5270 = vsel %vm933, %v5001, %v5003
  %v5271 = vsel %vm933, %v5003, %v5005
  %v5272 = vsel %vm933, %v5005, %v5007
  %v5273 = vsel %vm933, %v5007, %v5009
  %v5274 = vsel %vm933, %v5009, %v5011
  %v5275 = vsel %vm933, %v5011, %v5013
  %v5276 = vsel %vm933, %v5013, %v5015
  %v5277 = vsel %vm933, %v5015, %v5017
  %v5278 = vsel %vm933, %v5017, %v5019
  %v5279 = vsel %vm933, %v5019, %v5021
  %v5280 = vsel %vm933, %v5021, %v5023
  %v5281 = vsel %vm933, %v5023, %v5025
  %v5282 = vsel %vm933, %v5025, %v5027
  %v5283 = vsel %vm933, %v5029, %v5031
  %v5284 = vsel %vm933, %v5031, %v5033
  %v5285 = vsel %vm933, %v5033, %v5035
  %v5286 = vsel %vm933, %v5035, %v5037
  %v5287 = vsel %vm933, %v5037, %v5039
  %v5288 = vsel %vm933, %v5039, %v5041
  %v5289 = vsel %vm933, %v5041, %v5043
  %v5290 = vsel %vm933, %v5043, %v5045
  %v5291 = vsel %vm933, %v5045, %v5047
  %v5292 = vsel %vm933, %v5047, %v5049
  %v5293 = vsel %vm933, %v5049, %v5051
  %v5294 = vsel %vm933, %v5051, %v5053
  %v5295 = vsel %vm933, %v5053, %v5055
  %v5296 = vsel %vm933, %v5055, %v5057
  %v5297 = vsel %vm933, %v5057, %v5059
  %v5298 = vsel %vm933, %v5059, %v5061
  %v5299 = vsel %vm933, %v5061, %v5063
  %v5300 = vsel %vm933, %v5063, %v5065
  %v5301 = vsel %vm933, %v5065, %v5067
  %v5302 = vsel %vm933, %v5069, %v5071
  %v5303 = vsel %vm933, %v5071, %v5073
  %v5304 = vsel %vm933, %v5073, %v5075
  %v5305 = vsel %vm933, %v5075, %v5077
  %v5306 = vsel %vm933, %v5077, %v5079
  %v5307 = vsel %vm933, %v5079, %v5081
  %v5308 = vsel %vm933, %v5081, %v5083
  %v5309 = vsel %vm933, %v5083, %v5085
  %v5310 = vsel %vm933, %v5085, %v5087
  %v5311 = vsel %vm933, %v5087, %v5089
  %v5312 = vsel %vm933, %v5089, %v5091
  %v5313 = vsel %vm933, %v5091, %v5093
  %v5314 = vsel %vm933, %v5093, %v5095
  %v5315 = vsel %vm933, %v5095, %v5097
  %v5316 = vsel %vm933, %v5097, %v5099
  %v5317 = vsel %vm933, %v5099, %v5101
  %v5318 = vsel %vm933, %v5101, %v5103
  %v5319 = vsel %vm933, %v5103, %v5105
  %v5320 = vsel %vm933, %v5105, %v5107
  %v5321 = vsel %vm933, %v5109, %v5111
  %v5322 = vsel %vm933, %v5111, %v5113
  %v5323 = vsel %vm933, %v5113, %v5115
  %v5324 = vsel %vm933, %v5115, %v5117
  %v5325 = vsel %vm933, %v5117, %v5119
  %v5326 = vsel %vm933, %v5119, %v5121
  %v5327 = vsel %vm933, %v5121, %v5123
  %v5328 = vsel %vm933, %v5123, %v5125
  %v5329 = vsel %vm933, %v5125, %v5127
  %v5330 = vsel %vm933, %v5127, %v5129
  %v5331 = vsel %vm933, %v5129, %v5131
  %v5332 = vsel %vm933, %v5131, %v5133
  %v5333 = vsel %vm933, %v5133, %v5135
  %v5334 = vsel %vm933, %v5135, %v5137
  %v5335 = vsel %vm933, %v5137, %v5139
  %v5336 = vsel %vm933, %v5139, %v5141
  %v5337 = vsel %vm933, %v5141, %v5143
  %v5338 = vsel %vm933, %v5143, %v5145
  %v5339 = vsel %vm933, %v5145, %v5147
  %v5340 = vsel %vm933, %v5149, %v5151
  %v5341 = vsel %vm933, %v5151, %v5153
  %v5342 = vsel %vm933, %v5153, %v5155
  %v5343 = vsel %vm933, %v5155, %v5157
  %v5344 = vsel %vm933, %v5157, %v5159
  %v5345 = vsel %vm933, %v5159, %v5161
  %v5346 = vsel %vm933, %v5161, %v5163
  %v5347 = vsel %vm933, %v5163, %v5165
  %v5348 = vsel %vm933, %v5165, %v5167
  %v5349 = vsel %vm933, %v5167, %v5169
  %v5350 = vsel %vm933, %v5169, %v5171
  %v5351 = vsel %vm933, %v5171, %v5173
  %v5352 = vsel %vm933, %v5173, %v5175
  %v5353 = vsel %vm933, %v5175, %v5177
  %v5354 = vsel %vm933, %v5177, %v5179
  %v5355 = vsel %vm933, %v5179, %v5181
  %v5356 = vsel %vm933, %v5181, %v5183
  %v5357 = vsel %vm933, %v5183, %v5185
  %v5358 = vsel %vm933, %v5185, %v5187
  %v5531 = vsel %vm1276, %v4823, 0
  %5533 = vmatprep.subr.mxu0 0.0
  %5534 = vmatpush1.msra.mxu0 0.0
  %5535 = vmatprep.subr.mxu0 0.0
  %5536 = vmatpush1.msra.mxu0 0.0
  %5537 = vmatprep.subr.mxu0 0.0
  %5538 = vmatpush1.msra.mxu0 0.0
  %5539 = vmatprep.subr.mxu0 0.0
  %5540 = vmatpush1.msra.mxu0 0.0
  %5541 = vmatprep.subr.mxu0 0.0
  %5542 = vmatpush1.msra.mxu0 0.0
  %5543 = vmatprep.subr.mxu0 0.0
  %5544 = vmatpush1.msra.mxu0 0.0
  %5545 = vmatprep.subr.mxu0 0.0
  %5546 = vmatpush1.msra.mxu0 0.0
  %5547 = vmatprep.subr.mxu0 %v5341
  %5548 = vmatpush1.msra.mxu0 %v5340
  %5549 = vmatprep.subr.mxu0 %v5322
  %5550 = vmatpush1.msra.mxu0 %v5321
  %5551 = vmatprep.subr.mxu0 %v5303
  %5552 = vmatpush1.msra.mxu0 %v5302
  %5553 = vmatprep.subr.mxu0 %v5284
  %5554 = vmatpush1.msra.mxu0 %v5283
  %5555 = vmatprep.subr.mxu0 %v5265
  %5556 = vmatpush1.msra.mxu0 %v5264
  %5557 = vmatprep.subr.mxu0 %v5246
  %5558 = vmatpush1.msra.mxu0 %v5245
  %5559 = vmatprep.subr.mxu0 %v5227
  %5560 = vmatpush1.msra.mxu0 %v5226
  %5561 = vmatprep.subr.mxu0 %v5208
  %5562 = vmatpush1.msra.mxu0 %v5207
  %5563 = vmatprep.subr.mxu0 %v5189
  %5564 = vmatpush1.msra.mxu0 %v5188
  %5565 = vmatprep.subr.mxu0 0.0
  %5566 = vmatpush2.msra.mxu0 0.0
  %5567 = vmatprep.subr.mxu0 0.0
  %5568 = vmatpush2.msra.mxu0 0.0
  %5569 = vmatprep.subr.mxu0 0.0
  %5570 = vmatpush2.msra.mxu0 0.0
  %5571 = vmatprep.subr.mxu0 0.0
  %5572 = vmatpush2.msra.mxu0 0.0
  %5573 = vmatprep.subr.mxu0 0.0
  %5574 = vmatpush2.msra.mxu0 0.0
  %5575 = vmatprep.subr.mxu0 0.0
  %5576 = vmatpush2.msra.mxu0 0.0
  %5577 = vmatprep.subr.mxu0 0.0
  %5578 = vmatpush2.msra.mxu0 0.0
  %5579 = vmatprep.subr.mxu0 0.0
  %5580 = vmatpush2.msra.mxu0 0.0
  %5581 = vmatprep.subr.mxu0 0.0
  %5582 = vmatpush2.msra.mxu0 0.0
  %5583 = vmatprep.subr.mxu0 0.0
  %5584 = vmatpush2.msra.mxu0 0.0
  %5585 = vmatprep.subr.mxu0 0.0
  %5586 = vmatpush2.msra.mxu0 0.0
  %5587 = vmatprep.subr.mxu0 0.0
  %5588 = vmatpush2.msra.mxu0 0.0
  %5589 = vmatprep.subr.mxu0 0.0
  %5590 = vmatpush2.msra.mxu0 0.0
  %5591 = vmatprep.subr.mxu0 0.0
  %5592 = vmatpush2.msra.mxu0 0.0
  %5593 = vmatprep.subr.mxu0 0.0
  %5594 = vmatpush2.msra.mxu0 0.0
  %5595 = vmatprep.subr.mxu0 0.0
  %5596 = vmatpush2.msra.mxu0 0.0
  %5597 = vmatprep.mubr.f32.mxu0 0.0
  %5598 = vmatmul.mubr.f32.gmra.mxu0 %v5531
  %v5599 = vpop.f32.mrf.mxu0
  %v5600 = vadd.f32 %v4828, %v5599
  %v5601 = vpop.f32.mrf.mxu0
  %v5602 = vadd.f32 %v4828, %v5601
  %5603 = vdwg.mxu0
  %5604 = vmatprep.subr.mxu0 0.0
  %5605 = vmatpush1.msra.mxu0 0.0
  %5606 = vmatprep.subr.mxu0 0.0
  %5607 = vmatpush1.msra.mxu0 0.0
  %5608 = vmatprep.subr.mxu0 0.0
  %5609 = vmatpush1.msra.mxu0 0.0
  %5610 = vmatprep.subr.mxu0 0.0
  %5611 = vmatpush1.msra.mxu0 0.0
  %5612 = vmatprep.subr.mxu0 0.0
  %5613 = vmatpush1.msra.mxu0 0.0
  %5614 = vmatprep.subr.mxu0 0.0
  %5615 = vmatpush1.msra.mxu0 0.0
  %5616 = vmatprep.subr.mxu0 0.0
  %5617 = vmatpush1.msra.mxu0 0.0
  %5618 = vmatprep.subr.mxu0 %v5343
  %5619 = vmatpush1.msra.mxu0 %v5342
  %5620 = vmatprep.subr.mxu0 %v5324
  %5621 = vmatpush1.msra.mxu0 %v5323
  %5622 = vmatprep.subr.mxu0 %v5305
  %5623 = vmatpush1.msra.mxu0 %v5304
  %5624 = vmatprep.subr.mxu0 %v5286
  %5625 = vmatpush1.msra.mxu0 %v5285
  %5626 = vmatprep.subr.mxu0 %v5267
  %5627 = vmatpush1.msra.mxu0 %v5266
  %5628 = vmatprep.subr.mxu0 %v5248
  %5629 = vmatpush1.msra.mxu0 %v5247
  %5630 = vmatprep.subr.mxu0 %v5229
  %5631 = vmatpush1.msra.mxu0 %v5228
  %5632 = vmatprep.subr.mxu0 %v5210
  %5633 = vmatpush1.msra.mxu0 %v5209
  %5634 = vmatprep.subr.mxu0 %v5191
  %5635 = vmatpush1.msra.mxu0 %v5190
  %5636 = vmatprep.subr.mxu0 0.0
  %5637 = vmatpush2.msra.mxu0 0.0
  %5638 = vmatprep.subr.mxu0 0.0
  %5639 = vmatpush2.msra.mxu0 0.0
  %5640 = vmatprep.subr.mxu0 0.0
  %5641 = vmatpush2.msra.mxu0 0.0
  %5642 = vmatprep.subr.mxu0 0.0
  %5643 = vmatpush2.msra.mxu0 0.0
  %5644 = vmatprep.subr.mxu0 0.0
  %5645 = vmatpush2.msra.mxu0 0.0
  %5646 = vmatprep.subr.mxu0 0.0
  %5647 = vmatpush2.msra.mxu0 0.0
  %5648 = vmatprep.subr.mxu0 0.0
  %5649 = vmatpush2.msra.mxu0 0.0
  %5650 = vmatprep.subr.mxu0 0.0
  %5651 = vmatpush2.msra.mxu0 0.0
  %5652 = vmatprep.subr.mxu0 0.0
  %5653 = vmatpush2.msra.mxu0 0.0
  %5654 = vmatprep.subr.mxu0 0.0
  %5655 = vmatpush2.msra.mxu0 0.0
  %5656 = vmatprep.subr.mxu0 0.0
  %5657 = vmatpush2.msra.mxu0 0.0
  %5658 = vmatprep.subr.mxu0 0.0
  %5659 = vmatpush2.msra.mxu0 0.0
  %5660 = vmatprep.subr.mxu0 0.0
  %5661 = vmatpush2.msra.mxu0 0.0
  %5662 = vmatprep.subr.mxu0 0.0
  %5663 = vmatpush2.msra.mxu0 0.0
  %5664 = vmatprep.subr.mxu0 0.0
  %5665 = vmatpush2.msra.mxu0 0.0
  %5666 = vmatprep.subr.mxu0 0.0
  %5667 = vmatpush2.msra.mxu0 0.0
  %5668 = vmatprep.mubr.f32.mxu0 0.0
  %5669 = vmatmul.mubr.f32.gmra.mxu0 %v5531
  %v5670 = vpop.f32.mrf.mxu0
  %v5671 = vadd.f32 %v4828, %v5670
  %v5672 = vpop.f32.mrf.mxu0
  %v5673 = vadd.f32 %v4828, %v5672
  %5674 = vdwg.mxu0
  %5675 = vmatprep.subr.mxu0 0.0
  %5676 = vmatpush1.msra.mxu0 0.0
  %5677 = vmatprep.subr.mxu0 0.0
  %5678 = vmatpush1.msra.mxu0 0.0
  %5679 = vmatprep.subr.mxu0 0.0
  %5680 = vmatpush1.msra.mxu0 0.0
  %5681 = vmatprep.subr.mxu0 0.0
  %5682 = vmatpush1.msra.mxu0 0.0
  %5683 = vmatprep.subr.mxu0 0.0
  %5684 = vmatpush1.msra.mxu0 0.0
  %5685 = vmatprep.subr.mxu0 0.0
  %5686 = vmatpush1.msra.mxu0 0.0
  %5687 = vmatprep.subr.mxu0 0.0
  %5688 = vmatpush1.msra.mxu0 0.0
  %5689 = vmatprep.subr.mxu0 %v5345
  %5690 = vmatpush1.msra.mxu0 %v5344
  %5691 = vmatprep.subr.mxu0 %v5326
  %5692 = vmatpush1.msra.mxu0 %v5325
  %5693 = vmatprep.subr.mxu0 %v5307
  %5694 = vmatpush1.msra.mxu0 %v5306
  %5695 = vmatprep.subr.mxu0 %v5288
  %5696 = vmatpush1.msra.mxu0 %v5287
  %5697 = vmatprep.subr.mxu0 %v5269
  %5698 = vmatpush1.msra.mxu0 %v5268
  %5699 = vmatprep.subr.mxu0 %v5250
  %5700 = vmatpush1.msra.mxu0 %v5249
  %5701 = vmatprep.subr.mxu0 %v5231
  %5702 = vmatpush1.msra.mxu0 %v5230
  %5703 = vmatprep.subr.mxu0 %v5212
  %5704 = vmatpush1.msra.mxu0 %v5211
  %5705 = vmatprep.subr.mxu0 %v5193
  %5706 = vmatpush1.msra.mxu0 %v5192
  %5707 = vmatprep.subr.mxu0 0.0
  %5708 = vmatpush2.msra.mxu0 0.0
  %5709 = vmatprep.subr.mxu0 0.0
  %5710 = vmatpush2.msra.mxu0 0.0
  %5711 = vmatprep.subr.mxu0 0.0
  %5712 = vmatpush2.msra.mxu0 0.0
  %5713 = vmatprep.subr.mxu0 0.0
  %5714 = vmatpush2.msra.mxu0 0.0
  %5715 = vmatprep.subr.mxu0 0.0
  %5716 = vmatpush2.msra.mxu0 0.0
  %5717 = vmatprep.subr.mxu0 0.0
  %5718 = vmatpush2.msra.mxu0 0.0
  %5719 = vmatprep.subr.mxu0 0.0
  %5720 = vmatpush2.msra.mxu0 0.0
  %5721 = vmatprep.subr.mxu0 0.0
  %5722 = vmatpush2.msra.mxu0 0.0
  %5723 = vmatprep.subr.mxu0 0.0
  %5724 = vmatpush2.msra.mxu0 0.0
  %5725 = vmatprep.subr.mxu0 0.0
  %5726 = vmatpush2.msra.mxu0 0.0
  %5727 = vmatprep.subr.mxu0 0.0
  %5728 = vmatpush2.msra.mxu0 0.0
  %5729 = vmatprep.subr.mxu0 0.0
  %5730 = vmatpush2.msra.mxu0 0.0
  %5731 = vmatprep.subr.mxu0 0.0
  %5732 = vmatpush2.msra.mxu0 0.0
  %5733 = vmatprep.subr.mxu0 0.0
  %5734 = vmatpush2.msra.mxu0 0.0
  %5735 = vmatprep.subr.mxu0 0.0
  %5736 = vmatpush2.msra.mxu0 0.0
  %5737 = vmatprep.subr.mxu0 0.0
  %5738 = vmatpush2.msra.mxu0 0.0
  %5739 = vmatprep.mubr.f32.mxu0 0.0
  %5740 = vmatmul.mubr.f32.gmra.mxu0 %v5531
  %v5741 = vpop.f32.mrf.mxu0
  %v5742 = vadd.f32 %v4828, %v5741
  %v5743 = vpop.f32.mrf.mxu0
  %v5744 = vadd.f32 %v4828, %v5743
  %5745 = vdwg.mxu0
  %5746 = vmatprep.subr.mxu0 0.0
  %5747 = vmatpush1.msra.mxu0 0.0
  %5748 = vmatprep.subr.mxu0 0.0
  %5749 = vmatpush1.msra.mxu0 0.0
  %5750 = vmatprep.subr.mxu0 0.0
  %5751 = vmatpush1.msra.mxu0 0.0
  %5752 = vmatprep.subr.mxu0 0.0
  %5753 = vmatpush1.msra.mxu0 0.0
  %5754 = vmatprep.subr.mxu0 0.0
  %5755 = vmatpush1.msra.mxu0 0.0
  %5756 = vmatprep.subr.mxu0 0.0
  %5757 = vmatpush1.msra.mxu0 0.0
  %5758 = vmatprep.subr.mxu0 0.0
  %5759 = vmatpush1.msra.mxu0 0.0
  %5760 = vmatprep.subr.mxu0 %v5347
  %5761 = vmatpush1.msra.mxu0 %v5346
  %5762 = vmatprep.subr.mxu0 %v5328
  %5763 = vmatpush1.msra.mxu0 %v5327
  %5764 = vmatprep.subr.mxu0 %v5309
  %5765 = vmatpush1.msra.mxu0 %v5308
  %5766 = vmatprep.subr.mxu0 %v5290
  %5767 = vmatpush1.msra.mxu0 %v5289
  %5768 = vmatprep.subr.mxu0 %v5271
  %5769 = vmatpush1.msra.mxu0 %v5270
  %5770 = vmatprep.subr.mxu0 %v5252
  %5771 = vmatpush1.msra.mxu0 %v5251
  %5772 = vmatprep.subr.mxu0 %v5233
  %5773 = vmatpush1.msra.mxu0 %v5232
  %5774 = vmatprep.subr.mxu0 %v5214
  %5775 = vmatpush1.msra.mxu0 %v5213
  %5776 = vmatprep.subr.mxu0 %v5195
  %5777 = vmatpush1.msra.mxu0 %v5194
  %5778 = vmatprep.subr.mxu0 0.0
  %5779 = vmatpush2.msra.mxu0 0.0
  %5780 = vmatprep.subr.mxu0 0.0
  %5781 = vmatpush2.msra.mxu0 0.0
  %5782 = vmatprep.subr.mxu0 0.0
  %5783 = vmatpush2.msra.mxu0 0.0
  %5784 = vmatprep.subr.mxu0 0.0
  %5785 = vmatpush2.msra.mxu0 0.0
  %5786 = vmatprep.subr.mxu0 0.0
  %5787 = vmatpush2.msra.mxu0 0.0
  %5788 = vmatprep.subr.mxu0 0.0
  %5789 = vmatpush2.msra.mxu0 0.0
  %5790 = vmatprep.subr.mxu0 0.0
  %5791 = vmatpush2.msra.mxu0 0.0
  %5792 = vmatprep.subr.mxu0 0.0
  %5793 = vmatpush2.msra.mxu0 0.0
  %5794 = vmatprep.subr.mxu0 0.0
  %5795 = vmatpush2.msra.mxu0 0.0
  %5796 = vmatprep.subr.mxu0 0.0
  %5797 = vmatpush2.msra.mxu0 0.0
  %5798 = vmatprep.subr.mxu0 0.0
  %5799 = vmatpush2.msra.mxu0 0.0
  %5800 = vmatprep.subr.mxu0 0.0
  %5801 = vmatpush2.msra.mxu0 0.0
  %5802 = vmatprep.subr.mxu0 0.0
  %5803 = vmatpush2.msra.mxu0 0.0
  %5804 = vmatprep.subr.mxu0 0.0
  %5805 = vmatpush2.msra.mxu0 0.0
  %5806 = vmatprep.subr.mxu0 0.0
  %5807 = vmatpush2.msra.mxu0 0.0
  %5808 = vmatprep.subr.mxu0 0.0
  %5809 = vmatpush2.msra.mxu0 0.0
  %5810 = vmatprep.mubr.f32.mxu0 0.0
  %5811 = vmatmul.mubr.f32.gmra.mxu0 %v5531
  %v5812 = vpop.f32.mrf.mxu0
  %v5813 = vadd.f32 %v4828, %v5812
  %v5814 = vpop.f32.mrf.mxu0
  %v5815 = vadd.f32 %v4828, %v5814
  %5816 = vdwg.mxu0
  %5817 = vmatprep.subr.mxu0 0.0
  %5818 = vmatpush1.msra.mxu0 0.0
  %5819 = vmatprep.subr.mxu0 0.0
  %5820 = vmatpush1.msra.mxu0 0.0
  %5821 = vmatprep.subr.mxu0 0.0
  %5822 = vmatpush1.msra.mxu0 0.0
  %5823 = vmatprep.subr.mxu0 0.0
  %5824 = vmatpush1.msra.mxu0 0.0
  %5825 = vmatprep.subr.mxu0 0.0
  %5826 = vmatpush1.msra.mxu0 0.0
  %5827 = vmatprep.subr.mxu0 0.0
  %5828 = vmatpush1.msra.mxu0 0.0
  %5829 = vmatprep.subr.mxu0 0.0
  %5830 = vmatpush1.msra.mxu0 0.0
  %5831 = vmatprep.subr.mxu0 %v5349
  %5832 = vmatpush1.msra.mxu0 %v5348
  %5833 = vmatprep.subr.mxu0 %v5330
  %5834 = vmatpush1.msra.mxu0 %v5329
  %5835 = vmatprep.subr.mxu0 %v5311
  %5836 = vmatpush1.msra.mxu0 %v5310
  %5837 = vmatprep.subr.mxu0 %v5292
  %5838 = vmatpush1.msra.mxu0 %v5291
  %5839 = vmatprep.subr.mxu0 %v5273
  %5840 = vmatpush1.msra.mxu0 %v5272
  %5841 = vmatprep.subr.mxu0 %v5254
  %5842 = vmatpush1.msra.mxu0 %v5253
  %5843 = vmatprep.subr.mxu0 %v5235
  %5844 = vmatpush1.msra.mxu0 %v5234
  %5845 = vmatprep.subr.mxu0 %v5216
  %5846 = vmatpush1.msra.mxu0 %v5215
  %5847 = vmatprep.subr.mxu0 %v5197
  %5848 = vmatpush1.msra.mxu0 %v5196
  %5849 = vmatprep.subr.mxu0 0.0
  %5850 = vmatpush2.msra.mxu0 0.0
  %5851 = vmatprep.subr.mxu0 0.0
  %5852 = vmatpush2.msra.mxu0 0.0
  %5853 = vmatprep.subr.mxu0 0.0
  %5854 = vmatpush2.msra.mxu0 0.0
  %5855 = vmatprep.subr.mxu0 0.0
  %5856 = vmatpush2.msra.mxu0 0.0
  %5857 = vmatprep.subr.mxu0 0.0
  %5858 = vmatpush2.msra.mxu0 0.0
  %5859 = vmatprep.subr.mxu0 0.0
  %5860 = vmatpush2.msra.mxu0 0.0
  %5861 = vmatprep.subr.mxu0 0.0
  %5862 = vmatpush2.msra.mxu0 0.0
  %5863 = vmatprep.subr.mxu0 0.0
  %5864 = vmatpush2.msra.mxu0 0.0
  %5865 = vmatprep.subr.mxu0 0.0
  %5866 = vmatpush2.msra.mxu0 0.0
  %5867 = vmatprep.subr.mxu0 0.0
  %5868 = vmatpush2.msra.mxu0 0.0
  %5869 = vmatprep.subr.mxu0 0.0
  %5870 = vmatpush2.msra.mxu0 0.0
  %5871 = vmatprep.subr.mxu0 0.0
  %5872 = vmatpush2.msra.mxu0 0.0
  %5873 = vmatprep.subr.mxu0 0.0
  %5874 = vmatpush2.msra.mxu0 0.0
  %5875 = vmatprep.subr.mxu0 0.0
  %5876 = vmatpush2.msra.mxu0 0.0
  %5877 = vmatprep.subr.mxu0 0.0
  %5878 = vmatpush2.msra.mxu0 0.0
  %5879 = vmatprep.subr.mxu0 0.0
  %5880 = vmatpush2.msra.mxu0 0.0
  %5881 = vmatprep.mubr.f32.mxu0 0.0
  %5882 = vmatmul.mubr.f32.gmra.mxu0 %v5531
  %v5883 = vpop.f32.mrf.mxu0
  %v5884 = vadd.f32 %v4828, %v5883
  %v5885 = vpop.f32.mrf.mxu0
  %v5886 = vadd.f32 %v4828, %v5885
  %5887 = vdwg.mxu0
  %5888 = vmatprep.subr.mxu0 0.0
  %5889 = vmatpush1.msra.mxu0 0.0
  %5890 = vmatprep.subr.mxu0 0.0
  %5891 = vmatpush1.msra.mxu0 0.0
  %5892 = vmatprep.subr.mxu0 0.0
  %5893 = vmatpush1.msra.mxu0 0.0
  %5894 = vmatprep.subr.mxu0 0.0
  %5895 = vmatpush1.msra.mxu0 0.0
  %5896 = vmatprep.subr.mxu0 0.0
  %5897 = vmatpush1.msra.mxu0 0.0
  %5898 = vmatprep.subr.mxu0 0.0
  %5899 = vmatpush1.msra.mxu0 0.0
  %5900 = vmatprep.subr.mxu0 0.0
  %5901 = vmatpush1.msra.mxu0 0.0
  %5902 = vmatprep.subr.mxu0 %v5351
  %5903 = vmatpush1.msra.mxu0 %v5350
  %5904 = vmatprep.subr.mxu0 %v5332
  %5905 = vmatpush1.msra.mxu0 %v5331
  %5906 = vmatprep.subr.mxu0 %v5313
  %5907 = vmatpush1.msra.mxu0 %v5312
  %5908 = vmatprep.subr.mxu0 %v5294
  %5909 = vmatpush1.msra.mxu0 %v5293
  %5910 = vmatprep.subr.mxu0 %v5275
  %5911 = vmatpush1.msra.mxu0 %v5274
  %5912 = vmatprep.subr.mxu0 %v5256
  %5913 = vmatpush1.msra.mxu0 %v5255
  %5914 = vmatprep.subr.mxu0 %v5237
  %5915 = vmatpush1.msra.mxu0 %v5236
  %5916 = vmatprep.subr.mxu0 %v5218
  %5917 = vmatpush1.msra.mxu0 %v5217
  %5918 = vmatprep.subr.mxu0 %v5199
  %5919 = vmatpush1.msra.mxu0 %v5198
  %5920 = vmatprep.subr.mxu0 0.0
  %5921 = vmatpush2.msra.mxu0 0.0
  %5922 = vmatprep.subr.mxu0 0.0
  %5923 = vmatpush2.msra.mxu0 0.0
  %5924 = vmatprep.subr.mxu0 0.0
  %5925 = vmatpush2.msra.mxu0 0.0
  %5926 = vmatprep.subr.mxu0 0.0
  %5927 = vmatpush2.msra.mxu0 0.0
  %5928 = vmatprep.subr.mxu0 0.0
  %5929 = vmatpush2.msra.mxu0 0.0
  %5930 = vmatprep.subr.mxu0 0.0
  %5931 = vmatpush2.msra.mxu0 0.0
  %5932 = vmatprep.subr.mxu0 0.0
  %5933 = vmatpush2.msra.mxu0 0.0
  %5934 = vmatprep.subr.mxu0 0.0
  %5935 = vmatpush2.msra.mxu0 0.0
  %5936 = vmatprep.subr.mxu0 0.0
  %5937 = vmatpush2.msra.mxu0 0.0
  %5938 = vmatprep.subr.mxu0 0.0
  %5939 = vmatpush2.msra.mxu0 0.0
  %5940 = vmatprep.subr.mxu0 0.0
  %5941 = vmatpush2.msra.mxu0 0.0
  %5942 = vmatprep.subr.mxu0 0.0
  %5943 = vmatpush2.msra.mxu0 0.0
  %5944 = vmatprep.subr.mxu0 0.0
  %5945 = vmatpush2.msra.mxu0 0.0
  %5946 = vmatprep.subr.mxu0 0.0
  %5947 = vmatpush2.msra.mxu0 0.0
  %5948 = vmatprep.subr.mxu0 0.0
  %5949 = vmatpush2.msra.mxu0 0.0
  %5950 = vmatprep.subr.mxu0 0.0
  %5951 = vmatpush2.msra.mxu0 0.0
  %5952 = vmatprep.mubr.f32.mxu0 0.0
  %5953 = vmatmul.mubr.f32.gmra.mxu0 %v5531
  %v5954 = vpop.f32.mrf.mxu0
  %v5955 = vadd.f32 %v4828, %v5954
  %v5956 = vpop.f32.mrf.mxu0
  %v5957 = vadd.f32 %v4828, %v5956
  %5958 = vdwg.mxu0
  %5959 = vmatprep.subr.mxu0 0.0
  %5960 = vmatpush1.msra.mxu0 0.0
  %5961 = vmatprep.subr.mxu0 0.0
  %5962 = vmatpush1.msra.mxu0 0.0
  %5963 = vmatprep.subr.mxu0 0.0
  %5964 = vmatpush1.msra.mxu0 0.0
  %5965 = vmatprep.subr.mxu0 0.0
  %5966 = vmatpush1.msra.mxu0 0.0
  %5967 = vmatprep.subr.mxu0 0.0
  %5968 = vmatpush1.msra.mxu0 0.0
  %5969 = vmatprep.subr.mxu0 0.0
  %5970 = vmatpush1.msra.mxu0 0.0
  %5971 = vmatprep.subr.mxu0 0.0
  %5972 = vmatpush1.msra.mxu0 0.0
  %5973 = vmatprep.subr.mxu0 %v5353
  %5974 = vmatpush1.msra.mxu0 %v5352
  %5975 = vmatprep.subr.mxu0 %v5334
  %5976 = vmatpush1.msra.mxu0 %v5333
  %5977 = vmatprep.subr.mxu0 %v5315
  %5978 = vmatpush1.msra.mxu0 %v5314
  %5979 = vmatprep.subr.mxu0 %v5296
  %5980 = vmatpush1.msra.mxu0 %v5295
  %5981 = vmatprep.subr.mxu0 %v5277
  %5982 = vmatpush1.msra.mxu0 %v5276
  %5983 = vmatprep.subr.mxu0 %v5258
  %5984 = vmatpush1.msra.mxu0 %v5257
  %5985 = vmatprep.subr.mxu0 %v5239
  %5986 = vmatpush1.msra.mxu0 %v5238
  %5987 = vmatprep.subr.mxu0 %v5220
  %5988 = vmatpush1.msra.mxu0 %v5219
  %5989 = vmatprep.subr.mxu0 %v5201
  %5990 = vmatpush1.msra.mxu0 %v5200
  %5991 = vmatprep.subr.mxu0 0.0
  %5992 = vmatpush2.msra.mxu0 0.0
  %5993 = vmatprep.subr.mxu0 0.0
  %5994 = vmatpush2.msra.mxu0 0.0
  %5995 = vmatprep.subr.mxu0 0.0
  %5996 = vmatpush2.msra.mxu0 0.0
  %5997 = vmatprep.subr.mxu0 0.0
  %5998 = vmatpush2.msra.mxu0 0.0
  %5999 = vmatprep.subr.mxu0 0.0
  %6000 = vmatpush2.msra.mxu0 0.0
  %6001 = vmatprep.subr.mxu0 0.0
  %6002 = vmatpush2.msra.mxu0 0.0
  %6003 = vmatprep.subr.mxu0 0.0
  %6004 = vmatpush2.msra.mxu0 0.0
  %6005 = vmatprep.subr.mxu0 0.0
  %6006 = vmatpush2.msra.mxu0 0.0
  %6007 = vmatprep.subr.mxu0 0.0
  %6008 = vmatpush2.msra.mxu0 0.0
  %6009 = vmatprep.subr.mxu0 0.0
  %6010 = vmatpush2.msra.mxu0 0.0
  %6011 = vmatprep.subr.mxu0 0.0
  %6012 = vmatpush2.msra.mxu0 0.0
  %6013 = vmatprep.subr.mxu0 0.0
  %6014 = vmatpush2.msra.mxu0 0.0
  %6015 = vmatprep.subr.mxu0 0.0
  %6016 = vmatpush2.msra.mxu0 0.0
  %6017 = vmatprep.subr.mxu0 0.0
  %6018 = vmatpush2.msra.mxu0 0.0
  %6019 = vmatprep.subr.mxu0 0.0
  %6020 = vmatpush2.msra.mxu0 0.0
  %6021 = vmatprep.subr.mxu0 0.0
  %6022 = vmatpush2.msra.mxu0 0.0
  %6023 = vmatprep.mubr.f32.mxu0 0.0
  %6024 = vmatmul.mubr.f32.gmra.mxu0 %v5531
  %v6025 = vpop.f32.mrf.mxu0
  %v6026 = vadd.f32 %v4828, %v6025
  %v6027 = vpop.f32.mrf.mxu0
  %v6028 = vadd.f32 %v4828, %v6027
  %6029 = vdwg.mxu0
  %6030 = vmatprep.subr.mxu0 0.0
  %6031 = vmatpush1.msra.mxu0 0.0
  %6032 = vmatprep.subr.mxu0 0.0
  %6033 = vmatpush1.msra.mxu0 0.0
  %6034 = vmatprep.subr.mxu0 0.0
  %6035 = vmatpush1.msra.mxu0 0.0
  %6036 = vmatprep.subr.mxu0 0.0
  %6037 = vmatpush1.msra.mxu0 0.0
  %6038 = vmatprep.subr.mxu0 0.0
  %6039 = vmatpush1.msra.mxu0 0.0
  %6040 = vmatprep.subr.mxu0 0.0
  %6041 = vmatpush1.msra.mxu0 0.0
  %6042 = vmatprep.subr.mxu0 0.0
  %6043 = vmatpush1.msra.mxu0 0.0
  %6044 = vmatprep.subr.mxu0 %v5355
  %6045 = vmatpush1.msra.mxu0 %v5354
  %6046 = vmatprep.subr.mxu0 %v5336
  %6047 = vmatpush1.msra.mxu0 %v5335
  %6048 = vmatprep.subr.mxu0 %v5317
  %6049 = vmatpush1.msra.mxu0 %v5316
  %6050 = vmatprep.subr.mxu0 %v5298
  %6051 = vmatpush1.msra.mxu0 %v5297
  %6052 = vmatprep.subr.mxu0 %v5279
  %6053 = vmatpush1.msra.mxu0 %v5278
  %6054 = vmatprep.subr.mxu0 %v5260
  %6055 = vmatpush1.msra.mxu0 %v5259
  %6056 = vmatprep.subr.mxu0 %v5241
  %6057 = vmatpush1.msra.mxu0 %v5240
  %6058 = vmatprep.subr.mxu0 %v5222
  %6059 = vmatpush1.msra.mxu0 %v5221
  %6060 = vmatprep.subr.mxu0 %v5203
  %6061 = vmatpush1.msra.mxu0 %v5202
  %6062 = vmatprep.subr.mxu0 0.0
  %6063 = vmatpush2.msra.mxu0 0.0
  %6064 = vmatprep.subr.mxu0 0.0
  %6065 = vmatpush2.msra.mxu0 0.0
  %6066 = vmatprep.subr.mxu0 0.0
  %6067 = vmatpush2.msra.mxu0 0.0
  %6068 = vmatprep.subr.mxu0 0.0
  %6069 = vmatpush2.msra.mxu0 0.0
  %6070 = vmatprep.subr.mxu0 0.0
  %6071 = vmatpush2.msra.mxu0 0.0
  %6072 = vmatprep.subr.mxu0 0.0
  %6073 = vmatpush2.msra.mxu0 0.0
  %6074 = vmatprep.subr.mxu0 0.0
  %6075 = vmatpush2.msra.mxu0 0.0
  %6076 = vmatprep.subr.mxu0 0.0
  %6077 = vmatpush2.msra.mxu0 0.0
  %6078 = vmatprep.subr.mxu0 0.0
  %6079 = vmatpush2.msra.mxu0 0.0
  %6080 = vmatprep.subr.mxu0 0.0
  %6081 = vmatpush2.msra.mxu0 0.0
  %6082 = vmatprep.subr.mxu0 0.0
  %6083 = vmatpush2.msra.mxu0 0.0
  %6084 = vmatprep.subr.mxu0 0.0
  %6085 = vmatpush2.msra.mxu0 0.0
  %6086 = vmatprep.subr.mxu0 0.0
  %6087 = vmatpush2.msra.mxu0 0.0
  %6088 = vmatprep.subr.mxu0 0.0
  %6089 = vmatpush2.msra.mxu0 0.0
  %6090 = vmatprep.subr.mxu0 0.0
  %6091 = vmatpush2.msra.mxu0 0.0
  %6092 = vmatprep.subr.mxu0 0.0
  %6093 = vmatpush2.msra.mxu0 0.0
  %6094 = vmatprep.mubr.f32.mxu0 0.0
  %6095 = vmatmul.mubr.f32.gmra.mxu0 %v5531
  %v6096 = vpop.f32.mrf.mxu0
  %v6097 = vadd.f32 %v4828, %v6096
  %v6098 = vpop.f32.mrf.mxu0
  %v6099 = vadd.f32 %v4828, %v6098
  %6100 = vdwg.mxu0
  %6101 = vmatprep.subr.mxu0 0.0
  %6102 = vmatpush1.msra.mxu0 0.0
  %6103 = vmatprep.subr.mxu0 0.0
  %6104 = vmatpush1.msra.mxu0 0.0
  %6105 = vmatprep.subr.mxu0 0.0
  %6106 = vmatpush1.msra.mxu0 0.0
  %6107 = vmatprep.subr.mxu0 0.0
  %6108 = vmatpush1.msra.mxu0 0.0
  %6109 = vmatprep.subr.mxu0 0.0
  %6110 = vmatpush1.msra.mxu0 0.0
  %6111 = vmatprep.subr.mxu0 0.0
  %6112 = vmatpush1.msra.mxu0 0.0
  %6113 = vmatprep.subr.mxu0 0.0
  %6114 = vmatpush1.msra.mxu0 0.0
  %6115 = vmatprep.subr.mxu0 %v5357
  %6116 = vmatpush1.msra.mxu0 %v5356
  %6117 = vmatprep.subr.mxu0 %v5338
  %6118 = vmatpush1.msra.mxu0 %v5337
  %6119 = vmatprep.subr.mxu0 %v5319
  %6120 = vmatpush1.msra.mxu0 %v5318
  %6121 = vmatprep.subr.mxu0 %v5300
  %6122 = vmatpush1.msra.mxu0 %v5299
  %6123 = vmatprep.subr.mxu0 %v5281
  %6124 = vmatpush1.msra.mxu0 %v5280
  %6125 = vmatprep.subr.mxu0 %v5262
  %6126 = vmatpush1.msra.mxu0 %v5261
  %6127 = vmatprep.subr.mxu0 %v5243
  %6128 = vmatpush1.msra.mxu0 %v5242
  %6129 = vmatprep.subr.mxu0 %v5224
  %6130 = vmatpush1.msra.mxu0 %v5223
  %6131 = vmatprep.subr.mxu0 %v5205
  %6132 = vmatpush1.msra.mxu0 %v5204
  %6133 = vmatprep.subr.mxu0 0.0
  %6134 = vmatpush2.msra.mxu0 0.0
  %6135 = vmatprep.subr.mxu0 0.0
  %6136 = vmatpush2.msra.mxu0 0.0
  %6137 = vmatprep.subr.mxu0 0.0
  %6138 = vmatpush2.msra.mxu0 0.0
  %6139 = vmatprep.subr.mxu0 0.0
  %6140 = vmatpush2.msra.mxu0 0.0
  %6141 = vmatprep.subr.mxu0 0.0
  %6142 = vmatpush2.msra.mxu0 0.0
  %6143 = vmatprep.subr.mxu0 0.0
  %6144 = vmatpush2.msra.mxu0 0.0
  %6145 = vmatprep.subr.mxu0 0.0
  %6146 = vmatpush2.msra.mxu0 0.0
  %6147 = vmatprep.subr.mxu0 0.0
  %6148 = vmatpush2.msra.mxu0 0.0
  %6149 = vmatprep.subr.mxu0 0.0
  %6150 = vmatpush2.msra.mxu0 0.0
  %6151 = vmatprep.subr.mxu0 0.0
  %6152 = vmatpush2.msra.mxu0 0.0
  %6153 = vmatprep.subr.mxu0 0.0
  %6154 = vmatpush2.msra.mxu0 0.0
  %6155 = vmatprep.subr.mxu0 0.0
  %6156 = vmatpush2.msra.mxu0 0.0
  %6157 = vmatprep.subr.mxu0 0.0
  %6158 = vmatpush2.msra.mxu0 0.0
  %6159 = vmatprep.subr.mxu0 0.0
  %6160 = vmatpush2.msra.mxu0 0.0
  %6161 = vmatprep.subr.mxu0 0.0
  %6162 = vmatpush2.msra.mxu0 0.0
  %6163 = vmatprep.subr.mxu0 0.0
  %6164 = vmatpush2.msra.mxu0 0.0
  %6165 = vmatprep.mubr.f32.mxu0 0.0
  %6166 = vmatmul.mubr.f32.gmra.mxu0 %v5531
  %v6167 = vpop.f32.mrf.mxu0
  %v6168 = vadd.f32 %v4828, %v6167
  %v6169 = vpop.f32.mrf.mxu0
  %v6170 = vadd.f32 %v4828, %v6169
  %6171 = vdwg.mxu0
  %6172 = vmatprep.subr.mxu0 0.0
  %6173 = vmatpush1.msra.mxu0 0.0
  %6174 = vmatprep.subr.mxu0 0.0
  %6175 = vmatpush1.msra.mxu0 0.0
  %6176 = vmatprep.subr.mxu0 0.0
  %6177 = vmatpush1.msra.mxu0 0.0
  %6178 = vmatprep.subr.mxu0 0.0
  %6179 = vmatpush1.msra.mxu0 0.0
  %6180 = vmatprep.subr.mxu0 0.0
  %6181 = vmatpush1.msra.mxu0 0.0
  %6182 = vmatprep.subr.mxu0 0.0
  %6183 = vmatpush1.msra.mxu0 0.0
  %6184 = vmatprep.subr.mxu0 0.0
  %6185 = vmatpush1.msra.mxu0 0.0
  %6186 = vmatprep.subr.mxu0 0.0
  %6187 = vmatpush1.msra.mxu0 %v5358
  %6188 = vmatprep.subr.mxu0 0.0
  %6189 = vmatpush1.msra.mxu0 %v5339
  %6190 = vmatprep.subr.mxu0 0.0
  %6191 = vmatpush1.msra.mxu0 %v5320
  %6192 = vmatprep.subr.mxu0 0.0
  %6193 = vmatpush1.msra.mxu0 %v5301
  %6194 = vmatprep.subr.mxu0 0.0
  %6195 = vmatpush1.msra.mxu0 %v5282
  %6196 = vmatprep.subr.mxu0 0.0
  %6197 = vmatpush1.msra.mxu0 %v5263
  %6198 = vmatprep.subr.mxu0 0.0
  %6199 = vmatpush1.msra.mxu0 %v5244
  %6200 = vmatprep.subr.mxu0 0.0
  %6201 = vmatpush1.msra.mxu0 %v5225
  %6202 = vmatprep.subr.mxu0 0.0
  %6203 = vmatpush1.msra.mxu0 %v5206
  %6204 = vmatprep.subr.mxu0 0.0
  %6205 = vmatpush2.msra.mxu0 0.0
  %6206 = vmatprep.subr.mxu0 0.0
  %6207 = vmatpush2.msra.mxu0 0.0
  %6208 = vmatprep.subr.mxu0 0.0
  %6209 = vmatpush2.msra.mxu0 0.0
  %6210 = vmatprep.subr.mxu0 0.0
  %6211 = vmatpush2.msra.mxu0 0.0
  %6212 = vmatprep.subr.mxu0 0.0
  %6213 = vmatpush2.msra.mxu0 0.0
  %6214 = vmatprep.subr.mxu0 0.0
  %6215 = vmatpush2.msra.mxu0 0.0
  %6216 = vmatprep.subr.mxu0 0.0
  %6217 = vmatpush2.msra.mxu0 0.0
  %6218 = vmatprep.subr.mxu0 0.0
  %6219 = vmatpush2.msra.mxu0 0.0
  %6220 = vmatprep.subr.mxu0 0.0
  %6221 = vmatpush2.msra.mxu0 0.0
  %6222 = vmatprep.subr.mxu0 0.0
  %6223 = vmatpush2.msra.mxu0 0.0
  %6224 = vmatprep.subr.mxu0 0.0
  %6225 = vmatpush2.msra.mxu0 0.0
  %6226 = vmatprep.subr.mxu0 0.0
  %6227 = vmatpush2.msra.mxu0 0.0
  %6228 = vmatprep.subr.mxu0 0.0
  %6229 = vmatpush2.msra.mxu0 0.0
  %6230 = vmatprep.subr.mxu0 0.0
  %6231 = vmatpush2.msra.mxu0 0.0
  %6232 = vmatprep.subr.mxu0 0.0
  %6233 = vmatpush2.msra.mxu0 0.0
  %6234 = vmatprep.subr.mxu0 0.0
  %6235 = vmatpush2.msra.mxu0 0.0
  %6236 = vmatprep.mubr.f32.mxu0 0.0
  %6237 = vmatmul.mubr.f32.gmra.mxu0 %v5531
  %v6238 = vpop.f32.mrf.mxu0
  %v6239 = vadd.f32 %v4828, %v6238
  %v6240 = vpop.f32.mrf.mxu0
  %6241 = vdwg.mxu0
  %v6242 = vsub.f32 0.0, %v5600
  %v6243 = vsub.f32 0.0, %v5602
  %v6244 = vsub.f32 0.0, %v5671
  %v6245 = vsub.f32 0.0, %v5673
  %v6246 = vsub.f32 0.0, %v5742
  %v6247 = vsub.f32 0.0, %v5744
  %v6248 = vsub.f32 0.0, %v5813
  %v6249 = vsub.f32 0.0, %v5815
  %v6250 = vsub.f32 0.0, %v5884
  %v6251 = vsub.f32 0.0, %v5886
  %v6252 = vsub.f32 0.0, %v5955
  %v6253 = vsub.f32 0.0, %v5957
  %v6254 = vsub.f32 0.0, %v6026
  %v6255 = vsub.f32 0.0, %v6028
  %v6256 = vsub.f32 0.0, %v6097
  %v6257 = vsub.f32 0.0, %v6099
  %v6258 = vsub.f32 0.0, %v6168
  %v6259 = vsub.f32 0.0, %v6170
  %v6260 = vsub.f32 0.0, %v6239
  %v6261 = vmul.f32 %v6242, 1.442695
  %v6262 = vpow.pop %v6261
  %v6263 = vmul.f32 %v6243, 1.442695
  %v6264 = vpow.pop %v6263
  %v6265 = vmul.f32 %v6244, 1.442695
  %v6266 = vpow.pop %v6265
  %v6267 = vmul.f32 %v6245, 1.442695
  %v6268 = vpow.pop %v6267
  %v6269 = vmul.f32 %v6246, 1.442695
  %v6270 = vpow.pop %v6269
  %v6271 = vmul.f32 %v6247, 1.442695
  %v6272 = vpow.pop %v6271
  %v6273 = vmul.f32 %v6248, 1.442695
  %v6274 = vpow.pop %v6273
  %v6275 = vmul.f32 %v6249, 1.442695
  %v6276 = vpow.pop %v6275
  %v6277 = vmul.f32 %v6250, 1.442695
  %v6278 = vpow.pop %v6277
  %v6279 = vmul.f32 %v6251, 1.442695
  %v6280 = vpow.pop %v6279
  %v6281 = vmul.f32 %v6252, 1.442695
  %v6282 = vpow.pop %v6281
  %v6283 = vmul.f32 %v6253, 1.442695
  %v6284 = vpow.pop %v6283
  %v6285 = vmul.f32 %v6254, 1.442695
  %v6286 = vpow.pop %v6285
  %v6287 = vmul.f32 %v6255, 1.442695
  %v6288 = vpow.pop %v6287
  %v6289 = vmul.f32 %v6256, 1.442695
  %v6290 = vpow.pop %v6289
  %v6291 = vmul.f32 %v6257, 1.442695
  %v6292 = vpow.pop %v6291
  %v6293 = vmul.f32 %v6258, 1.442695
  %v6294 = vpow.pop %v6293
  %v6295 = vmul.f32 %v6259, 1.442695
  %v6296 = vpow.pop %v6295
  %v6297 = vmul.f32 %v6260, 1.442695
  %v6298 = vpow.pop %v6297
  %v6299 = vadd.f32 %v6262, 1.0
  %v6300 = vadd.f32 %v6264, 1.0
  %v6301 = vadd.f32 %v6266, 1.0
  %v6302 = vadd.f32 %v6268, 1.0
  %v6303 = vadd.f32 %v6270, 1.0
  %v6304 = vadd.f32 %v6272, 1.0
  %v6305 = vadd.f32 %v6274, 1.0
  %v6306 = vadd.f32 %v6276, 1.0
  %v6307 = vadd.f32 %v6278, 1.0
  %v6308 = vadd.f32 %v6280, 1.0
  %v6309 = vadd.f32 %v6282, 1.0
  %v6310 = vadd.f32 %v6284, 1.0
  %v6311 = vadd.f32 %v6286, 1.0
  %v6312 = vadd.f32 %v6288, 1.0
  %v6313 = vadd.f32 %v6290, 1.0
  %v6314 = vadd.f32 %v6292, 1.0
  %v6315 = vadd.f32 %v6294, 1.0
  %v6316 = vadd.f32 %v6296, 1.0
  %v6317 = vadd.f32 %v6298, 1.0
  %v6318 = vrcp.pop %v6299
  %v6319 = vmul.f32 1.0, %v6318
  %v6320 = vrcp.pop %v6300
  %v6321 = vmul.f32 1.0, %v6320
  %v6322 = vrcp.pop %v6301
  %v6323 = vmul.f32 1.0, %v6322
  %v6324 = vrcp.pop %v6302
  %v6325 = vmul.f32 1.0, %v6324
  %v6326 = vrcp.pop %v6303
  %v6327 = vmul.f32 1.0, %v6326
  %v6328 = vrcp.pop %v6304
  %v6329 = vmul.f32 1.0, %v6328
  %v6330 = vrcp.pop %v6305
  %v6331 = vmul.f32 1.0, %v6330
  %v6332 = vrcp.pop %v6306
  %v6333 = vmul.f32 1.0, %v6332
  %v6334 = vrcp.pop %v6307
  %v6335 = vmul.f32 1.0, %v6334
  %v6336 = vrcp.pop %v6308
  %v6337 = vmul.f32 1.0, %v6336
  %v6338 = vrcp.pop %v6309
  %v6339 = vmul.f32 1.0, %v6338
  %v6340 = vrcp.pop %v6310
  %v6341 = vmul.f32 1.0, %v6340
  %v6342 = vrcp.pop %v6311
  %v6343 = vmul.f32 1.0, %v6342
  %v6344 = vrcp.pop %v6312
  %v6345 = vmul.f32 1.0, %v6344
  %v6346 = vrcp.pop %v6313
  %v6347 = vmul.f32 1.0, %v6346
  %v6348 = vrcp.pop %v6314
  %v6349 = vmul.f32 1.0, %v6348
  %v6350 = vrcp.pop %v6315
  %v6351 = vmul.f32 1.0, %v6350
  %v6352 = vrcp.pop %v6316
  %v6353 = vmul.f32 1.0, %v6352
  %v6354 = vrcp.pop %v6317
  %v6355 = vmul.f32 1.0, %v6354
  %v6374 = vcombine.low %v6319, %v6321
  %v6375 = vcombine.low %v6323, %v6325
  %v6376 = vcombine.low %v6327, %v6329
  %v6377 = vcombine.low %v6331, %v6333
  %v6378 = vcombine.low %v6335, %v6337
  %v6379 = vcombine.low %v6339, %v6341
  %v6380 = vcombine.low %v6343, %v6345
  %v6381 = vcombine.low %v6347, %v6349
  %v6382 = vcombine.low %v6351, %v6353
  %6392 = vst [vmem:[%s12] sm:$0xff] %v6374
  %6393 = vst [vmem:[%s12 + $0x8] sm:$0xff] %v6375
  %6394 = vst [vmem:[%s12 + $0x10] sm:$0xff] %v6376
  %6395 = vst [vmem:[%s12 + $0x18] sm:$0xff] %v6377
  %6396 = vst [vmem:[%s12 + $0x20] sm:$0xff] %v6378
  %6397 = vst [vmem:[%s12 + $0x28] sm:$0xff] %v6379
  %6398 = vst [vmem:[%s12 + $0x30] sm:$0xff] %v6380
  %6399 = vst [vmem:[%s12 + $0x38] sm:$0xff] %v6381
  %6400 = vst [vmem:[%s12 + $0x40] sm:$0xff] %v6382
  %6401 = vst [vmem:[%s12 + $0x48] sm:$0xf] %v6355
  // Predicated region
  $region50: #{decoder_forward.1} parent=0 // pred_check
    _
  $region51: #{decoder_forward.1} parent=0 // pred_check_branch
    %6403 = sbr.rel (0) target = $region53
  $region52: #{decoder_forward.1} parent=0 // pred_region
    _
  $region53: #{decoder_forward.1} parent=0 // pred_fallthru
    _
  // Predicated region
  $region54: #{decoder_forward.1} parent=0 // pred_check
    _
  $region55: #{decoder_forward.1} parent=0 // pred_check_branch
    %6405 = sbr.rel (0) target = $region57
  $region56: #{decoder_forward.1} parent=0 // pred_region
    _
  $region57: #{decoder_forward.1} parent=0 // pred_fallthru
    _

</llo_original>
